<compile_context>
chip_gen: v7x
topology: tpu7x:2x2x1
jax: 0.10.0
libtpu: 0.0.40
codegen_flags: <defaults>
</compile_context>

<pallas_src>
import jax
import jax.numpy as jnp
from jax import lax
from jax.experimental import pallas as pl
from jax.experimental.pallas import tpu as pltpu


# --------------------------------------------------------------------------- #
# Kernel
# --------------------------------------------------------------------------- #

def make_resx_kernel(H, W, d, Cfull, S):
    """Kernel processing S samples per grid step, each as a (C, H*W) lane-dense tile."""
    HW = H * W
    eps = 1e-5

    # Static tap offsets for the dilated 3x3 conv (flattened spatial axis).
    taps = []
    for kh in range(3):
        for kw in range(3):
            taps.append((kh * 3 + kw, (kh - 1) * d * W + (kw - 1) * d))

    def kernel(x_ref, w1t_ref, an_ref, w2_ref, w3t_ref, pvec_ref, b3_ref,
               mask_ref, o_ref):
        # Loop-invariant reads (one (Cfull,Cfull) group matrix + six (Cfull,1) vectors).
        An = an_ref[...]
        b1 = pvec_ref[pl.ds(0 * Cfull, Cfull), :]
        g1 = pvec_ref[pl.ds(1 * Cfull, Cfull), :]
        be1 = pvec_ref[pl.ds(2 * Cfull, Cfull), :]
        b2 = pvec_ref[pl.ds(3 * Cfull, Cfull), :]
        g2 = pvec_ref[pl.ds(4 * Cfull, Cfull), :]
        be2 = pvec_ref[pl.ds(5 * Cfull, Cfull), :]

        def group_norm(y, gamma, beta):
            # Lane sums first (XLU), then trivial (Cfull,Cfull)@(Cfull,1) matmuls.
            s = jnp.sum(y, axis=1, keepdims=True)                      # (Cfull, 1)
            ss = jnp.sum(y * y, axis=1, keepdims=True)                 # (Cfull, 1)
            mean = jnp.dot(An, s, preferred_element_type=jnp.float32)  # (Cfull, 1)
            ex2 = jnp.dot(An, ss, preferred_element_type=jnp.float32)  # (Cfull, 1)
            var = jnp.maximum(ex2 - mean * mean, 0.0)                  # clamp >= 0
            inv = lax.rsqrt(var + eps)
            return (y - mean) * (inv * gamma) + beta

        def leaky(y):
            return jnp.maximum(y, 0.05 * y)

        def one_sample(x):
            # --- all B branch 1x1 convs fused: (Cfull, Cin) @ (Cin, HW) ---
            y = jnp.dot(w1t_ref[...], x, preferred_element_type=jnp.float32) + b1
            y = leaky(group_norm(y, g1, be1))

            # --- dilated 3x3 conv: nine accumulating per-tap matmuls.
            # Each tap is a lane rotation of the flattened spatial axis, zeroed at the
            # spatial boundary by a precomputed mask, contracted against the tap's
            # block-diagonal (Cfull, Cfull) weight.  No im2col materialization.
            acc = None
            for t, off in taps:
                if off == 0:
                    tap = y
                else:
                    tap = pltpu.roll(y, shift=(-off) % HW, axis=1) \
                        * mask_ref[pl.ds(t, 1), :]
                w_t = w2_ref[pl.ds(t * Cfull, Cfull), :]               # (Cfull, Cfull)
                contrib = jnp.dot(w_t, tap, preferred_element_type=jnp.float32)
                acc = contrib if acc is None else acc + contrib
            y = leaky(group_norm(acc + b2, g2, be2))

            # --- final 1x1 convs + branch sum fused: (Cout, Cfull) @ (Cfull, HW) ---
            return jnp.dot(w3t_ref[...], y,
                           preferred_element_type=jnp.float32) + b3_ref[...]

        if S == 1:
            o_ref[...] = one_sample(x_ref[...])
        else:
            for s in range(S):                      # static unroll over samples
                o_ref[s] = one_sample(x_ref[s])

    return kernel


# --------------------------------------------------------------------------- #
# Parameter fusion (wrapper-side, loop-invariant constants)
# --------------------------------------------------------------------------- #

def _prepare_fused_params(params, H, W, d, G):
    """Stack/fuse per-branch parameters into lane-friendly, branch-fused arrays."""
    B, Cin, Cm = params["W1"].shape
    Cout = params["W3"].shape[2]
    Cfull = B * Cm
    Cg = Cm // G
    HW = H * W
    f32 = jnp.float32

    # 1x1 conv #1: Y[b*Cm+co, :] = sum_ci W1[b, ci, co] * X[ci, :]
    W1T = jnp.transpose(params["W1"], (0, 2, 1)).reshape(Cfull, Cin).astype(f32)

    # Per-tap block-diagonal weights stacked along sublanes: (9*Cfull, Cfull).
    # W2 layout is HWIO per branch: W2[b, kh, kw, ci, co].
    W2 = params["W2"].astype(f32)
    W2taps = jnp.zeros((9, Cfull, Cfull), f32)
    for b in range(B):
        blk = jnp.transpose(W2[b].reshape(9, Cm, Cm), (0, 2, 1))       # (9, co, ci)
        W2taps = W2taps.at[:, b * Cm:(b + 1) * Cm, b * Cm:(b + 1) * Cm].set(blk)
    W2taps = W2taps.reshape(9 * Cfull, Cfull)

    # Final 1x1 conv stacked so the matmul sums the B branches: (Cout, Cfull).
    W3T = params["W3"].reshape(Cfull, Cout).T.astype(f32)
    b3 = params["b3"].sum(axis=0).reshape(Cout, 1).astype(f32)

    # Six per-channel vectors consolidated into a single (6*Cfull, 1) array.
    pvec = jnp.concatenate([
        params["b1"].reshape(Cfull, 1), params["g1"].reshape(Cfull, 1),
        params["be1"].reshape(Cfull, 1), params["b2"].reshape(Cfull, 1),
        params["g2"].reshape(Cfull, 1), params["be2"].reshape(Cfull, 1),
    ], axis=0).astype(f32)

    # Block-diagonal same-group indicator, pre-divided by the group element count.
    gid = jnp.arange(Cfull) // Cg
    A = (gid[:, None] == gid[None, :]).astype(f32) / float(HW * Cg)

    # Boundary masks for the 9 taps (1 where the shifted pixel is in-bounds).
    hw = jnp.arange(HW)
    hh, ww = hw // W, hw % W
    rows = []
    for kh in range(3):
        for kw in range(3):
            dh, dw = (kh - 1) * d, (kw - 1) * d
            valid = (hh + dh >= 0) & (hh + dh < H) & (ww + dw >= 0) & (ww + dw < W)
            rows.append(valid.astype(f32))
    mask = jnp.stack(rows, axis=0)                                     # (9, HW)

    return dict(W1T=W1T, A=A, W2taps=W2taps, W3T=W3T, pvec=pvec, b3=b3, mask=mask)


def _default_samples_per_step(N):
    """v7x / v4 expose 2 TensorCores per device: keep one sample per grid step so the
    "parallel" grid axis spreads samples over both cores.  Single-TC chips (v5e/v6e)
    process the whole batch in one step to amortize per-grid-step overhead."""
    try:
        kind = jax.devices()[0].device_kind.lower()
    except Exception:
        kind = ""
    multi_tc = ("7" in kind) or ("v4" in kind)
    return 1 if multi_tc else N


# --------------------------------------------------------------------------- #
# Wrapper
# --------------------------------------------------------------------------- #

def resx_block_pallas(x_nchw, params, dilate_val, groups, samples_per_step=None):
    N, Cin, H, Wd = x_nchw.shape
    HW = H * Wd
    B, _, Cm = params["W1"].shape
    Cout = params["W3"].shape[2]
    Cfull = B * Cm
    d = int(dilate_val)

    S = _default_samples_per_step(N) if samples_per_step is None else samples_per_step
    if N % S != 0:
        S = 1
    steps = N // S

    prep = _prepare_fused_params(params, H, Wd, d, groups)

    # Channels-in-sublanes / pixels-in-lanes: just a reshape of NCHW, no transpose.
    x = x_nchw.reshape(N, Cin, HW).astype(jnp.float32)

    kernel = make_resx_kernel(H, Wd, d, Cfull, S)

    const2 = lambda n: (0, 0)
    if S == 1:
        x_spec = pl.BlockSpec((None, Cin, HW), lambda n: (n, 0, 0))    # kernel sees 2-D
        o_spec = pl.BlockSpec((None, Cout, HW), lambda n: (n, 0, 0))
    else:
        x_spec = pl.BlockSpec((S, Cin, HW), lambda n: (n, 0, 0))
        o_spec = pl.BlockSpec((S, Cout, HW), lambda n: (n, 0, 0))

    in_specs = [
        x_spec,
        pl.BlockSpec((Cfull, Cin), const2),            # W1T (branch-stacked)
        pl.BlockSpec((Cfull, Cfull), const2),          # group indicator / count
        pl.BlockSpec((9 * Cfull, Cfull), const2),      # 9 block-diagonal tap weights
        pl.BlockSpec((Cout, Cfull), const2),           # W3T (stacked, sums branches)
        pl.BlockSpec((6 * Cfull, 1), const2),          # b1,g1,be1,b2,g2,be2 consolidated
        pl.BlockSpec((Cout, 1), const2),               # b3 (summed over branches)
        pl.BlockSpec((9, HW), const2),                 # boundary masks
    ]

    out = pl.pallas_call(
        kernel,
        out_shape=jax.ShapeDtypeStruct((N, Cout, HW), jnp.float32),
        grid_spec=pltpu.PrefetchScalarGridSpec(
            num_scalar_prefetch=0,
            grid=(steps,),
            in_specs=in_specs,
            out_specs=o_spec,
        ),
        compiler_params=pltpu.CompilerParams(
            dimension_semantics=("parallel",)),
    )(x, prep["W1T"], prep["A"], prep["W2taps"], prep["W3T"],
      prep["pvec"], prep["b3"], prep["mask"])

    return out.reshape(N, Cout, H, Wd)                 # already NCHW


# --------------------------------------------------------------------------- #
# Pure-JAX reference (for the correctness check)
# --------------------------------------------------------------------------- #

def _group_norm_ref(x, gamma, beta, G, eps=1e-5):
    N, H, W, C = x.shape
    Cg = C // G
    xr = x.reshape(N, H, W, G, Cg)
    mean = xr.mean(axis=(1, 2, 4), keepdims=True)
    var = ((xr - mean) ** 2).mean(axis=(1, 2, 4), keepdims=True)
    xn = ((xr - mean) * lax.rsqrt(var + eps)).reshape(N, H, W, C)
    return xn * gamma + beta


def resx_block_ref(x_nchw, params, d, G):
    hp = lax.Precision.HIGHEST
    x = jnp.transpose(x_nchw, (0, 2, 3, 1)).astype(jnp.float32)       # NHWC
    B = params["W1"].shape[0]
    out = None
    for b in range(B):
        y = jnp.einsum("nhwc,cm->nhwm", x, params["W1"][b], precision=hp) \
            + params["b1"][b, 0]
        y = _group_norm_ref(y, params["g1"][b, 0], params["be1"][b, 0], G)
        y = jnp.where(y >= 0, y, 0.05 * y)
        y = lax.conv_general_dilated(
            y, params["W2"][b], window_strides=(1, 1),
            padding=((d, d), (d, d)), rhs_dilation=(d, d),
            dimension_numbers=("NHWC", "HWIO", "NHWC"),
            precision=hp) + params["b2"][b, 0]
        y = _group_norm_ref(y, params["g2"][b, 0], params["be2"][b, 0], G)
        y = jnp.where(y >= 0, y, 0.05 * y)
        y = jnp.einsum("nhwc,cm->nhwm", y, params["W3"][b], precision=hp) \
            + params["b3"][b, 0]
        out = y if out is None else out + y
    return out.transpose(0, 3, 1, 2)


# --------------------------------------------------------------------------- #
# Main
# --------------------------------------------------------------------------- #

if __name__ == "__main__":
    # ResXBlock(filters_in=32, filters_out=32, dilate_val=2)
    filters_in, filters_out, dilate_val = 32, 32, 2
    N, H, W = 2, 16, 16

    group_reduce = filters_in // 8                 # 4
    cardinality = int(min(filters_in // 8, 32))    # 4 ResBlocks
    Cm = filters_in // group_reduce                # 8 mid channels per ResBlock
    groups = Cm // 4                               # GroupNorm(Cm//4, Cm)  (use_batchnorm=False)

    key = jax.random.PRNGKey(0)
    ks = jax.random.split(key, 12)
    B = cardinality
    params = {
        "W1": 0.10 * jax.random.normal(ks[0], (B, filters_in, Cm), jnp.float32),
        "b1": 0.05 * jax.random.normal(ks[1], (B, 1, Cm), jnp.float32),
        "g1": 1.0 + 0.10 * jax.random.normal(ks[2], (B, 1, Cm), jnp.float32),
        "be1": 0.10 * jax.random.normal(ks[3], (B, 1, Cm), jnp.float32),
        "W2": 0.10 * jax.random.normal(ks[4], (B, 3, 3, Cm, Cm), jnp.float32),
        "b2": 0.05 * jax.random.normal(ks[5], (B, 1, Cm), jnp.float32),
        "g2": 1.0 + 0.10 * jax.random.normal(ks[6], (B, 1, Cm), jnp.float32),
        "be2": 0.10 * jax.random.normal(ks[7], (B, 1, Cm), jnp.float32),
        "W3": 0.10 * jax.random.normal(ks[8], (B, Cm, filters_out), jnp.float32),
        "b3": 0.05 * jax.random.normal(ks[9], (B, 1, filters_out), jnp.float32),
    }
    x = jax.random.normal(ks[11], (N, filters_in, H, W), jnp.float32)

    out = resx_block_pallas(x, params, dilate_val, groups)
    out = jax.block_until_ready(out)

    ref = resx_block_ref(x, params, dilate_val, groups)
    err = float(jnp.max(jnp.abs(out - ref)))
    assert out.shape == (N, filters_out, H, W), out.shape
    # f32 MXU passes typically give ~1e-5 here; keep slack for generation-dependent
    # default matmul-precision behavior of small f32 contractions.
    assert err < 2e-2, f"max abs error too large: {err}"

    print("KERNEL_OK")
</pallas_src>

<mosaic_0001>
module attributes {stable_mosaic.version = 11 : i64} {
  func.func @kernel(%arg0: i32, %arg1: memref<2x32x256xf32, #tpu.memory_space<vmem>>, %arg2: memref<32x32xf32, #tpu.memory_space<vmem>>, %arg3: memref<32x32xf32, #tpu.memory_space<vmem>>, %arg4: memref<288x32xf32, #tpu.memory_space<vmem>>, %arg5: memref<32x32xf32, #tpu.memory_space<vmem>>, %arg6: memref<192x1xf32, #tpu.memory_space<vmem>>, %arg7: memref<32x1xf32, #tpu.memory_space<vmem>>, %arg8: memref<9x256xf32, #tpu.memory_space<vmem>>, %arg9: memref<2x32x256xf32, #tpu.memory_space<vmem>>) attributes {dimension_semantics = [#tpu.dimension_semantics<parallel>], iteration_bounds = array<i64: 1>, scalar_prefetch = 0 : i64, scratch_operands = 0 : i64, tpu.core_type = #tpu.core_type<tc>, window_params = [{transform_indices = @transform_0, window_bounds = array<i64: 2, 32, 256>}, {pipeline_mode = #tpu.pipeline_mode<synchronous>, transform_indices = @transform_1, window_bounds = array<i64: 32, 32>}, {pipeline_mode = #tpu.pipeline_mode<synchronous>, transform_indices = @transform_2, window_bounds = array<i64: 32, 32>}, {pipeline_mode = #tpu.pipeline_mode<synchronous>, transform_indices = @transform_3, window_bounds = array<i64: 288, 32>}, {pipeline_mode = #tpu.pipeline_mode<synchronous>, transform_indices = @transform_4, window_bounds = array<i64: 32, 32>}, {pipeline_mode = #tpu.pipeline_mode<synchronous>, transform_indices = @transform_5, window_bounds = array<i64: 192, 1>}, {pipeline_mode = #tpu.pipeline_mode<synchronous>, transform_indices = @transform_6, window_bounds = array<i64: 32, 1>}, {pipeline_mode = #tpu.pipeline_mode<synchronous>, transform_indices = @transform_7, window_bounds = array<i64: 9, 256>}, {transform_indices = @transform_8, window_bounds = array<i64: 2, 32, 256>}]} {
    %c0 = arith.constant 0 : index
    %c0_0 = arith.constant 0 : index
    %0 = vector.load %arg3[%c0, %c0_0] : memref<32x32xf32, #tpu.memory_space<vmem>>, vector<32x32xf32>
    %c0_1 = arith.constant 0 : index
    %c0_2 = arith.constant 0 : index
    %1 = vector.load %arg6[%c0_1, %c0_2] : memref<192x1xf32, #tpu.memory_space<vmem>>, vector<32x1xf32>
    %c32 = arith.constant 32 : index
    %c0_3 = arith.constant 0 : index
    %2 = vector.load %arg6[%c32, %c0_3] : memref<192x1xf32, #tpu.memory_space<vmem>>, vector<32x1xf32>
    %c64 = arith.constant 64 : index
    %c0_4 = arith.constant 0 : index
    %3 = vector.load %arg6[%c64, %c0_4] : memref<192x1xf32, #tpu.memory_space<vmem>>, vector<32x1xf32>
    %c96 = arith.constant 96 : index
    %c0_5 = arith.constant 0 : index
    %4 = vector.load %arg6[%c96, %c0_5] : memref<192x1xf32, #tpu.memory_space<vmem>>, vector<32x1xf32>
    %c128 = arith.constant 128 : index
    %c0_6 = arith.constant 0 : index
    %5 = vector.load %arg6[%c128, %c0_6] : memref<192x1xf32, #tpu.memory_space<vmem>>, vector<32x1xf32>
    %c160 = arith.constant 160 : index
    %c0_7 = arith.constant 0 : index
    %6 = vector.load %arg6[%c160, %c0_7] : memref<192x1xf32, #tpu.memory_space<vmem>>, vector<32x1xf32>
    %c0_8 = arith.constant 0 : index
    %c0_9 = arith.constant 0 : index
    %c0_10 = arith.constant 0 : index
    %7 = vector.load %arg1[%c0_8, %c0_9, %c0_10] : memref<2x32x256xf32, #tpu.memory_space<vmem>>, vector<1x32x256xf32>
    %8 = vector.shape_cast %7 : vector<1x32x256xf32> to vector<32x256xf32>
    %c0_11 = arith.constant 0 : index
    %c0_12 = arith.constant 0 : index
    %9 = vector.load %arg2[%c0_11, %c0_12] : memref<32x32xf32, #tpu.memory_space<vmem>>, vector<32x32xf32>
    %cst = arith.constant dense<0.000000e+00> : vector<32x256xf32>
    %10 = tpu.matmul %9, %8, %cst {dimension_numbers = #tpu.dot_dimension_numbers<[1], [0], [0], [1], [0, 0, 1, 1], [], []>} : vector<32x32xf32>, vector<32x256xf32>, vector<32x256xf32> -> vector<32x256xf32>
    %11 = vector.broadcast %1 : vector<32x1xf32> to vector<32x256xf32>
    %12 = arith.addf %10, %11 : vector<32x256xf32>
    %cst_13 = arith.constant dense<0.000000e+00> : vector<32xf32>
    %13 = vector.multi_reduction <add>, %12, %cst_13 [1] : vector<32x256xf32> to vector<32xf32>
    %14 = vector.shape_cast %13 : vector<32xf32> to vector<32x1xf32>
    %15 = arith.mulf %12, %12 : vector<32x256xf32>
    %cst_14 = arith.constant dense<0.000000e+00> : vector<32xf32>
    %16 = vector.multi_reduction <add>, %15, %cst_14 [1] : vector<32x256xf32> to vector<32xf32>
    %17 = vector.shape_cast %16 : vector<32xf32> to vector<32x1xf32>
    %cst_15 = arith.constant dense<0.000000e+00> : vector<32x1xf32>
    %18 = tpu.matmul %0, %14, %cst_15 {dimension_numbers = #tpu.dot_dimension_numbers<[1], [0], [0], [1], [0, 0, 1, 1], [], []>} : vector<32x32xf32>, vector<32x1xf32>, vector<32x1xf32> -> vector<32x1xf32>
    %cst_16 = arith.constant dense<0.000000e+00> : vector<32x1xf32>
    %19 = tpu.matmul %0, %17, %cst_16 {dimension_numbers = #tpu.dot_dimension_numbers<[1], [0], [0], [1], [0, 0, 1, 1], [], []>} : vector<32x32xf32>, vector<32x1xf32>, vector<32x1xf32> -> vector<32x1xf32>
    %20 = arith.mulf %18, %18 : vector<32x1xf32>
    %21 = arith.subf %19, %20 : vector<32x1xf32>
    %cst_17 = arith.constant 0.000000e+00 : f32
    %22 = vector.broadcast %cst_17 : f32 to vector<32x1xf32>
    %23 = arith.maximumf %21, %22 : vector<32x1xf32>
    %cst_18 = arith.constant 9.99999974E-6 : f32
    %24 = vector.broadcast %cst_18 : f32 to vector<32x1xf32>
    %25 = arith.addf %23, %24 : vector<32x1xf32>
    %26 = math.rsqrt %25 : vector<32x1xf32>
    %27 = vector.broadcast %18 : vector<32x1xf32> to vector<32x256xf32>
    %28 = arith.subf %12, %27 : vector<32x256xf32>
    %29 = arith.mulf %26, %2 : vector<32x1xf32>
    %30 = vector.broadcast %29 : vector<32x1xf32> to vector<32x256xf32>
    %31 = arith.mulf %28, %30 : vector<32x256xf32>
    %32 = vector.broadcast %3 : vector<32x1xf32> to vector<32x256xf32>
    %33 = arith.addf %31, %32 : vector<32x256xf32>
    %cst_19 = arith.constant 5.000000e-02 : f32
    %34 = vector.broadcast %cst_19 : f32 to vector<32x256xf32>
    %35 = arith.mulf %34, %33 : vector<32x256xf32>
    %36 = arith.maximumf %33, %35 : vector<32x256xf32>
    %c34_i32 = arith.constant 34 : i32
    %37 = tpu.dynamic_rotate %36 by %c34_i32 dim 1 : vector<32x256xf32>, i32 -> vector<32x256xf32>
    %c0_20 = arith.constant 0 : index
    %c0_21 = arith.constant 0 : index
    %38 = vector.load %arg8[%c0_20, %c0_21] : memref<9x256xf32, #tpu.memory_space<vmem>>, vector<1x256xf32>
    %39 = vector.broadcast %38 : vector<1x256xf32> to vector<32x256xf32>
    %40 = arith.mulf %37, %39 : vector<32x256xf32>
    %c0_22 = arith.constant 0 : index
    %c0_23 = arith.constant 0 : index
    %41 = vector.load %arg4[%c0_22, %c0_23] : memref<288x32xf32, #tpu.memory_space<vmem>>, vector<32x32xf32>
    %cst_24 = arith.constant dense<0.000000e+00> : vector<32x256xf32>
    %42 = tpu.matmul %41, %40, %cst_24 {dimension_numbers = #tpu.dot_dimension_numbers<[1], [0], [0], [1], [0, 0, 1, 1], [], []>} : vector<32x32xf32>, vector<32x256xf32>, vector<32x256xf32> -> vector<32x256xf32>
    %c32_i32 = arith.constant 32 : i32
    %43 = tpu.dynamic_rotate %36 by %c32_i32 dim 1 : vector<32x256xf32>, i32 -> vector<32x256xf32>
    %c1 = arith.constant 1 : index
    %c0_25 = arith.constant 0 : index
    %44 = vector.load %arg8[%c1, %c0_25] : memref<9x256xf32, #tpu.memory_space<vmem>>, vector<1x256xf32>
    %45 = vector.broadcast %44 : vector<1x256xf32> to vector<32x256xf32>
    %46 = arith.mulf %43, %45 : vector<32x256xf32>
    %c32_26 = arith.constant 32 : index
    %c0_27 = arith.constant 0 : index
    %47 = vector.load %arg4[%c32_26, %c0_27] : memref<288x32xf32, #tpu.memory_space<vmem>>, vector<32x32xf32>
    %cst_28 = arith.constant dense<0.000000e+00> : vector<32x256xf32>
    %48 = tpu.matmul %47, %46, %cst_28 {dimension_numbers = #tpu.dot_dimension_numbers<[1], [0], [0], [1], [0, 0, 1, 1], [], []>} : vector<32x32xf32>, vector<32x256xf32>, vector<32x256xf32> -> vector<32x256xf32>
    %49 = arith.addf %42, %48 : vector<32x256xf32>
    %c30_i32 = arith.constant 30 : i32
    %50 = tpu.dynamic_rotate %36 by %c30_i32 dim 1 : vector<32x256xf32>, i32 -> vector<32x256xf32>
    %c2 = arith.constant 2 : index
    %c0_29 = arith.constant 0 : index
    %51 = vector.load %arg8[%c2, %c0_29] : memref<9x256xf32, #tpu.memory_space<vmem>>, vector<1x256xf32>
    %52 = vector.broadcast %51 : vector<1x256xf32> to vector<32x256xf32>
    %53 = arith.mulf %50, %52 : vector<32x256xf32>
    %c64_30 = arith.constant 64 : index
    %c0_31 = arith.constant 0 : index
    %54 = vector.load %arg4[%c64_30, %c0_31] : memref<288x32xf32, #tpu.memory_space<vmem>>, vector<32x32xf32>
    %cst_32 = arith.constant dense<0.000000e+00> : vector<32x256xf32>
    %55 = tpu.matmul %54, %53, %cst_32 {dimension_numbers = #tpu.dot_dimension_numbers<[1], [0], [0], [1], [0, 0, 1, 1], [], []>} : vector<32x32xf32>, vector<32x256xf32>, vector<32x256xf32> -> vector<32x256xf32>
    %56 = arith.addf %49, %55 : vector<32x256xf32>
    %c2_i32 = arith.constant 2 : i32
    %57 = tpu.dynamic_rotate %36 by %c2_i32 dim 1 : vector<32x256xf32>, i32 -> vector<32x256xf32>
    %c3 = arith.constant 3 : index
    %c0_33 = arith.constant 0 : index
    %58 = vector.load %arg8[%c3, %c0_33] : memref<9x256xf32, #tpu.memory_space<vmem>>, vector<1x256xf32>
    %59 = vector.broadcast %58 : vector<1x256xf32> to vector<32x256xf32>
    %60 = arith.mulf %57, %59 : vector<32x256xf32>
    %c96_34 = arith.constant 96 : index
    %c0_35 = arith.constant 0 : index
    %61 = vector.load %arg4[%c96_34, %c0_35] : memref<288x32xf32, #tpu.memory_space<vmem>>, vector<32x32xf32>
    %cst_36 = arith.constant dense<0.000000e+00> : vector<32x256xf32>
    %62 = tpu.matmul %61, %60, %cst_36 {dimension_numbers = #tpu.dot_dimension_numbers<[1], [0], [0], [1], [0, 0, 1, 1], [], []>} : vector<32x32xf32>, vector<32x256xf32>, vector<32x256xf32> -> vector<32x256xf32>
    %63 = arith.addf %56, %62 : vector<32x256xf32>
    %c128_37 = arith.constant 128 : index
    %c0_38 = arith.constant 0 : index
    %64 = vector.load %arg4[%c128_37, %c0_38] : memref<288x32xf32, #tpu.memory_space<vmem>>, vector<32x32xf32>
    %cst_39 = arith.constant dense<0.000000e+00> : vector<32x256xf32>
    %65 = tpu.matmul %64, %36, %cst_39 {dimension_numbers = #tpu.dot_dimension_numbers<[1], [0], [0], [1], [0, 0, 1, 1], [], []>} : vector<32x32xf32>, vector<32x256xf32>, vector<32x256xf32> -> vector<32x256xf32>
    %66 = arith.addf %63, %65 : vector<32x256xf32>
    %c254_i32 = arith.constant 254 : i32
    %67 = tpu.dynamic_rotate %36 by %c254_i32 dim 1 : vector<32x256xf32>, i32 -> vector<32x256xf32>
    %c5 = arith.constant 5 : index
    %c0_40 = arith.constant 0 : index
    %68 = vector.load %arg8[%c5, %c0_40] : memref<9x256xf32, #tpu.memory_space<vmem>>, vector<1x256xf32>
    %69 = vector.broadcast %68 : vector<1x256xf32> to vector<32x256xf32>
    %70 = arith.mulf %67, %69 : vector<32x256xf32>
    %c160_41 = arith.constant 160 : index
    %c0_42 = arith.constant 0 : index
    %71 = vector.load %arg4[%c160_41, %c0_42] : memref<288x32xf32, #tpu.memory_space<vmem>>, vector<32x32xf32>
    %cst_43 = arith.constant dense<0.000000e+00> : vector<32x256xf32>
    %72 = tpu.matmul %71, %70, %cst_43 {dimension_numbers = #tpu.dot_dimension_numbers<[1], [0], [0], [1], [0, 0, 1, 1], [], []>} : vector<32x32xf32>, vector<32x256xf32>, vector<32x256xf32> -> vector<32x256xf32>
    %73 = arith.addf %66, %72 : vector<32x256xf32>
    %c226_i32 = arith.constant 226 : i32
    %74 = tpu.dynamic_rotate %36 by %c226_i32 dim 1 : vector<32x256xf32>, i32 -> vector<32x256xf32>
    %c6 = arith.constant 6 : index
    %c0_44 = arith.constant 0 : index
    %75 = vector.load %arg8[%c6, %c0_44] : memref<9x256xf32, #tpu.memory_space<vmem>>, vector<1x256xf32>
    %76 = vector.broadcast %75 : vector<1x256xf32> to vector<32x256xf32>
    %77 = arith.mulf %74, %76 : vector<32x256xf32>
    %c192 = arith.constant 192 : index
    %c0_45 = arith.constant 0 : index
    %78 = vector.load %arg4[%c192, %c0_45] : memref<288x32xf32, #tpu.memory_space<vmem>>, vector<32x32xf32>
    %cst_46 = arith.constant dense<0.000000e+00> : vector<32x256xf32>
    %79 = tpu.matmul %78, %77, %cst_46 {dimension_numbers = #tpu.dot_dimension_numbers<[1], [0], [0], [1], [0, 0, 1, 1], [], []>} : vector<32x32xf32>, vector<32x256xf32>, vector<32x256xf32> -> vector<32x256xf32>
    %80 = arith.addf %73, %79 : vector<32x256xf32>
    %c224_i32 = arith.constant 224 : i32
    %81 = tpu.dynamic_rotate %36 by %c224_i32 dim 1 : vector<32x256xf32>, i32 -> vector<32x256xf32>
    %c7 = arith.constant 7 : index
    %c0_47 = arith.constant 0 : index
    %82 = vector.load %arg8[%c7, %c0_47] : memref<9x256xf32, #tpu.memory_space<vmem>>, vector<1x256xf32>
    %83 = vector.broadcast %82 : vector<1x256xf32> to vector<32x256xf32>
    %84 = arith.mulf %81, %83 : vector<32x256xf32>
    %c224 = arith.constant 224 : index
    %c0_48 = arith.constant 0 : index
    %85 = vector.load %arg4[%c224, %c0_48] : memref<288x32xf32, #tpu.memory_space<vmem>>, vector<32x32xf32>
    %cst_49 = arith.constant dense<0.000000e+00> : vector<32x256xf32>
    %86 = tpu.matmul %85, %84, %cst_49 {dimension_numbers = #tpu.dot_dimension_numbers<[1], [0], [0], [1], [0, 0, 1, 1], [], []>} : vector<32x32xf32>, vector<32x256xf32>, vector<32x256xf32> -> vector<32x256xf32>
    %87 = arith.addf %80, %86 : vector<32x256xf32>
    %c222_i32 = arith.constant 222 : i32
    %88 = tpu.dynamic_rotate %36 by %c222_i32 dim 1 : vector<32x256xf32>, i32 -> vector<32x256xf32>
    %c8 = arith.constant 8 : index
    %c0_50 = arith.constant 0 : index
    %89 = vector.load %arg8[%c8, %c0_50] : memref<9x256xf32, #tpu.memory_space<vmem>>, vector<1x256xf32>
    %90 = vector.broadcast %89 : vector<1x256xf32> to vector<32x256xf32>
    %91 = arith.mulf %88, %90 : vector<32x256xf32>
    %c256 = arith.constant 256 : index
    %c0_51 = arith.constant 0 : index
    %92 = vector.load %arg4[%c256, %c0_51] : memref<288x32xf32, #tpu.memory_space<vmem>>, vector<32x32xf32>
    %cst_52 = arith.constant dense<0.000000e+00> : vector<32x256xf32>
    %93 = tpu.matmul %92, %91, %cst_52 {dimension_numbers = #tpu.dot_dimension_numbers<[1], [0], [0], [1], [0, 0, 1, 1], [], []>} : vector<32x32xf32>, vector<32x256xf32>, vector<32x256xf32> -> vector<32x256xf32>
    %94 = arith.addf %87, %93 : vector<32x256xf32>
    %95 = vector.broadcast %4 : vector<32x1xf32> to vector<32x256xf32>
    %96 = arith.addf %94, %95 : vector<32x256xf32>
    %cst_53 = arith.constant dense<0.000000e+00> : vector<32xf32>
    %97 = vector.multi_reduction <add>, %96, %cst_53 [1] : vector<32x256xf32> to vector<32xf32>
    %98 = vector.shape_cast %97 : vector<32xf32> to vector<32x1xf32>
    %99 = arith.mulf %96, %96 : vector<32x256xf32>
    %cst_54 = arith.constant dense<0.000000e+00> : vector<32xf32>
    %100 = vector.multi_reduction <add>, %99, %cst_54 [1] : vector<32x256xf32> to vector<32xf32>
    %101 = vector.shape_cast %100 : vector<32xf32> to vector<32x1xf32>
    %cst_55 = arith.constant dense<0.000000e+00> : vector<32x1xf32>
    %102 = tpu.matmul %0, %98, %cst_55 {dimension_numbers = #tpu.dot_dimension_numbers<[1], [0], [0], [1], [0, 0, 1, 1], [], []>} : vector<32x32xf32>, vector<32x1xf32>, vector<32x1xf32> -> vector<32x1xf32>
    %cst_56 = arith.constant dense<0.000000e+00> : vector<32x1xf32>
    %103 = tpu.matmul %0, %101, %cst_56 {dimension_numbers = #tpu.dot_dimension_numbers<[1], [0], [0], [1], [0, 0, 1, 1], [], []>} : vector<32x32xf32>, vector<32x1xf32>, vector<32x1xf32> -> vector<32x1xf32>
    %104 = arith.mulf %102, %102 : vector<32x1xf32>
    %105 = arith.subf %103, %104 : vector<32x1xf32>
    %cst_57 = arith.constant 0.000000e+00 : f32
    %106 = vector.broadcast %cst_57 : f32 to vector<32x1xf32>
    %107 = arith.maximumf %105, %106 : vector<32x1xf32>
    %cst_58 = arith.constant 9.99999974E-6 : f32
    %108 = vector.broadcast %cst_58 : f32 to vector<32x1xf32>
    %109 = arith.addf %107, %108 : vector<32x1xf32>
    %110 = math.rsqrt %109 : vector<32x1xf32>
    %111 = vector.broadcast %102 : vector<32x1xf32> to vector<32x256xf32>
    %112 = arith.subf %96, %111 : vector<32x256xf32>
    %113 = arith.mulf %110, %5 : vector<32x1xf32>
    %114 = vector.broadcast %113 : vector<32x1xf32> to vector<32x256xf32>
    %115 = arith.mulf %112, %114 : vector<32x256xf32>
    %116 = vector.broadcast %6 : vector<32x1xf32> to vector<32x256xf32>
    %117 = arith.addf %115, %116 : vector<32x256xf32>
    %cst_59 = arith.constant 5.000000e-02 : f32
    %118 = vector.broadcast %cst_59 : f32 to vector<32x256xf32>
    %119 = arith.mulf %118, %117 : vector<32x256xf32>
    %120 = arith.maximumf %117, %119 : vector<32x256xf32>
    %c0_60 = arith.constant 0 : index
    %c0_61 = arith.constant 0 : index
    %121 = vector.load %arg5[%c0_60, %c0_61] : memref<32x32xf32, #tpu.memory_space<vmem>>, vector<32x32xf32>
    %cst_62 = arith.constant dense<0.000000e+00> : vector<32x256xf32>
    %122 = tpu.matmul %121, %120, %cst_62 {dimension_numbers = #tpu.dot_dimension_numbers<[1], [0], [0], [1], [0, 0, 1, 1], [], []>} : vector<32x32xf32>, vector<32x256xf32>, vector<32x256xf32> -> vector<32x256xf32>
    %c0_63 = arith.constant 0 : index
    %c0_64 = arith.constant 0 : index
    %123 = vector.load %arg7[%c0_63, %c0_64] : memref<32x1xf32, #tpu.memory_space<vmem>>, vector<32x1xf32>
    %124 = vector.broadcast %123 : vector<32x1xf32> to vector<32x256xf32>
    %125 = arith.addf %122, %124 : vector<32x256xf32>
    %c0_65 = arith.constant 0 : index
    %c0_66 = arith.constant 0 : index
    %c0_67 = arith.constant 0 : index
    %126 = vector.load %arg9[%c0_65, %c0_66, %c0_67] : memref<2x32x256xf32, #tpu.memory_space<vmem>>, vector<1x32x256xf32>
    %127 = vector.shape_cast %126 : vector<1x32x256xf32> to vector<32x256xf32>
    %128 = vector.shape_cast %125 : vector<32x256xf32> to vector<1x32x256xf32>
    tpu.vector_store %arg9[%c0_65, %c0_66, %c0_67], %128 {strides = array<i32>} : memref<2x32x256xf32, #tpu.memory_space<vmem>>, vector<1x32x256xf32>,
    %c1_68 = arith.constant 1 : index
    %c0_69 = arith.constant 0 : index
    %c0_70 = arith.constant 0 : index
    %129 = vector.load %arg1[%c1_68, %c0_69, %c0_70] : memref<2x32x256xf32, #tpu.memory_space<vmem>>, vector<1x32x256xf32>
    %130 = vector.shape_cast %129 : vector<1x32x256xf32> to vector<32x256xf32>
    %c0_71 = arith.constant 0 : index
    %c0_72 = arith.constant 0 : index
    %131 = vector.load %arg2[%c0_71, %c0_72] : memref<32x32xf32, #tpu.memory_space<vmem>>, vector<32x32xf32>
    %cst_73 = arith.constant dense<0.000000e+00> : vector<32x256xf32>
    %132 = tpu.matmul %131, %130, %cst_73 {dimension_numbers = #tpu.dot_dimension_numbers<[1], [0], [0], [1], [0, 0, 1, 1], [], []>} : vector<32x32xf32>, vector<32x256xf32>, vector<32x256xf32> -> vector<32x256xf32>
    %133 = vector.broadcast %1 : vector<32x1xf32> to vector<32x256xf32>
    %134 = arith.addf %132, %133 : vector<32x256xf32>
    %cst_74 = arith.constant dense<0.000000e+00> : vector<32xf32>
    %135 = vector.multi_reduction <add>, %134, %cst_74 [1] : vector<32x256xf32> to vector<32xf32>
    %136 = vector.shape_cast %135 : vector<32xf32> to vector<32x1xf32>
    %137 = arith.mulf %134, %134 : vector<32x256xf32>
    %cst_75 = arith.constant dense<0.000000e+00> : vector<32xf32>
    %138 = vector.multi_reduction <add>, %137, %cst_75 [1] : vector<32x256xf32> to vector<32xf32>
    %139 = vector.shape_cast %138 : vector<32xf32> to vector<32x1xf32>
    %cst_76 = arith.constant dense<0.000000e+00> : vector<32x1xf32>
    %140 = tpu.matmul %0, %136, %cst_76 {dimension_numbers = #tpu.dot_dimension_numbers<[1], [0], [0], [1], [0, 0, 1, 1], [], []>} : vector<32x32xf32>, vector<32x1xf32>, vector<32x1xf32> -> vector<32x1xf32>
    %cst_77 = arith.constant dense<0.000000e+00> : vector<32x1xf32>
    %141 = tpu.matmul %0, %139, %cst_77 {dimension_numbers = #tpu.dot_dimension_numbers<[1], [0], [0], [1], [0, 0, 1, 1], [], []>} : vector<32x32xf32>, vector<32x1xf32>, vector<32x1xf32> -> vector<32x1xf32>
    %142 = arith.mulf %140, %140 : vector<32x1xf32>
    %143 = arith.subf %141, %142 : vector<32x1xf32>
    %cst_78 = arith.constant 0.000000e+00 : f32
    %144 = vector.broadcast %cst_78 : f32 to vector<32x1xf32>
    %145 = arith.maximumf %143, %144 : vector<32x1xf32>
    %cst_79 = arith.constant 9.99999974E-6 : f32
    %146 = vector.broadcast %cst_79 : f32 to vector<32x1xf32>
    %147 = arith.addf %145, %146 : vector<32x1xf32>
    %148 = math.rsqrt %147 : vector<32x1xf32>
    %149 = vector.broadcast %140 : vector<32x1xf32> to vector<32x256xf32>
    %150 = arith.subf %134, %149 : vector<32x256xf32>
    %151 = arith.mulf %148, %2 : vector<32x1xf32>
    %152 = vector.broadcast %151 : vector<32x1xf32> to vector<32x256xf32>
    %153 = arith.mulf %150, %152 : vector<32x256xf32>
    %154 = vector.broadcast %3 : vector<32x1xf32> to vector<32x256xf32>
    %155 = arith.addf %153, %154 : vector<32x256xf32>
    %cst_80 = arith.constant 5.000000e-02 : f32
    %156 = vector.broadcast %cst_80 : f32 to vector<32x256xf32>
    %157 = arith.mulf %156, %155 : vector<32x256xf32>
    %158 = arith.maximumf %155, %157 : vector<32x256xf32>
    %c34_i32_81 = arith.constant 34 : i32
    %159 = tpu.dynamic_rotate %158 by %c34_i32_81 dim 1 : vector<32x256xf32>, i32 -> vector<32x256xf32>
    %c0_82 = arith.constant 0 : index
    %c0_83 = arith.constant 0 : index
    %160 = vector.load %arg8[%c0_82, %c0_83] : memref<9x256xf32, #tpu.memory_space<vmem>>, vector<1x256xf32>
    %161 = vector.broadcast %160 : vector<1x256xf32> to vector<32x256xf32>
    %162 = arith.mulf %159, %161 : vector<32x256xf32>
    %c0_84 = arith.constant 0 : index
    %c0_85 = arith.constant 0 : index
    %163 = vector.load %arg4[%c0_84, %c0_85] : memref<288x32xf32, #tpu.memory_space<vmem>>, vector<32x32xf32>
    %cst_86 = arith.constant dense<0.000000e+00> : vector<32x256xf32>
    %164 = tpu.matmul %163, %162, %cst_86 {dimension_numbers = #tpu.dot_dimension_numbers<[1], [0], [0], [1], [0, 0, 1, 1], [], []>} : vector<32x32xf32>, vector<32x256xf32>, vector<32x256xf32> -> vector<32x256xf32>
    %c32_i32_87 = arith.constant 32 : i32
    %165 = tpu.dynamic_rotate %158 by %c32_i32_87 dim 1 : vector<32x256xf32>, i32 -> vector<32x256xf32>
    %c1_88 = arith.constant 1 : index
    %c0_89 = arith.constant 0 : index
    %166 = vector.load %arg8[%c1_88, %c0_89] : memref<9x256xf32, #tpu.memory_space<vmem>>, vector<1x256xf32>
    %167 = vector.broadcast %166 : vector<1x256xf32> to vector<32x256xf32>
    %168 = arith.mulf %165, %167 : vector<32x256xf32>
    %c32_90 = arith.constant 32 : index
    %c0_91 = arith.constant 0 : index
    %169 = vector.load %arg4[%c32_90, %c0_91] : memref<288x32xf32, #tpu.memory_space<vmem>>, vector<32x32xf32>
    %cst_92 = arith.constant dense<0.000000e+00> : vector<32x256xf32>
    %170 = tpu.matmul %169, %168, %cst_92 {dimension_numbers = #tpu.dot_dimension_numbers<[1], [0], [0], [1], [0, 0, 1, 1], [], []>} : vector<32x32xf32>, vector<32x256xf32>, vector<32x256xf32> -> vector<32x256xf32>
    %171 = arith.addf %164, %170 : vector<32x256xf32>
    %c30_i32_93 = arith.constant 30 : i32
    %172 = tpu.dynamic_rotate %158 by %c30_i32_93 dim 1 : vector<32x256xf32>, i32 -> vector<32x256xf32>
    %c2_94 = arith.constant 2 : index
    %c0_95 = arith.constant 0 : index
    %173 = vector.load %arg8[%c2_94, %c0_95] : memref<9x256xf32, #tpu.memory_space<vmem>>, vector<1x256xf32>
    %174 = vector.broadcast %173 : vector<1x256xf32> to vector<32x256xf32>
    %175 = arith.mulf %172, %174 : vector<32x256xf32>
    %c64_96 = arith.constant 64 : index
    %c0_97 = arith.constant 0 : index
    %176 = vector.load %arg4[%c64_96, %c0_97] : memref<288x32xf32, #tpu.memory_space<vmem>>, vector<32x32xf32>
    %cst_98 = arith.constant dense<0.000000e+00> : vector<32x256xf32>
    %177 = tpu.matmul %176, %175, %cst_98 {dimension_numbers = #tpu.dot_dimension_numbers<[1], [0], [0], [1], [0, 0, 1, 1], [], []>} : vector<32x32xf32>, vector<32x256xf32>, vector<32x256xf32> -> vector<32x256xf32>
    %178 = arith.addf %171, %177 : vector<32x256xf32>
    %c2_i32_99 = arith.constant 2 : i32
    %179 = tpu.dynamic_rotate %158 by %c2_i32_99 dim 1 : vector<32x256xf32>, i32 -> vector<32x256xf32>
    %c3_100 = arith.constant 3 : index
    %c0_101 = arith.constant 0 : index
    %180 = vector.load %arg8[%c3_100, %c0_101] : memref<9x256xf32, #tpu.memory_space<vmem>>, vector<1x256xf32>
    %181 = vector.broadcast %180 : vector<1x256xf32> to vector<32x256xf32>
    %182 = arith.mulf %179, %181 : vector<32x256xf32>
    %c96_102 = arith.constant 96 : index
    %c0_103 = arith.constant 0 : index
    %183 = vector.load %arg4[%c96_102, %c0_103] : memref<288x32xf32, #tpu.memory_space<vmem>>, vector<32x32xf32>
    %cst_104 = arith.constant dense<0.000000e+00> : vector<32x256xf32>
    %184 = tpu.matmul %183, %182, %cst_104 {dimension_numbers = #tpu.dot_dimension_numbers<[1], [0], [0], [1], [0, 0, 1, 1], [], []>} : vector<32x32xf32>, vector<32x256xf32>, vector<32x256xf32> -> vector<32x256xf32>
    %185 = arith.addf %178, %184 : vector<32x256xf32>
    %c128_105 = arith.constant 128 : index
    %c0_106 = arith.constant 0 : index
    %186 = vector.load %arg4[%c128_105, %c0_106] : memref<288x32xf32, #tpu.memory_space<vmem>>, vector<32x32xf32>
    %cst_107 = arith.constant dense<0.000000e+00> : vector<32x256xf32>
    %187 = tpu.matmul %186, %158, %cst_107 {dimension_numbers = #tpu.dot_dimension_numbers<[1], [0], [0], [1], [0, 0, 1, 1], [], []>} : vector<32x32xf32>, vector<32x256xf32>, vector<32x256xf32> -> vector<32x256xf32>
    %188 = arith.addf %185, %187 : vector<32x256xf32>
    %c254_i32_108 = arith.constant 254 : i32
    %189 = tpu.dynamic_rotate %158 by %c254_i32_108 dim 1 : vector<32x256xf32>, i32 -> vector<32x256xf32>
    %c5_109 = arith.constant 5 : index
    %c0_110 = arith.constant 0 : index
    %190 = vector.load %arg8[%c5_109, %c0_110] : memref<9x256xf32, #tpu.memory_space<vmem>>, vector<1x256xf32>
    %191 = vector.broadcast %190 : vector<1x256xf32> to vector<32x256xf32>
    %192 = arith.mulf %189, %191 : vector<32x256xf32>
    %c160_111 = arith.constant 160 : index
    %c0_112 = arith.constant 0 : index
    %193 = vector.load %arg4[%c160_111, %c0_112] : memref<288x32xf32, #tpu.memory_space<vmem>>, vector<32x32xf32>
    %cst_113 = arith.constant dense<0.000000e+00> : vector<32x256xf32>
    %194 = tpu.matmul %193, %192, %cst_113 {dimension_numbers = #tpu.dot_dimension_numbers<[1], [0], [0], [1], [0, 0, 1, 1], [], []>} : vector<32x32xf32>, vector<32x256xf32>, vector<32x256xf32> -> vector<32x256xf32>
    %195 = arith.addf %188, %194 : vector<32x256xf32>
    %c226_i32_114 = arith.constant 226 : i32
    %196 = tpu.dynamic_rotate %158 by %c226_i32_114 dim 1 : vector<32x256xf32>, i32 -> vector<32x256xf32>
    %c6_115 = arith.constant 6 : index
    %c0_116 = arith.constant 0 : index
    %197 = vector.load %arg8[%c6_115, %c0_116] : memref<9x256xf32, #tpu.memory_space<vmem>>, vector<1x256xf32>
    %198 = vector.broadcast %197 : vector<1x256xf32> to vector<32x256xf32>
    %199 = arith.mulf %196, %198 : vector<32x256xf32>
    %c192_117 = arith.constant 192 : index
    %c0_118 = arith.constant 0 : index
    %200 = vector.load %arg4[%c192_117, %c0_118] : memref<288x32xf32, #tpu.memory_space<vmem>>, vector<32x32xf32>
    %cst_119 = arith.constant dense<0.000000e+00> : vector<32x256xf32>
    %201 = tpu.matmul %200, %199, %cst_119 {dimension_numbers = #tpu.dot_dimension_numbers<[1], [0], [0], [1], [0, 0, 1, 1], [], []>} : vector<32x32xf32>, vector<32x256xf32>, vector<32x256xf32> -> vector<32x256xf32>
    %202 = arith.addf %195, %201 : vector<32x256xf32>
    %c224_i32_120 = arith.constant 224 : i32
    %203 = tpu.dynamic_rotate %158 by %c224_i32_120 dim 1 : vector<32x256xf32>, i32 -> vector<32x256xf32>
    %c7_121 = arith.constant 7 : index
    %c0_122 = arith.constant 0 : index
    %204 = vector.load %arg8[%c7_121, %c0_122] : memref<9x256xf32, #tpu.memory_space<vmem>>, vector<1x256xf32>
    %205 = vector.broadcast %204 : vector<1x256xf32> to vector<32x256xf32>
    %206 = arith.mulf %203, %205 : vector<32x256xf32>
    %c224_123 = arith.constant 224 : index
    %c0_124 = arith.constant 0 : index
    %207 = vector.load %arg4[%c224_123, %c0_124] : memref<288x32xf32, #tpu.memory_space<vmem>>, vector<32x32xf32>
    %cst_125 = arith.constant dense<0.000000e+00> : vector<32x256xf32>
    %208 = tpu.matmul %207, %206, %cst_125 {dimension_numbers = #tpu.dot_dimension_numbers<[1], [0], [0], [1], [0, 0, 1, 1], [], []>} : vector<32x32xf32>, vector<32x256xf32>, vector<32x256xf32> -> vector<32x256xf32>
    %209 = arith.addf %202, %208 : vector<32x256xf32>
    %c222_i32_126 = arith.constant 222 : i32
    %210 = tpu.dynamic_rotate %158 by %c222_i32_126 dim 1 : vector<32x256xf32>, i32 -> vector<32x256xf32>
    %c8_127 = arith.constant 8 : index
    %c0_128 = arith.constant 0 : index
    %211 = vector.load %arg8[%c8_127, %c0_128] : memref<9x256xf32, #tpu.memory_space<vmem>>, vector<1x256xf32>
    %212 = vector.broadcast %211 : vector<1x256xf32> to vector<32x256xf32>
    %213 = arith.mulf %210, %212 : vector<32x256xf32>
    %c256_129 = arith.constant 256 : index
    %c0_130 = arith.constant 0 : index
    %214 = vector.load %arg4[%c256_129, %c0_130] : memref<288x32xf32, #tpu.memory_space<vmem>>, vector<32x32xf32>
    %cst_131 = arith.constant dense<0.000000e+00> : vector<32x256xf32>
    %215 = tpu.matmul %214, %213, %cst_131 {dimension_numbers = #tpu.dot_dimension_numbers<[1], [0], [0], [1], [0, 0, 1, 1], [], []>} : vector<32x32xf32>, vector<32x256xf32>, vector<32x256xf32> -> vector<32x256xf32>
    %216 = arith.addf %209, %215 : vector<32x256xf32>
    %217 = vector.broadcast %4 : vector<32x1xf32> to vector<32x256xf32>
    %218 = arith.addf %216, %217 : vector<32x256xf32>
    %cst_132 = arith.constant dense<0.000000e+00> : vector<32xf32>
    %219 = vector.multi_reduction <add>, %218, %cst_132 [1] : vector<32x256xf32> to vector<32xf32>
    %220 = vector.shape_cast %219 : vector<32xf32> to vector<32x1xf32>
    %221 = arith.mulf %218, %218 : vector<32x256xf32>
    %cst_133 = arith.constant dense<0.000000e+00> : vector<32xf32>
    %222 = vector.multi_reduction <add>, %221, %cst_133 [1] : vector<32x256xf32> to vector<32xf32>
    %223 = vector.shape_cast %222 : vector<32xf32> to vector<32x1xf32>
    %cst_134 = arith.constant dense<0.000000e+00> : vector<32x1xf32>
    %224 = tpu.matmul %0, %220, %cst_134 {dimension_numbers = #tpu.dot_dimension_numbers<[1], [0], [0], [1], [0, 0, 1, 1], [], []>} : vector<32x32xf32>, vector<32x1xf32>, vector<32x1xf32> -> vector<32x1xf32>
    %cst_135 = arith.constant dense<0.000000e+00> : vector<32x1xf32>
    %225 = tpu.matmul %0, %223, %cst_135 {dimension_numbers = #tpu.dot_dimension_numbers<[1], [0], [0], [1], [0, 0, 1, 1], [], []>} : vector<32x32xf32>, vector<32x1xf32>, vector<32x1xf32> -> vector<32x1xf32>
    %226 = arith.mulf %224, %224 : vector<32x1xf32>
    %227 = arith.subf %225, %226 : vector<32x1xf32>
    %cst_136 = arith.constant 0.000000e+00 : f32
    %228 = vector.broadcast %cst_136 : f32 to vector<32x1xf32>
    %229 = arith.maximumf %227, %228 : vector<32x1xf32>
    %cst_137 = arith.constant 9.99999974E-6 : f32
    %230 = vector.broadcast %cst_137 : f32 to vector<32x1xf32>
    %231 = arith.addf %229, %230 : vector<32x1xf32>
    %232 = math.rsqrt %231 : vector<32x1xf32>
    %233 = vector.broadcast %224 : vector<32x1xf32> to vector<32x256xf32>
    %234 = arith.subf %218, %233 : vector<32x256xf32>
    %235 = arith.mulf %232, %5 : vector<32x1xf32>
    %236 = vector.broadcast %235 : vector<32x1xf32> to vector<32x256xf32>
    %237 = arith.mulf %234, %236 : vector<32x256xf32>
    %238 = vector.broadcast %6 : vector<32x1xf32> to vector<32x256xf32>
    %239 = arith.addf %237, %238 : vector<32x256xf32>
    %cst_138 = arith.constant 5.000000e-02 : f32
    %240 = vector.broadcast %cst_138 : f32 to vector<32x256xf32>
    %241 = arith.mulf %240, %239 : vector<32x256xf32>
    %242 = arith.maximumf %239, %241 : vector<32x256xf32>
    %c0_139 = arith.constant 0 : index
    %c0_140 = arith.constant 0 : index
    %243 = vector.load %arg5[%c0_139, %c0_140] : memref<32x32xf32, #tpu.memory_space<vmem>>, vector<32x32xf32>
    %cst_141 = arith.constant dense<0.000000e+00> : vector<32x256xf32>
    %244 = tpu.matmul %243, %242, %cst_141 {dimension_numbers = #tpu.dot_dimension_numbers<[1], [0], [0], [1], [0, 0, 1, 1], [], []>} : vector<32x32xf32>, vector<32x256xf32>, vector<32x256xf32> -> vector<32x256xf32>
    %c0_142 = arith.constant 0 : index
    %c0_143 = arith.constant 0 : index
    %245 = vector.load %arg7[%c0_142, %c0_143] : memref<32x1xf32, #tpu.memory_space<vmem>>, vector<32x1xf32>
    %246 = vector.broadcast %245 : vector<32x1xf32> to vector<32x256xf32>
    %247 = arith.addf %244, %246 : vector<32x256xf32>
    %c1_144 = arith.constant 1 : index
    %c0_145 = arith.constant 0 : index
    %c0_146 = arith.constant 0 : index
    %248 = vector.load %arg9[%c1_144, %c0_145, %c0_146] : memref<2x32x256xf32, #tpu.memory_space<vmem>>, vector<1x32x256xf32>
    %249 = vector.shape_cast %248 : vector<1x32x256xf32> to vector<32x256xf32>
    %250 = vector.shape_cast %247 : vector<32x256xf32> to vector<1x32x256xf32>
    tpu.vector_store %arg9[%c1_144, %c0_145, %c0_146], %250 {strides = array<i32>} : memref<2x32x256xf32, #tpu.memory_space<vmem>>, vector<1x32x256xf32>,
    return
  }
  func.func @transform_0(%arg0: i32) -> (i32, i32, i32) {
    %c0_i32 = arith.constant 0 : i32
    %c0_i32_0 = arith.constant 0 : i32
    %c0_i32_1 = arith.constant 0 : i32
    return %arg0, %c0_i32, %c0_i32_0 : i32, i32, i32
  }
  func.func @transform_1(%arg0: i32) -> (i32, i32) {
    %c0_i32 = arith.constant 0 : i32
    %c0_i32_0 = arith.constant 0 : i32
    %c0_i32_1 = arith.constant 0 : i32
    return %c0_i32, %c0_i32_0 : i32, i32
  }
  func.func @transform_2(%arg0: i32) -> (i32, i32) {
    %c0_i32 = arith.constant 0 : i32
    %c0_i32_0 = arith.constant 0 : i32
    %c0_i32_1 = arith.constant 0 : i32
    return %c0_i32, %c0_i32_0 : i32, i32
  }
  func.func @transform_3(%arg0: i32) -> (i32, i32) {
    %c0_i32 = arith.constant 0 : i32
    %c0_i32_0 = arith.constant 0 : i32
    %c0_i32_1 = arith.constant 0 : i32
    return %c0_i32, %c0_i32_0 : i32, i32
  }
  func.func @transform_4(%arg0: i32) -> (i32, i32) {
    %c0_i32 = arith.constant 0 : i32
    %c0_i32_0 = arith.constant 0 : i32
    %c0_i32_1 = arith.constant 0 : i32
    return %c0_i32, %c0_i32_0 : i32, i32
  }
  func.func @transform_5(%arg0: i32) -> (i32, i32) {
    %c0_i32 = arith.constant 0 : i32
    %c0_i32_0 = arith.constant 0 : i32
    %c0_i32_1 = arith.constant 0 : i32
    return %c0_i32, %c0_i32_0 : i32, i32
  }
  func.func @transform_6(%arg0: i32) -> (i32, i32) {
    %c0_i32 = arith.constant 0 : i32
    %c0_i32_0 = arith.constant 0 : i32
    %c0_i32_1 = arith.constant 0 : i32
    return %c0_i32, %c0_i32_0 : i32, i32
  }
  func.func @transform_7(%arg0: i32) -> (i32, i32) {
    %c0_i32 = arith.constant 0 : i32
    %c0_i32_0 = arith.constant 0 : i32
    %c0_i32_1 = arith.constant 0 : i32
    return %c0_i32, %c0_i32_0 : i32, i32
  }
  func.func @transform_8(%arg0: i32) -> (i32, i32, i32) {
    %c0_i32 = arith.constant 0 : i32
    %c0_i32_0 = arith.constant 0 : i32
    %c0_i32_1 = arith.constant 0 : i32
    return %arg0, %c0_i32, %c0_i32_0 : i32, i32, i32
  }
}

</mosaic_0001>

<llo_original>
// kernel: tpu_custom_call.1
$region0: #{tpu_custom_call.1}
  #allocation0 [shape = 'u32[]', space=smem, size = 0x4, offset = 0x4, fixed_abs, tag = 'smem constant byte address 0x4 - core index']
  #allocation1 [shape = 'u32[144,128]{1,0:T(1,128)}', space=vmem, size = 0x12000, scoped, tag = 'internal scratch']
  %s0 = inlined_call_operand.vmem [shape: f32[2,32,256], index: 0, kind: input, shape index: {}]
  %s1 = inlined_call_operand.vmem [shape: f32[32,32], index: 1, kind: input, shape index: {}]
  %s2 = inlined_call_operand.vmem [shape: f32[32,32], index: 2, kind: input, shape index: {}]
  %s3 = inlined_call_operand.vmem [shape: f32[288,32], index: 3, kind: input, shape index: {}]
  %s4 = inlined_call_operand.vmem [shape: f32[32,32], index: 4, kind: input, shape index: {}]
  %s5 = inlined_call_operand.vmem [shape: f32[192,1], index: 5, kind: input, shape index: {}]
  %s6 = inlined_call_operand.vmem [shape: f32[32,1], index: 6, kind: input, shape index: {}]
  %s7 = inlined_call_operand.vmem [shape: f32[9,256], index: 7, kind: input, shape index: {}]
  %s8 = inlined_call_operand.hbm [shape: f32[2,32,256], index: 8, kind: output, shape index: {}]
  %s9 = sld [smem:[#allocation0]]
  $region42: #{tpu_custom_call.1} parent=0
    _
  %s11 = ssub.s32 1, %s9
  %s12 = scalar_select 0, %s11, %s9
  $region1: #{tpu_custom_call.1} parent=0
    #allocation2 [shape = 'u8[65536]{0}', space=vmem, size = 0x10000, scoped, tag = 'output window, operand 0, single buffered']
    #allocation3 [shape = 's32[1]{0}', space=sflag, size = 0x4, scoped, tag = 'scoped memory for tpu_custom_call.1']
    %13 = vsyncpa [#allocation3], 0
    // Predicated region
    $region2: #{tpu_custom_call.1} parent=1 // pred_check
      _
    $region3: #{tpu_custom_call.1} parent=1 // pred_check_branch
      %15 = sbr.rel (0) target = $region5
    $region4: #{tpu_custom_call.1} parent=1 // pred_region
      _
    $region5: #{tpu_custom_call.1} parent=1 // pred_fallthru
      _
    // Predicated region
    $region6: #{tpu_custom_call.1} parent=1 // pred_check
      _
    $region7: #{tpu_custom_call.1} parent=1 // pred_check_branch
      %17 = sbr.rel (0) target = $region9
    $region8: #{tpu_custom_call.1} parent=1 // pred_region
      _
    $region9: #{tpu_custom_call.1} parent=1 // pred_fallthru
      _
    // Predicated region
    $region10: #{tpu_custom_call.1} parent=1 // pred_check
      _
    $region11: #{tpu_custom_call.1} parent=1 // pred_check_branch
      %19 = sbr.rel (0) target = $region13
    $region12: #{tpu_custom_call.1} parent=1 // pred_region
      _
    $region13: #{tpu_custom_call.1} parent=1 // pred_fallthru
      _
    // Predicated region
    $region14: #{tpu_custom_call.1} parent=1 // pred_check
      _
    $region15: #{tpu_custom_call.1} parent=1 // pred_check_branch
      %21 = sbr.rel (0) target = $region17
    $region16: #{tpu_custom_call.1} parent=1 // pred_region
      _
    $region17: #{tpu_custom_call.1} parent=1 // pred_fallthru
      _
    // Predicated region
    $region18: #{tpu_custom_call.1} parent=1 // pred_check
      _
    $region19: #{tpu_custom_call.1} parent=1 // pred_check_branch
      %23 = sbr.rel (0) target = $region21
    $region20: #{tpu_custom_call.1} parent=1 // pred_region
      _
    $region21: #{tpu_custom_call.1} parent=1 // pred_fallthru
      _
    // Predicated region
    $region22: #{tpu_custom_call.1} parent=1 // pred_check
      _
    $region23: #{tpu_custom_call.1} parent=1 // pred_check_branch
      %25 = sbr.rel (0) target = $region25
    $region24: #{tpu_custom_call.1} parent=1 // pred_region
      _
    $region25: #{tpu_custom_call.1} parent=1 // pred_fallthru
      _
    // Predicated region
    $region26: #{tpu_custom_call.1} parent=1 // pred_check
      _
    $region27: #{tpu_custom_call.1} parent=1 // pred_check_branch
      %27 = sbr.rel (0) target = $region29
    $region28: #{tpu_custom_call.1} parent=1 // pred_region
      _
    $region29: #{tpu_custom_call.1} parent=1 // pred_fallthru
      _
    // Predicated region
    $region30: #{tpu_custom_call.1} parent=1 // pred_check
      _
    $region31: #{tpu_custom_call.1} parent=1 // pred_check_branch
      %29 = sbr.rel (0) target = $region33
    $region32: #{tpu_custom_call.1} parent=1 // pred_region
      _
    $region33: #{tpu_custom_call.1} parent=1 // pred_fallthru
      _
    %v30 = vld [vmem:[%s2] sm:$0xff]
    %v31 = vld [vmem:[%s2 + $0x8] sm:$0xff]
    %v32 = vld [vmem:[%s2 + $0x10] sm:$0xff]
    %v33 = vld [vmem:[%s2 + $0x18] sm:$0xff]
    %v34 = vld [vmem:[%s5] sm:$0xff]
    %v35 = vld [vmem:[%s5 + $0x8] sm:$0xff]
    %v36 = vld [vmem:[%s5 + $0x10] sm:$0xff]
    %v37 = vld [vmem:[%s5 + $0x18] sm:$0xff]
    %v38 = vld [vmem:[%s5 + $0x20] sm:$0xff]
    %v39 = vld [vmem:[%s5 + $0x28] sm:$0xff]
    %v40 = vld [vmem:[%s5 + $0x30] sm:$0xff]
    %v41 = vld [vmem:[%s5 + $0x38] sm:$0xff]
    %v42 = vld [vmem:[%s5 + $0x40] sm:$0xff]
    %v43 = vld [vmem:[%s5 + $0x48] sm:$0xff]
    %v44 = vld [vmem:[%s5 + $0x50] sm:$0xff]
    %v45 = vld [vmem:[%s5 + $0x58] sm:$0xff]
    %v46 = vld [vmem:[%s5 + $0x60] sm:$0xff]
    %v47 = vld [vmem:[%s5 + $0x68] sm:$0xff]
    %v48 = vld [vmem:[%s5 + $0x70] sm:$0xff]
    %v49 = vld [vmem:[%s5 + $0x78] sm:$0xff]
    %v50 = vld [vmem:[%s5 + $0x80] sm:$0xff]
    %v51 = vld [vmem:[%s5 + $0x88] sm:$0xff]
    %v52 = vld [vmem:[%s5 + $0x90] sm:$0xff]
    %v53 = vld [vmem:[%s5 + $0x98] sm:$0xff]
    %v54 = vld [vmem:[%s5 + $0xa0] sm:$0xff]
    %v55 = vld [vmem:[%s5 + $0xa8] sm:$0xff]
    %v56 = vld [vmem:[%s5 + $0xb0] sm:$0xff]
    %v57 = vld [vmem:[%s5 + $0xb8] sm:$0xff]
    %v58 = vld [vmem:[%s0] sm:$0xff]
    %v59 = vld [vmem:[%s0 + $0x8] sm:$0xff]
    %v60 = vld [vmem:[%s0 + $0x10] sm:$0xff]
    %v61 = vld [vmem:[%s0 + $0x18] sm:$0xff]
    %v62 = vld [vmem:[%s0 + $0x20] sm:$0xff]
    %v63 = vld [vmem:[%s0 + $0x28] sm:$0xff]
    %v64 = vld [vmem:[%s0 + $0x30] sm:$0xff]
    %v65 = vld [vmem:[%s0 + $0x38] sm:$0xff]
    %v66 = vld [vmem:[%s1] sm:$0xff]
    %v67 = vld [vmem:[%s1 + $0x8] sm:$0xff]
    %v68 = vld [vmem:[%s1 + $0x10] sm:$0xff]
    %v69 = vld [vmem:[%s1 + $0x18] sm:$0xff]
    %71 = vset.pattern.permute.xlu0 0
    %72 = vperm.xlu0 %71, %v34
    %v73 = vpop.permute.xlu0 %72
    %76 = vset.pattern.permute.xlu0 0
    %77 = vperm.xlu0 %76, %v35
    %v78 = vpop.permute.xlu0 %77
    %81 = vset.pattern.permute.xlu0 0
    %82 = vperm.xlu0 %81, %v36
    %v83 = vpop.permute.xlu0 %82
    %86 = vset.pattern.permute.xlu0 0
    %87 = vperm.xlu0 %86, %v37
    %v88 = vpop.permute.xlu0 %87
    %vm90 = vcmask 261120
    %v92 = vsel %vm90, %v66, 0
    %v95 = vsel %vm90, %v67, 0
    %v98 = vsel %vm90, %v68, 0
    %v101 = vsel %vm90, %v69, 0
    %103 = vmatprep.subr.mxu0 %v59
    %104 = vmatpush1.msra.mxu0 %v58
    %105 = vmatprep.subr.mxu0 %v61
    %106 = vmatpush1.msra.mxu0 %v60
    %107 = vmatprep.subr.mxu0 %v63
    %108 = vmatpush1.msra.mxu0 %v62
    %109 = vmatprep.subr.mxu0 %v65
    %110 = vmatpush1.msra.mxu0 %v64
    %111 = vmatprep.subr.mxu0 0.0
    %112 = vmatpush1.msra.mxu0 0.0
    %113 = vmatprep.subr.mxu0 0.0
    %114 = vmatpush1.msra.mxu0 0.0
    %115 = vmatprep.subr.mxu0 0.0
    %116 = vmatpush1.msra.mxu0 0.0
    %117 = vmatprep.subr.mxu0 0.0
    %118 = vmatpush1.msra.mxu0 0.0
    %119 = vmatprep.subr.mxu0 0.0
    %120 = vmatpush1.msra.mxu0 0.0
    %121 = vmatprep.subr.mxu0 0.0
    %122 = vmatpush1.msra.mxu0 0.0
    %123 = vmatprep.subr.mxu0 0.0
    %124 = vmatpush1.msra.mxu0 0.0
    %125 = vmatprep.subr.mxu0 0.0
    %126 = vmatpush1.msra.mxu0 0.0
    %127 = vmatprep.subr.mxu0 0.0
    %128 = vmatpush1.msra.mxu0 0.0
    %129 = vmatprep.subr.mxu0 0.0
    %130 = vmatpush1.msra.mxu0 0.0
    %131 = vmatprep.subr.mxu0 0.0
    %132 = vmatpush1.msra.mxu0 0.0
    %133 = vmatprep.subr.mxu0 0.0
    %134 = vmatpush1.msra.mxu0 0.0
    %135 = vmatprep.subr.mxu0 0.0
    %136 = vmatpush1.msra.mxu0 0.0
    %137 = vmatprep.subr.mxu0 0.0
    %138 = vmatpush1.msra.mxu0 0.0
    %139 = vmatprep.subr.mxu0 0.0
    %140 = vmatpush1.msra.mxu0 0.0
    %141 = vmatprep.subr.mxu0 0.0
    %142 = vmatpush1.msra.mxu0 0.0
    %143 = vmatprep.subr.mxu0 0.0
    %144 = vmatpush1.msra.mxu0 0.0
    %145 = vmatprep.subr.mxu0 0.0
    %146 = vmatpush1.msra.mxu0 0.0
    %147 = vmatprep.subr.mxu0 0.0
    %148 = vmatpush1.msra.mxu0 0.0
    %149 = vmatprep.subr.mxu0 0.0
    %150 = vmatpush1.msra.mxu0 0.0
    %151 = vmatprep.subr.mxu0 0.0
    %152 = vmatpush1.msra.mxu0 0.0
    %153 = vmatprep.subr.mxu0 0.0
    %154 = vmatpush1.msra.mxu0 0.0
    %155 = vmatprep.subr.mxu0 0.0
    %156 = vmatpush1.msra.mxu0 0.0
    %157 = vmatprep.subr.mxu0 0.0
    %158 = vmatpush1.msra.mxu0 0.0
    %159 = vmatprep.subr.mxu0 0.0
    %160 = vmatpush1.msra.mxu0 0.0
    %161 = vmatprep.subr.mxu0 0.0
    %162 = vmatpush1.msra.mxu0 0.0
    %163 = vmatprep.subr.mxu0 0.0
    %164 = vmatpush1.msra.mxu0 0.0
    %165 = vmatprep.subr.mxu0 0.0
    %166 = vmatpush1.msra.mxu0 0.0
    %167 = vmatprep.mubr.f32.mxu0 0.0
    %168 = vmatmul.mubr.f32.gmra.mrb[0].mxu0 %v92
    %v169 = vpop.f32.mrb[0].mxu0
    %v170 = vadd.f32 %v73, %v169
    %v171 = vpop.f32.mrb[0].mxu0
    %v172 = vadd.f32 %v73, %v171
    %173 = vmatprep.mubr.f32.mxu0 0.0
    %174 = vmatmul.mubr.f32.gmra.mrb[0].mxu0 %v95
    %v175 = vpop.f32.mrb[0].mxu0
    %v176 = vadd.f32 %v78, %v175
    %v177 = vpop.f32.mrb[0].mxu0
    %v178 = vadd.f32 %v78, %v177
    %179 = vmatprep.mubr.f32.mxu0 0.0
    %180 = vmatmul.mubr.f32.gmra.mrb[0].mxu0 %v98
    %v181 = vpop.f32.mrb[0].mxu0
    %v182 = vadd.f32 %v83, %v181
    %v183 = vpop.f32.mrb[0].mxu0
    %v184 = vadd.f32 %v83, %v183
    %185 = vmatprep.mubr.f32.mxu0 0.0
    %186 = vmatmul.mubr.f32.gmra.mrb[0].mxu0 %v101
    %v187 = vpop.f32.mrb[0].mxu0
    %v188 = vadd.f32 %v88, %v187
    %v189 = vpop.f32.mrb[0].mxu0
    %v190 = vadd.f32 %v88, %v189
    %191 = vdwg.mxu0
    %v192 = vadd.f32 %v170, %v172
    %193 = vadd.xlane.f32.xlu0 %v192
    %v194 = vpop.xlane.xlu0 %193
    %v195 = vadd.f32 %v176, %v178
    %196 = vadd.xlane.f32.xlu0 %v195
    %v197 = vpop.xlane.xlu0 %196
    %v198 = vadd.f32 %v182, %v184
    %199 = vadd.xlane.f32.xlu0 %v198
    %v200 = vpop.xlane.xlu0 %199
    %v201 = vadd.f32 %v188, %v190
    %202 = vadd.xlane.f32.xlu0 %v201
    %v203 = vpop.xlane.xlu0 %202
    %v204 = vmul.f32 %v170, %v170
    %v205 = vmul.f32 %v172, %v172
    %v206 = vmul.f32 %v176, %v176
    %v207 = vmul.f32 %v178, %v178
    %v208 = vmul.f32 %v182, %v182
    %v209 = vmul.f32 %v184, %v184
    %v210 = vmul.f32 %v188, %v188
    %v211 = vmul.f32 %v190, %v190
    %v212 = vadd.f32 %v204, %v205
    %213 = vadd.xlane.f32.xlu0 %v212
    %v214 = vpop.xlane.xlu0 %213
    %v215 = vadd.f32 %v206, %v207
    %216 = vadd.xlane.f32.xlu0 %v215
    %v217 = vpop.xlane.xlu0 %216
    %v218 = vadd.f32 %v208, %v209
    %219 = vadd.xlane.f32.xlu0 %v218
    %v220 = vpop.xlane.xlu0 %219
    %v221 = vadd.f32 %v210, %v211
    %222 = vadd.xlane.f32.xlu0 %v221
    %v223 = vpop.xlane.xlu0 %222
    %v225 = vsel %vm90, %v30, 0
    %v228 = vsel %vm90, %v31, 0
    %v231 = vsel %vm90, %v32, 0
    %v234 = vsel %vm90, %v33, 0
    %236 = vmatprep.subr.mxu0 0.0
    %237 = vmatpush1.msra.mxu0 %v194
    %238 = vmatprep.subr.mxu0 0.0
    %239 = vmatpush1.msra.mxu0 %v197
    %240 = vmatprep.subr.mxu0 0.0
    %241 = vmatpush1.msra.mxu0 %v200
    %242 = vmatprep.subr.mxu0 0.0
    %243 = vmatpush1.msra.mxu0 %v203
    %244 = vmatprep.subr.mxu0 0.0
    %245 = vmatpush1.msra.mxu0 0.0
    %246 = vmatprep.subr.mxu0 0.0
    %247 = vmatpush1.msra.mxu0 0.0
    %248 = vmatprep.subr.mxu0 0.0
    %249 = vmatpush1.msra.mxu0 0.0
    %250 = vmatprep.subr.mxu0 0.0
    %251 = vmatpush1.msra.mxu0 0.0
    %252 = vmatprep.subr.mxu0 0.0
    %253 = vmatpush1.msra.mxu0 0.0
    %254 = vmatprep.subr.mxu0 0.0
    %255 = vmatpush1.msra.mxu0 0.0
    %256 = vmatprep.subr.mxu0 0.0
    %257 = vmatpush1.msra.mxu0 0.0
    %258 = vmatprep.subr.mxu0 0.0
    %259 = vmatpush1.msra.mxu0 0.0
    %260 = vmatprep.subr.mxu0 0.0
    %261 = vmatpush1.msra.mxu0 0.0
    %262 = vmatprep.subr.mxu0 0.0
    %263 = vmatpush1.msra.mxu0 0.0
    %264 = vmatprep.subr.mxu0 0.0
    %265 = vmatpush1.msra.mxu0 0.0
    %266 = vmatprep.subr.mxu0 0.0
    %267 = vmatpush1.msra.mxu0 0.0
    %268 = vmatprep.subr.mxu0 0.0
    %269 = vmatpush1.msra.mxu0 0.0
    %270 = vmatprep.subr.mxu0 0.0
    %271 = vmatpush1.msra.mxu0 0.0
    %272 = vmatprep.subr.mxu0 0.0
    %273 = vmatpush1.msra.mxu0 0.0
    %274 = vmatprep.subr.mxu0 0.0
    %275 = vmatpush1.msra.mxu0 0.0
    %276 = vmatprep.subr.mxu0 0.0
    %277 = vmatpush1.msra.mxu0 0.0
    %278 = vmatprep.subr.mxu0 0.0
    %279 = vmatpush1.msra.mxu0 0.0
    %280 = vmatprep.subr.mxu0 0.0
    %281 = vmatpush1.msra.mxu0 0.0
    %282 = vmatprep.subr.mxu0 0.0
    %283 = vmatpush1.msra.mxu0 0.0
    %284 = vmatprep.subr.mxu0 0.0
    %285 = vmatpush1.msra.mxu0 0.0
    %286 = vmatprep.subr.mxu0 0.0
    %287 = vmatpush1.msra.mxu0 0.0
    %288 = vmatprep.subr.mxu0 0.0
    %289 = vmatpush1.msra.mxu0 0.0
    %290 = vmatprep.subr.mxu0 0.0
    %291 = vmatpush1.msra.mxu0 0.0
    %292 = vmatprep.subr.mxu0 0.0
    %293 = vmatpush1.msra.mxu0 0.0
    %294 = vmatprep.subr.mxu0 0.0
    %295 = vmatpush1.msra.mxu0 0.0
    %296 = vmatprep.subr.mxu0 0.0
    %297 = vmatpush1.msra.mxu0 0.0
    %298 = vmatprep.subr.mxu0 0.0
    %299 = vmatpush1.msra.mxu0 0.0
    %300 = vmatprep.mubr.f32.mxu0 0.0
    %301 = vmatmul.mubr.f32.gmra.mrb[0].mxu0 %v225
    %v302 = vpop.f32.mrb[0].mxu0
    %v303 = vadd.f32 0.0, %v302
    %v304 = vpop.f32.mrb[0].mxu0
    %305 = vmatprep.mubr.f32.mxu0 0.0
    %306 = vmatmul.mubr.f32.gmra.mrb[0].mxu0 %v228
    %v307 = vpop.f32.mrb[0].mxu0
    %v308 = vadd.f32 0.0, %v307
    %v309 = vpop.f32.mrb[0].mxu0
    %310 = vmatprep.mubr.f32.mxu0 0.0
    %311 = vmatmul.mubr.f32.gmra.mrb[0].mxu0 %v231
    %v312 = vpop.f32.mrb[0].mxu0
    %v313 = vadd.f32 0.0, %v312
    %v314 = vpop.f32.mrb[0].mxu0
    %315 = vmatprep.mubr.f32.mxu0 0.0
    %316 = vmatmul.mubr.f32.gmra.mrb[0].mxu0 %v234
    %v317 = vpop.f32.mrb[0].mxu0
    %v318 = vadd.f32 0.0, %v317
    %v319 = vpop.f32.mrb[0].mxu0
    %320 = vdwg.mxu0
    %321 = vmatprep.subr.mxu0 0.0
    %322 = vmatpush1.msra.mxu0 %v214
    %323 = vmatprep.subr.mxu0 0.0
    %324 = vmatpush1.msra.mxu0 %v217
    %325 = vmatprep.subr.mxu0 0.0
    %326 = vmatpush1.msra.mxu0 %v220
    %327 = vmatprep.subr.mxu0 0.0
    %328 = vmatpush1.msra.mxu0 %v223
    %329 = vmatprep.subr.mxu0 0.0
    %330 = vmatpush1.msra.mxu0 0.0
    %331 = vmatprep.subr.mxu0 0.0
    %332 = vmatpush1.msra.mxu0 0.0
    %333 = vmatprep.subr.mxu0 0.0
    %334 = vmatpush1.msra.mxu0 0.0
    %335 = vmatprep.subr.mxu0 0.0
    %336 = vmatpush1.msra.mxu0 0.0
    %337 = vmatprep.subr.mxu0 0.0
    %338 = vmatpush1.msra.mxu0 0.0
    %339 = vmatprep.subr.mxu0 0.0
    %340 = vmatpush1.msra.mxu0 0.0
    %341 = vmatprep.subr.mxu0 0.0
    %342 = vmatpush1.msra.mxu0 0.0
    %343 = vmatprep.subr.mxu0 0.0
    %344 = vmatpush1.msra.mxu0 0.0
    %345 = vmatprep.subr.mxu0 0.0
    %346 = vmatpush1.msra.mxu0 0.0
    %347 = vmatprep.subr.mxu0 0.0
    %348 = vmatpush1.msra.mxu0 0.0
    %349 = vmatprep.subr.mxu0 0.0
    %350 = vmatpush1.msra.mxu0 0.0
    %351 = vmatprep.subr.mxu0 0.0
    %352 = vmatpush1.msra.mxu0 0.0
    %353 = vmatprep.subr.mxu0 0.0
    %354 = vmatpush1.msra.mxu0 0.0
    %355 = vmatprep.subr.mxu0 0.0
    %356 = vmatpush1.msra.mxu0 0.0
    %357 = vmatprep.subr.mxu0 0.0
    %358 = vmatpush1.msra.mxu0 0.0
    %359 = vmatprep.subr.mxu0 0.0
    %360 = vmatpush1.msra.mxu0 0.0
    %361 = vmatprep.subr.mxu0 0.0
    %362 = vmatpush1.msra.mxu0 0.0
    %363 = vmatprep.subr.mxu0 0.0
    %364 = vmatpush1.msra.mxu0 0.0
    %365 = vmatprep.subr.mxu0 0.0
    %366 = vmatpush1.msra.mxu0 0.0
    %367 = vmatprep.subr.mxu0 0.0
    %368 = vmatpush1.msra.mxu0 0.0
    %369 = vmatprep.subr.mxu0 0.0
    %370 = vmatpush1.msra.mxu0 0.0
    %371 = vmatprep.subr.mxu0 0.0
    %372 = vmatpush1.msra.mxu0 0.0
    %373 = vmatprep.subr.mxu0 0.0
    %374 = vmatpush1.msra.mxu0 0.0
    %375 = vmatprep.subr.mxu0 0.0
    %376 = vmatpush1.msra.mxu0 0.0
    %377 = vmatprep.subr.mxu0 0.0
    %378 = vmatpush1.msra.mxu0 0.0
    %379 = vmatprep.subr.mxu0 0.0
    %380 = vmatpush1.msra.mxu0 0.0
    %381 = vmatprep.subr.mxu0 0.0
    %382 = vmatpush1.msra.mxu0 0.0
    %383 = vmatprep.subr.mxu0 0.0
    %384 = vmatpush1.msra.mxu0 0.0
    %385 = vmatprep.mubr.f32.mxu0 0.0
    %386 = vmatmul.mubr.f32.gmra.mrb[0].mxu0 %v225
    %v387 = vpop.f32.mrb[0].mxu0
    %v388 = vadd.f32 0.0, %v387
    %v389 = vpop.f32.mrb[0].mxu0
    %390 = vmatprep.mubr.f32.mxu0 0.0
    %391 = vmatmul.mubr.f32.gmra.mrb[0].mxu0 %v228
    %v392 = vpop.f32.mrb[0].mxu0
    %v393 = vadd.f32 0.0, %v392
    %v394 = vpop.f32.mrb[0].mxu0
    %395 = vmatprep.mubr.f32.mxu0 0.0
    %396 = vmatmul.mubr.f32.gmra.mrb[0].mxu0 %v231
    %v397 = vpop.f32.mrb[0].mxu0
    %v398 = vadd.f32 0.0, %v397
    %v399 = vpop.f32.mrb[0].mxu0
    %400 = vmatprep.mubr.f32.mxu0 0.0
    %401 = vmatmul.mubr.f32.gmra.mrb[0].mxu0 %v234
    %v402 = vpop.f32.mrb[0].mxu0
    %v403 = vadd.f32 0.0, %v402
    %v404 = vpop.f32.mrb[0].mxu0
    %405 = vdwg.mxu0
    %v406 = vmul.f32 %v303, %v303
    %v407 = vmul.f32 %v308, %v308
    %v408 = vmul.f32 %v313, %v313
    %v409 = vmul.f32 %v318, %v318
    %v410 = vsub.f32 %v388, %v406
    %v411 = vsub.f32 %v393, %v407
    %v412 = vsub.f32 %v398, %v408
    %v413 = vsub.f32 %v403, %v409
    %v414 = vmax.f32 %v410, 0.0
    %v415 = vmax.f32 %v411, 0.0
    %v416 = vmax.f32 %v412, 0.0
    %v417 = vmax.f32 %v413, 0.0
    %v418 = vadd.f32 %v414, 1e-05
    %v419 = vadd.f32 %v415, 1e-05
    %v420 = vadd.f32 %v416, 1e-05
    %v421 = vadd.f32 %v417, 1e-05
    %v422 = vrsqrt.pop %v418
    %v423 = vrsqrt.pop %v419
    %v424 = vrsqrt.pop %v420
    %v425 = vrsqrt.pop %v421
    %427 = vset.pattern.permute.xlu0 0
    %428 = vperm.xlu0 %427, %v303
    %v429 = vpop.permute.xlu0 %428
    %432 = vset.pattern.permute.xlu0 0
    %433 = vperm.xlu0 %432, %v308
    %v434 = vpop.permute.xlu0 %433
    %437 = vset.pattern.permute.xlu0 0
    %438 = vperm.xlu0 %437, %v313
    %v439 = vpop.permute.xlu0 %438
    %442 = vset.pattern.permute.xlu0 0
    %443 = vperm.xlu0 %442, %v318
    %v444 = vpop.permute.xlu0 %443
    %v446 = vsub.f32 %v170, %v429
    %v447 = vsub.f32 %v172, %v429
    %v448 = vsub.f32 %v176, %v434
    %v449 = vsub.f32 %v178, %v434
    %v450 = vsub.f32 %v182, %v439
    %v451 = vsub.f32 %v184, %v439
    %v452 = vsub.f32 %v188, %v444
    %v453 = vsub.f32 %v190, %v444
    %v454 = vmul.f32 %v422, %v38
    %v455 = vmul.f32 %v423, %v39
    %v456 = vmul.f32 %v424, %v40
    %v457 = vmul.f32 %v425, %v41
    %459 = vset.pattern.permute.xlu0 0
    %460 = vperm.xlu0 %459, %v454
    %v461 = vpop.permute.xlu0 %460
    %464 = vset.pattern.permute.xlu0 0
    %465 = vperm.xlu0 %464, %v455
    %v466 = vpop.permute.xlu0 %465
    %469 = vset.pattern.permute.xlu0 0
    %470 = vperm.xlu0 %469, %v456
    %v471 = vpop.permute.xlu0 %470
    %474 = vset.pattern.permute.xlu0 0
    %475 = vperm.xlu0 %474, %v457
    %v476 = vpop.permute.xlu0 %475
    %v478 = vmul.f32 %v446, %v461
    %v479 = vmul.f32 %v447, %v461
    %v480 = vmul.f32 %v448, %v466
    %v481 = vmul.f32 %v449, %v466
    %v482 = vmul.f32 %v450, %v471
    %v483 = vmul.f32 %v451, %v471
    %v484 = vmul.f32 %v452, %v476
    %v485 = vmul.f32 %v453, %v476
    %487 = vset.pattern.permute.xlu0 0
    %488 = vperm.xlu0 %487, %v42
    %v489 = vpop.permute.xlu0 %488
    %492 = vset.pattern.permute.xlu0 0
    %493 = vperm.xlu0 %492, %v43
    %v494 = vpop.permute.xlu0 %493
    %497 = vset.pattern.permute.xlu0 0
    %498 = vperm.xlu0 %497, %v44
    %v499 = vpop.permute.xlu0 %498
    %502 = vset.pattern.permute.xlu0 0
    %503 = vperm.xlu0 %502, %v45
    %v504 = vpop.permute.xlu0 %503
    %v506 = vadd.f32 %v478, %v489
    %v507 = vadd.f32 %v479, %v489
    %v508 = vadd.f32 %v480, %v494
    %v509 = vadd.f32 %v481, %v494
    %v510 = vadd.f32 %v482, %v499
    %v511 = vadd.f32 %v483, %v499
    %v512 = vadd.f32 %v484, %v504
    %v513 = vadd.f32 %v485, %v504
    %v514 = vmul.f32 %v506, 0.05
    %v515 = vmul.f32 %v507, 0.05
    %v516 = vmul.f32 %v508, 0.05
    %v517 = vmul.f32 %v509, 0.05
    %v518 = vmul.f32 %v510, 0.05
    %v519 = vmul.f32 %v511, 0.05
    %v520 = vmul.f32 %v512, 0.05
    %v521 = vmul.f32 %v513, 0.05
    %v522 = vmax.f32 %v506, %v514
    %v523 = vmax.f32 %v507, %v515
    %v524 = vmax.f32 %v508, %v516
    %v525 = vmax.f32 %v509, %v517
    %v526 = vmax.f32 %v510, %v518
    %v527 = vmax.f32 %v511, %v519
    %v528 = vmax.f32 %v512, %v520
    %v529 = vmax.f32 %v513, %v521
    %530 = vrot.lane.b32.xlu0 %v522, 34
    %v531 = vpop.permute.xlu0 %530
    %532 = vrot.lane.b32.xlu0 %v524, 34
    %v533 = vpop.permute.xlu0 %532
    %534 = vrot.lane.b32.xlu0 %v526, 34
    %v535 = vpop.permute.xlu0 %534
    %536 = vrot.lane.b32.xlu0 %v528, 34
    %v537 = vpop.permute.xlu0 %536
    %538 = vrot.lane.b32.xlu0 %v523, 34
    %v539 = vpop.permute.xlu0 %538
    %540 = vrot.lane.b32.xlu0 %v525, 34
    %v541 = vpop.permute.xlu0 %540
    %542 = vrot.lane.b32.xlu0 %v527, 34
    %v543 = vpop.permute.xlu0 %542
    %544 = vrot.lane.b32.xlu0 %v529, 34
    %v545 = vpop.permute.xlu0 %544
    %v546 = vlaneseq
    %v547 = vand.u32 %v546, 127
    %vm548 = vcmp.lt.s32.totalorder %v547, 34
    %v549 = vsel %vm548, %v531, %v539
    %v550 = vsel %vm548, %v533, %v541
    %v551 = vsel %vm548, %v535, %v543
    %v552 = vsel %vm548, %v537, %v545
    %v553 = vsel %vm548, %v539, %v531
    %v554 = vsel %vm548, %v541, %v533
    %v555 = vsel %vm548, %v543, %v535
    %v556 = vsel %vm548, %v545, %v537
    %v557 = vld [vmem:[%s7] ss:$8 sm:$0x3]
    %v559 = vlaneseq
    %v560 = vshrl.u32 %v559, 7
    %v561 = vsub.s32 0, %v560
    %v562 = vrot.slane %v557, %v561
    %v563 = vlaneseq
    %v564 = vshrl.u32 %v563, 7
    %v565 = vsub.s32 1, %v564
    %v566 = vrot.slane %v557, %v565
    %v569 = vmul.f32 %v553, %v562
    %v570 = vmul.f32 %v549, %v566
    %v571 = vmul.f32 %v554, %v562
    %v572 = vmul.f32 %v550, %v566
    %v573 = vmul.f32 %v555, %v562
    %v574 = vmul.f32 %v551, %v566
    %v575 = vmul.f32 %v556, %v562
    %v576 = vmul.f32 %v552, %v566
    %v577 = vld [vmem:[%s3] sm:$0xff]
    %v578 = vld [vmem:[%s3 + $0x8] sm:$0xff]
    %v579 = vld [vmem:[%s3 + $0x10] sm:$0xff]
    %v580 = vld [vmem:[%s3 + $0x18] sm:$0xff]
    %581 = vrot.lane.b32.xlu0 %v522, 32
    %v582 = vpop.permute.xlu0 %581
    %583 = vrot.lane.b32.xlu0 %v524, 32
    %v584 = vpop.permute.xlu0 %583
    %585 = vrot.lane.b32.xlu0 %v526, 32
    %v586 = vpop.permute.xlu0 %585
    %587 = vrot.lane.b32.xlu0 %v528, 32
    %v588 = vpop.permute.xlu0 %587
    %589 = vrot.lane.b32.xlu0 %v523, 32
    %v590 = vpop.permute.xlu0 %589
    %591 = vrot.lane.b32.xlu0 %v525, 32
    %v592 = vpop.permute.xlu0 %591
    %593 = vrot.lane.b32.xlu0 %v527, 32
    %v594 = vpop.permute.xlu0 %593
    %595 = vrot.lane.b32.xlu0 %v529, 32
    %v596 = vpop.permute.xlu0 %595
    %vm597 = vcmp.lt.s32.totalorder %v547, 32
    %v598 = vsel %vm597, %v582, %v590
    %v599 = vsel %vm597, %v584, %v592
    %v600 = vsel %vm597, %v586, %v594
    %v601 = vsel %vm597, %v588, %v596
    %v602 = vsel %vm597, %v590, %v582
    %v603 = vsel %vm597, %v592, %v584
    %v604 = vsel %vm597, %v594, %v586
    %v605 = vsel %vm597, %v596, %v588
    %s606 = scalar_lea.vmem %s7, 1
    %v607 = vld [vmem:[%s606] ss:$8 sm:$0x3]
    %v609 = vlaneseq
    %v610 = vshrl.u32 %v609, 7
    %v611 = vsub.s32 0, %v610
    %v612 = vrot.slane %v607, %v611
    %v613 = vlaneseq
    %v614 = vshrl.u32 %v613, 7
    %v615 = vsub.s32 1, %v614
    %v616 = vrot.slane %v607, %v615
    %v619 = vmul.f32 %v602, %v612
    %v620 = vmul.f32 %v598, %v616
    %v621 = vmul.f32 %v603, %v612
    %v622 = vmul.f32 %v599, %v616
    %v623 = vmul.f32 %v604, %v612
    %v624 = vmul.f32 %v600, %v616
    %v625 = vmul.f32 %v605, %v612
    %v626 = vmul.f32 %v601, %v616
    %v627 = vld [vmem:[%s3 + $0x20] sm:$0xff]
    %v628 = vld [vmem:[%s3 + $0x28] sm:$0xff]
    %v629 = vld [vmem:[%s3 + $0x30] sm:$0xff]
    %v630 = vld [vmem:[%s3 + $0x38] sm:$0xff]
    %v632 = vsel %vm90, %v627, 0
    %v635 = vsel %vm90, %v628, 0
    %v638 = vsel %vm90, %v629, 0
    %v641 = vsel %vm90, %v630, 0
    %643 = vmatprep.subr.mxu0 %v620
    %644 = vmatpush1.msra.mxu0 %v619
    %645 = vmatprep.subr.mxu0 %v622
    %646 = vmatpush1.msra.mxu0 %v621
    %647 = vmatprep.subr.mxu0 %v624
    %648 = vmatpush1.msra.mxu0 %v623
    %649 = vmatprep.subr.mxu0 %v626
    %650 = vmatpush1.msra.mxu0 %v625
    %651 = vmatprep.subr.mxu0 0.0
    %652 = vmatpush1.msra.mxu0 0.0
    %653 = vmatprep.subr.mxu0 0.0
    %654 = vmatpush1.msra.mxu0 0.0
    %655 = vmatprep.subr.mxu0 0.0
    %656 = vmatpush1.msra.mxu0 0.0
    %657 = vmatprep.subr.mxu0 0.0
    %658 = vmatpush1.msra.mxu0 0.0
    %659 = vmatprep.subr.mxu0 0.0
    %660 = vmatpush1.msra.mxu0 0.0
    %661 = vmatprep.subr.mxu0 0.0
    %662 = vmatpush1.msra.mxu0 0.0
    %663 = vmatprep.subr.mxu0 0.0
    %664 = vmatpush1.msra.mxu0 0.0
    %665 = vmatprep.subr.mxu0 0.0
    %666 = vmatpush1.msra.mxu0 0.0
    %667 = vmatprep.subr.mxu0 0.0
    %668 = vmatpush1.msra.mxu0 0.0
    %669 = vmatprep.subr.mxu0 0.0
    %670 = vmatpush1.msra.mxu0 0.0
    %671 = vmatprep.subr.mxu0 0.0
    %672 = vmatpush1.msra.mxu0 0.0
    %673 = vmatprep.subr.mxu0 0.0
    %674 = vmatpush1.msra.mxu0 0.0
    %675 = vmatprep.subr.mxu0 0.0
    %676 = vmatpush1.msra.mxu0 0.0
    %677 = vmatprep.subr.mxu0 0.0
    %678 = vmatpush1.msra.mxu0 0.0
    %679 = vmatprep.subr.mxu0 0.0
    %680 = vmatpush1.msra.mxu0 0.0
    %681 = vmatprep.subr.mxu0 0.0
    %682 = vmatpush1.msra.mxu0 0.0
    %683 = vmatprep.subr.mxu0 0.0
    %684 = vmatpush1.msra.mxu0 0.0
    %685 = vmatprep.subr.mxu0 0.0
    %686 = vmatpush1.msra.mxu0 0.0
    %687 = vmatprep.subr.mxu0 0.0
    %688 = vmatpush1.msra.mxu0 0.0
    %689 = vmatprep.subr.mxu0 0.0
    %690 = vmatpush1.msra.mxu0 0.0
    %691 = vmatprep.subr.mxu0 0.0
    %692 = vmatpush1.msra.mxu0 0.0
    %693 = vmatprep.subr.mxu0 0.0
    %694 = vmatpush1.msra.mxu0 0.0
    %695 = vmatprep.subr.mxu0 0.0
    %696 = vmatpush1.msra.mxu0 0.0
    %697 = vmatprep.subr.mxu0 0.0
    %698 = vmatpush1.msra.mxu0 0.0
    %699 = vmatprep.subr.mxu0 0.0
    %700 = vmatpush1.msra.mxu0 0.0
    %701 = vmatprep.subr.mxu0 0.0
    %702 = vmatpush1.msra.mxu0 0.0
    %703 = vmatprep.subr.mxu0 0.0
    %704 = vmatpush1.msra.mxu0 0.0
    %705 = vmatprep.subr.mxu0 0.0
    %706 = vmatpush1.msra.mxu0 0.0
    %707 = vmatprep.mubr.f32.mxu0 0.0
    %708 = vmatmul.mubr.f32.gmra.mrb[0].mxu0 %v632
    %v709 = vpop.f32.mrb[0].mxu0
    %v710 = vadd.f32 0.0, %v709
    %v711 = vpop.f32.mrb[0].mxu0
    %v712 = vadd.f32 0.0, %v711
    %713 = vmatprep.mubr.f32.mxu0 0.0
    %714 = vmatmul.mubr.f32.gmra.mrb[0].mxu0 %v635
    %v715 = vpop.f32.mrb[0].mxu0
    %v716 = vadd.f32 0.0, %v715
    %v717 = vpop.f32.mrb[0].mxu0
    %v718 = vadd.f32 0.0, %v717
    %719 = vmatprep.mubr.f32.mxu0 0.0
    %720 = vmatmul.mubr.f32.gmra.mrb[0].mxu0 %v638
    %v721 = vpop.f32.mrb[0].mxu0
    %v722 = vadd.f32 0.0, %v721
    %v723 = vpop.f32.mrb[0].mxu0
    %v724 = vadd.f32 0.0, %v723
    %725 = vmatprep.mubr.f32.mxu0 0.0
    %726 = vmatmul.mubr.f32.gmra.mrb[0].mxu0 %v641
    %v727 = vpop.f32.mrb[0].mxu0
    %v728 = vadd.f32 0.0, %v727
    %v729 = vpop.f32.mrb[0].mxu0
    %v730 = vadd.f32 0.0, %v729
    %731 = vdwg.mxu0
    %v733 = vsel %vm90, %v577, 0
    %v736 = vsel %vm90, %v578, 0
    %v739 = vsel %vm90, %v579, 0
    %v742 = vsel %vm90, %v580, 0
    %744 = vmatprep.subr.mxu0 %v570
    %745 = vmatpush1.msra.mxu0 %v569
    %746 = vmatprep.subr.mxu0 %v572
    %747 = vmatpush1.msra.mxu0 %v571
    %748 = vmatprep.subr.mxu0 %v574
    %749 = vmatpush1.msra.mxu0 %v573
    %750 = vmatprep.subr.mxu0 %v576
    %751 = vmatpush1.msra.mxu0 %v575
    %752 = vmatprep.subr.mxu0 0.0
    %753 = vmatpush1.msra.mxu0 0.0
    %754 = vmatprep.subr.mxu0 0.0
    %755 = vmatpush1.msra.mxu0 0.0
    %756 = vmatprep.subr.mxu0 0.0
    %757 = vmatpush1.msra.mxu0 0.0
    %758 = vmatprep.subr.mxu0 0.0
    %759 = vmatpush1.msra.mxu0 0.0
    %760 = vmatprep.subr.mxu0 0.0
    %761 = vmatpush1.msra.mxu0 0.0
    %762 = vmatprep.subr.mxu0 0.0
    %763 = vmatpush1.msra.mxu0 0.0
    %764 = vmatprep.subr.mxu0 0.0
    %765 = vmatpush1.msra.mxu0 0.0
    %766 = vmatprep.subr.mxu0 0.0
    %767 = vmatpush1.msra.mxu0 0.0
    %768 = vmatprep.subr.mxu0 0.0
    %769 = vmatpush1.msra.mxu0 0.0
    %770 = vmatprep.subr.mxu0 0.0
    %771 = vmatpush1.msra.mxu0 0.0
    %772 = vmatprep.subr.mxu0 0.0
    %773 = vmatpush1.msra.mxu0 0.0
    %774 = vmatprep.subr.mxu0 0.0
    %775 = vmatpush1.msra.mxu0 0.0
    %776 = vmatprep.subr.mxu0 0.0
    %777 = vmatpush1.msra.mxu0 0.0
    %778 = vmatprep.subr.mxu0 0.0
    %779 = vmatpush1.msra.mxu0 0.0
    %780 = vmatprep.subr.mxu0 0.0
    %781 = vmatpush1.msra.mxu0 0.0
    %782 = vmatprep.subr.mxu0 0.0
    %783 = vmatpush1.msra.mxu0 0.0
    %784 = vmatprep.subr.mxu0 0.0
    %785 = vmatpush1.msra.mxu0 0.0
    %786 = vmatprep.subr.mxu0 0.0
    %787 = vmatpush1.msra.mxu0 0.0
    %788 = vmatprep.subr.mxu0 0.0
    %789 = vmatpush1.msra.mxu0 0.0
    %790 = vmatprep.subr.mxu0 0.0
    %791 = vmatpush1.msra.mxu0 0.0
    %792 = vmatprep.subr.mxu0 0.0
    %793 = vmatpush1.msra.mxu0 0.0
    %794 = vmatprep.subr.mxu0 0.0
    %795 = vmatpush1.msra.mxu0 0.0
    %796 = vmatprep.subr.mxu0 0.0
    %797 = vmatpush1.msra.mxu0 0.0
    %798 = vmatprep.subr.mxu0 0.0
    %799 = vmatpush1.msra.mxu0 0.0
    %800 = vmatprep.subr.mxu0 0.0
    %801 = vmatpush1.msra.mxu0 0.0
    %802 = vmatprep.subr.mxu0 0.0
    %803 = vmatpush1.msra.mxu0 0.0
    %804 = vmatprep.subr.mxu0 0.0
    %805 = vmatpush1.msra.mxu0 0.0
    %806 = vmatprep.subr.mxu0 0.0
    %807 = vmatpush1.msra.mxu0 0.0
    %808 = vmatprep.mubr.f32.mxu0 0.0
    %809 = vmatmul.mubr.f32.gmra.mrb[0].mxu0 %v733
    %v810 = vpop.f32.mrb[0].mxu0
    %v811 = vadd.f32 %v710, %v810
    %v812 = vpop.f32.mrb[0].mxu0
    %v813 = vadd.f32 %v712, %v812
    %814 = vmatprep.mubr.f32.mxu0 0.0
    %815 = vmatmul.mubr.f32.gmra.mrb[0].mxu0 %v736
    %v816 = vpop.f32.mrb[0].mxu0
    %v817 = vadd.f32 %v716, %v816
    %v818 = vpop.f32.mrb[0].mxu0
    %v819 = vadd.f32 %v718, %v818
    %820 = vmatprep.mubr.f32.mxu0 0.0
    %821 = vmatmul.mubr.f32.gmra.mrb[0].mxu0 %v739
    %v822 = vpop.f32.mrb[0].mxu0
    %v823 = vadd.f32 %v722, %v822
    %v824 = vpop.f32.mrb[0].mxu0
    %v825 = vadd.f32 %v724, %v824
    %826 = vmatprep.mubr.f32.mxu0 0.0
    %827 = vmatmul.mubr.f32.gmra.mrb[0].mxu0 %v742
    %v828 = vpop.f32.mrb[0].mxu0
    %v829 = vadd.f32 %v728, %v828
    %v830 = vpop.f32.mrb[0].mxu0
    %v831 = vadd.f32 %v730, %v830
    %832 = vdwg.mxu0
    %833 = vrot.lane.b32.xlu0 %v522, 30
    %v834 = vpop.permute.xlu0 %833
    %835 = vrot.lane.b32.xlu0 %v524, 30
    %v836 = vpop.permute.xlu0 %835
    %837 = vrot.lane.b32.xlu0 %v526, 30
    %v838 = vpop.permute.xlu0 %837
    %839 = vrot.lane.b32.xlu0 %v528, 30
    %v840 = vpop.permute.xlu0 %839
    %841 = vrot.lane.b32.xlu0 %v523, 30
    %v842 = vpop.permute.xlu0 %841
    %843 = vrot.lane.b32.xlu0 %v525, 30
    %v844 = vpop.permute.xlu0 %843
    %845 = vrot.lane.b32.xlu0 %v527, 30
    %v846 = vpop.permute.xlu0 %845
    %847 = vrot.lane.b32.xlu0 %v529, 30
    %v848 = vpop.permute.xlu0 %847
    %vm849 = vcmp.lt.s32.totalorder %v547, 30
    %v850 = vsel %vm849, %v834, %v842
    %v851 = vsel %vm849, %v836, %v844
    %v852 = vsel %vm849, %v838, %v846
    %v853 = vsel %vm849, %v840, %v848
    %v854 = vsel %vm849, %v842, %v834
    %v855 = vsel %vm849, %v844, %v836
    %v856 = vsel %vm849, %v846, %v838
    %v857 = vsel %vm849, %v848, %v840
    %s858 = scalar_lea.vmem %s7, 2
    %v859 = vld [vmem:[%s858] ss:$8 sm:$0x3]
    %v861 = vlaneseq
    %v862 = vshrl.u32 %v861, 7
    %v863 = vsub.s32 0, %v862
    %v864 = vrot.slane %v859, %v863
    %v865 = vlaneseq
    %v866 = vshrl.u32 %v865, 7
    %v867 = vsub.s32 1, %v866
    %v868 = vrot.slane %v859, %v867
    %v871 = vmul.f32 %v854, %v864
    %v872 = vmul.f32 %v850, %v868
    %v873 = vmul.f32 %v855, %v864
    %v874 = vmul.f32 %v851, %v868
    %v875 = vmul.f32 %v856, %v864
    %v876 = vmul.f32 %v852, %v868
    %v877 = vmul.f32 %v857, %v864
    %v878 = vmul.f32 %v853, %v868
    %v879 = vld [vmem:[%s3 + $0x40] sm:$0xff]
    %v880 = vld [vmem:[%s3 + $0x48] sm:$0xff]
    %v881 = vld [vmem:[%s3 + $0x50] sm:$0xff]
    %v882 = vld [vmem:[%s3 + $0x58] sm:$0xff]
    %v884 = vsel %vm90, %v879, 0
    %v887 = vsel %vm90, %v880, 0
    %v890 = vsel %vm90, %v881, 0
    %v893 = vsel %vm90, %v882, 0
    %895 = vmatprep.subr.mxu0 %v872
    %896 = vmatpush1.msra.mxu0 %v871
    %897 = vmatprep.subr.mxu0 %v874
    %898 = vmatpush1.msra.mxu0 %v873
    %899 = vmatprep.subr.mxu0 %v876
    %900 = vmatpush1.msra.mxu0 %v875
    %901 = vmatprep.subr.mxu0 %v878
    %902 = vmatpush1.msra.mxu0 %v877
    %903 = vmatprep.subr.mxu0 0.0
    %904 = vmatpush1.msra.mxu0 0.0
    %905 = vmatprep.subr.mxu0 0.0
    %906 = vmatpush1.msra.mxu0 0.0
    %907 = vmatprep.subr.mxu0 0.0
    %908 = vmatpush1.msra.mxu0 0.0
    %909 = vmatprep.subr.mxu0 0.0
    %910 = vmatpush1.msra.mxu0 0.0
    %911 = vmatprep.subr.mxu0 0.0
    %912 = vmatpush1.msra.mxu0 0.0
    %913 = vmatprep.subr.mxu0 0.0
    %914 = vmatpush1.msra.mxu0 0.0
    %915 = vmatprep.subr.mxu0 0.0
    %916 = vmatpush1.msra.mxu0 0.0
    %917 = vmatprep.subr.mxu0 0.0
    %918 = vmatpush1.msra.mxu0 0.0
    %919 = vmatprep.subr.mxu0 0.0
    %920 = vmatpush1.msra.mxu0 0.0
    %921 = vmatprep.subr.mxu0 0.0
    %922 = vmatpush1.msra.mxu0 0.0
    %923 = vmatprep.subr.mxu0 0.0
    %924 = vmatpush1.msra.mxu0 0.0
    %925 = vmatprep.subr.mxu0 0.0
    %926 = vmatpush1.msra.mxu0 0.0
    %927 = vmatprep.subr.mxu0 0.0
    %928 = vmatpush1.msra.mxu0 0.0
    %929 = vmatprep.subr.mxu0 0.0
    %930 = vmatpush1.msra.mxu0 0.0
    %931 = vmatprep.subr.mxu0 0.0
    %932 = vmatpush1.msra.mxu0 0.0
    %933 = vmatprep.subr.mxu0 0.0
    %934 = vmatpush1.msra.mxu0 0.0
    %935 = vmatprep.subr.mxu0 0.0
    %936 = vmatpush1.msra.mxu0 0.0
    %937 = vmatprep.subr.mxu0 0.0
    %938 = vmatpush1.msra.mxu0 0.0
    %939 = vmatprep.subr.mxu0 0.0
    %940 = vmatpush1.msra.mxu0 0.0
    %941 = vmatprep.subr.mxu0 0.0
    %942 = vmatpush1.msra.mxu0 0.0
    %943 = vmatprep.subr.mxu0 0.0
    %944 = vmatpush1.msra.mxu0 0.0
    %945 = vmatprep.subr.mxu0 0.0
    %946 = vmatpush1.msra.mxu0 0.0
    %947 = vmatprep.subr.mxu0 0.0
    %948 = vmatpush1.msra.mxu0 0.0
    %949 = vmatprep.subr.mxu0 0.0
    %950 = vmatpush1.msra.mxu0 0.0
    %951 = vmatprep.subr.mxu0 0.0
    %952 = vmatpush1.msra.mxu0 0.0
    %953 = vmatprep.subr.mxu0 0.0
    %954 = vmatpush1.msra.mxu0 0.0
    %955 = vmatprep.subr.mxu0 0.0
    %956 = vmatpush1.msra.mxu0 0.0
    %957 = vmatprep.subr.mxu0 0.0
    %958 = vmatpush1.msra.mxu0 0.0
    %959 = vmatprep.mubr.f32.mxu0 0.0
    %960 = vmatmul.mubr.f32.gmra.mrb[0].mxu0 %v884
    %v961 = vpop.f32.mrb[0].mxu0
    %v962 = vadd.f32 0.0, %v961
    %v963 = vpop.f32.mrb[0].mxu0
    %v964 = vadd.f32 0.0, %v963
    %965 = vmatprep.mubr.f32.mxu0 0.0
    %966 = vmatmul.mubr.f32.gmra.mrb[0].mxu0 %v887
    %v967 = vpop.f32.mrb[0].mxu0
    %v968 = vadd.f32 0.0, %v967
    %v969 = vpop.f32.mrb[0].mxu0
    %v970 = vadd.f32 0.0, %v969
    %971 = vmatprep.mubr.f32.mxu0 0.0
    %972 = vmatmul.mubr.f32.gmra.mrb[0].mxu0 %v890
    %v973 = vpop.f32.mrb[0].mxu0
    %v974 = vadd.f32 0.0, %v973
    %v975 = vpop.f32.mrb[0].mxu0
    %v976 = vadd.f32 0.0, %v975
    %977 = vmatprep.mubr.f32.mxu0 0.0
    %978 = vmatmul.mubr.f32.gmra.mrb[0].mxu0 %v893
    %v979 = vpop.f32.mrb[0].mxu0
    %v980 = vadd.f32 0.0, %v979
    %v981 = vpop.f32.mrb[0].mxu0
    %v982 = vadd.f32 0.0, %v981
    %983 = vdwg.mxu0
    %v984 = vadd.f32 %v811, %v962
    %v985 = vadd.f32 %v813, %v964
    %v986 = vadd.f32 %v817, %v968
    %v987 = vadd.f32 %v819, %v970
    %v988 = vadd.f32 %v823, %v974
    %v989 = vadd.f32 %v825, %v976
    %v990 = vadd.f32 %v829, %v980
    %v991 = vadd.f32 %v831, %v982
    %992 = vrot.lane.b32.xlu0 %v522, 2
    %v993 = vpop.permute.xlu0 %992
    %994 = vrot.lane.b32.xlu0 %v524, 2
    %v995 = vpop.permute.xlu0 %994
    %996 = vrot.lane.b32.xlu0 %v526, 2
    %v997 = vpop.permute.xlu0 %996
    %998 = vrot.lane.b32.xlu0 %v528, 2
    %v999 = vpop.permute.xlu0 %998
    %1000 = vrot.lane.b32.xlu0 %v523, 2
    %v1001 = vpop.permute.xlu0 %1000
    %1002 = vrot.lane.b32.xlu0 %v525, 2
    %v1003 = vpop.permute.xlu0 %1002
    %1004 = vrot.lane.b32.xlu0 %v527, 2
    %v1005 = vpop.permute.xlu0 %1004
    %1006 = vrot.lane.b32.xlu0 %v529, 2
    %v1007 = vpop.permute.xlu0 %1006
    %vm1008 = vcmp.lt.s32.totalorder %v547, 2
    %v1009 = vsel %vm1008, %v993, %v1001
    %v1010 = vsel %vm1008, %v995, %v1003
    %v1011 = vsel %vm1008, %v997, %v1005
    %v1012 = vsel %vm1008, %v999, %v1007
    %v1013 = vsel %vm1008, %v1001, %v993
    %v1014 = vsel %vm1008, %v1003, %v995
    %v1015 = vsel %vm1008, %v1005, %v997
    %v1016 = vsel %vm1008, %v1007, %v999
    %s1017 = scalar_lea.vmem %s7, 3
    %v1018 = vld [vmem:[%s1017] ss:$8 sm:$0x3]
    %v1020 = vlaneseq
    %v1021 = vshrl.u32 %v1020, 7
    %v1022 = vsub.s32 0, %v1021
    %v1023 = vrot.slane %v1018, %v1022
    %v1024 = vlaneseq
    %v1025 = vshrl.u32 %v1024, 7
    %v1026 = vsub.s32 1, %v1025
    %v1027 = vrot.slane %v1018, %v1026
    %v1030 = vmul.f32 %v1013, %v1023
    %v1031 = vmul.f32 %v1009, %v1027
    %v1032 = vmul.f32 %v1014, %v1023
    %v1033 = vmul.f32 %v1010, %v1027
    %v1034 = vmul.f32 %v1015, %v1023
    %v1035 = vmul.f32 %v1011, %v1027
    %v1036 = vmul.f32 %v1016, %v1023
    %v1037 = vmul.f32 %v1012, %v1027
    %v1038 = vld [vmem:[%s3 + $0x60] sm:$0xff]
    %v1039 = vld [vmem:[%s3 + $0x68] sm:$0xff]
    %v1040 = vld [vmem:[%s3 + $0x70] sm:$0xff]
    %v1041 = vld [vmem:[%s3 + $0x78] sm:$0xff]
    %v1043 = vsel %vm90, %v1038, 0
    %v1046 = vsel %vm90, %v1039, 0
    %v1049 = vsel %vm90, %v1040, 0
    %v1052 = vsel %vm90, %v1041, 0
    %1054 = vmatprep.subr.mxu0 %v1031
    %1055 = vmatpush1.msra.mxu0 %v1030
    %1056 = vmatprep.subr.mxu0 %v1033
    %1057 = vmatpush1.msra.mxu0 %v1032
    %1058 = vmatprep.subr.mxu0 %v1035
    %1059 = vmatpush1.msra.mxu0 %v1034
    %1060 = vmatprep.subr.mxu0 %v1037
    %1061 = vmatpush1.msra.mxu0 %v1036
    %1062 = vmatprep.subr.mxu0 0.0
    %1063 = vmatpush1.msra.mxu0 0.0
    %1064 = vmatprep.subr.mxu0 0.0
    %1065 = vmatpush1.msra.mxu0 0.0
    %1066 = vmatprep.subr.mxu0 0.0
    %1067 = vmatpush1.msra.mxu0 0.0
    %1068 = vmatprep.subr.mxu0 0.0
    %1069 = vmatpush1.msra.mxu0 0.0
    %1070 = vmatprep.subr.mxu0 0.0
    %1071 = vmatpush1.msra.mxu0 0.0
    %1072 = vmatprep.subr.mxu0 0.0
    %1073 = vmatpush1.msra.mxu0 0.0
    %1074 = vmatprep.subr.mxu0 0.0
    %1075 = vmatpush1.msra.mxu0 0.0
    %1076 = vmatprep.subr.mxu0 0.0
    %1077 = vmatpush1.msra.mxu0 0.0
    %1078 = vmatprep.subr.mxu0 0.0
    %1079 = vmatpush1.msra.mxu0 0.0
    %1080 = vmatprep.subr.mxu0 0.0
    %1081 = vmatpush1.msra.mxu0 0.0
    %1082 = vmatprep.subr.mxu0 0.0
    %1083 = vmatpush1.msra.mxu0 0.0
    %1084 = vmatprep.subr.mxu0 0.0
    %1085 = vmatpush1.msra.mxu0 0.0
    %1086 = vmatprep.subr.mxu0 0.0
    %1087 = vmatpush1.msra.mxu0 0.0
    %1088 = vmatprep.subr.mxu0 0.0
    %1089 = vmatpush1.msra.mxu0 0.0
    %1090 = vmatprep.subr.mxu0 0.0
    %1091 = vmatpush1.msra.mxu0 0.0
    %1092 = vmatprep.subr.mxu0 0.0
    %1093 = vmatpush1.msra.mxu0 0.0
    %1094 = vmatprep.subr.mxu0 0.0
    %1095 = vmatpush1.msra.mxu0 0.0
    %1096 = vmatprep.subr.mxu0 0.0
    %1097 = vmatpush1.msra.mxu0 0.0
    %1098 = vmatprep.subr.mxu0 0.0
    %1099 = vmatpush1.msra.mxu0 0.0
    %1100 = vmatprep.subr.mxu0 0.0
    %1101 = vmatpush1.msra.mxu0 0.0
    %1102 = vmatprep.subr.mxu0 0.0
    %1103 = vmatpush1.msra.mxu0 0.0
    %1104 = vmatprep.subr.mxu0 0.0
    %1105 = vmatpush1.msra.mxu0 0.0
    %1106 = vmatprep.subr.mxu0 0.0
    %1107 = vmatpush1.msra.mxu0 0.0
    %1108 = vmatprep.subr.mxu0 0.0
    %1109 = vmatpush1.msra.mxu0 0.0
    %1110 = vmatprep.subr.mxu0 0.0
    %1111 = vmatpush1.msra.mxu0 0.0
    %1112 = vmatprep.subr.mxu0 0.0
    %1113 = vmatpush1.msra.mxu0 0.0
    %1114 = vmatprep.subr.mxu0 0.0
    %1115 = vmatpush1.msra.mxu0 0.0
    %1116 = vmatprep.subr.mxu0 0.0
    %1117 = vmatpush1.msra.mxu0 0.0
    %1118 = vmatprep.mubr.f32.mxu0 0.0
    %1119 = vmatmul.mubr.f32.gmra.mrb[0].mxu0 %v1043
    %v1120 = vpop.f32.mrb[0].mxu0
    %v1121 = vadd.f32 0.0, %v1120
    %v1122 = vpop.f32.mrb[0].mxu0
    %v1123 = vadd.f32 0.0, %v1122
    %1124 = vmatprep.mubr.f32.mxu0 0.0
    %1125 = vmatmul.mubr.f32.gmra.mrb[0].mxu0 %v1046
    %v1126 = vpop.f32.mrb[0].mxu0
    %v1127 = vadd.f32 0.0, %v1126
    %v1128 = vpop.f32.mrb[0].mxu0
    %v1129 = vadd.f32 0.0, %v1128
    %1130 = vmatprep.mubr.f32.mxu0 0.0
    %1131 = vmatmul.mubr.f32.gmra.mrb[0].mxu0 %v1049
    %v1132 = vpop.f32.mrb[0].mxu0
    %v1133 = vadd.f32 0.0, %v1132
    %v1134 = vpop.f32.mrb[0].mxu0
    %v1135 = vadd.f32 0.0, %v1134
    %1136 = vmatprep.mubr.f32.mxu0 0.0
    %1137 = vmatmul.mubr.f32.gmra.mrb[0].mxu0 %v1052
    %v1138 = vpop.f32.mrb[0].mxu0
    %v1139 = vadd.f32 0.0, %v1138
    %v1140 = vpop.f32.mrb[0].mxu0
    %v1141 = vadd.f32 0.0, %v1140
    %1142 = vdwg.mxu0
    %v1143 = vadd.f32 %v984, %v1121
    %v1144 = vadd.f32 %v985, %v1123
    %v1145 = vadd.f32 %v986, %v1127
    %v1146 = vadd.f32 %v987, %v1129
    %v1147 = vadd.f32 %v988, %v1133
    %v1148 = vadd.f32 %v989, %v1135
    %v1149 = vadd.f32 %v990, %v1139
    %v1150 = vadd.f32 %v991, %v1141
    %v1151 = vld [vmem:[%s3 + $0x80] sm:$0xff]
    %v1152 = vld [vmem:[%s3 + $0x88] sm:$0xff]
    %v1153 = vld [vmem:[%s3 + $0x90] sm:$0xff]
    %v1154 = vld [vmem:[%s3 + $0x98] sm:$0xff]
    %v1156 = vsel %vm90, %v1151, 0
    %v1159 = vsel %vm90, %v1152, 0
    %v1162 = vsel %vm90, %v1153, 0
    %v1165 = vsel %vm90, %v1154, 0
    %1167 = vmatprep.subr.mxu0 %v523
    %1168 = vmatpush1.msra.mxu0 %v522
    %1169 = vmatprep.subr.mxu0 %v525
    %1170 = vmatpush1.msra.mxu0 %v524
    %1171 = vmatprep.subr.mxu0 %v527
    %1172 = vmatpush1.msra.mxu0 %v526
    %1173 = vmatprep.subr.mxu0 %v529
    %1174 = vmatpush1.msra.mxu0 %v528
    %1175 = vmatprep.subr.mxu0 0.0
    %1176 = vmatpush1.msra.mxu0 0.0
    %1177 = vmatprep.subr.mxu0 0.0
    %1178 = vmatpush1.msra.mxu0 0.0
    %1179 = vmatprep.subr.mxu0 0.0
    %1180 = vmatpush1.msra.mxu0 0.0
    %1181 = vmatprep.subr.mxu0 0.0
    %1182 = vmatpush1.msra.mxu0 0.0
    %1183 = vmatprep.subr.mxu0 0.0
    %1184 = vmatpush1.msra.mxu0 0.0
    %1185 = vmatprep.subr.mxu0 0.0
    %1186 = vmatpush1.msra.mxu0 0.0
    %1187 = vmatprep.subr.mxu0 0.0
    %1188 = vmatpush1.msra.mxu0 0.0
    %1189 = vmatprep.subr.mxu0 0.0
    %1190 = vmatpush1.msra.mxu0 0.0
    %1191 = vmatprep.subr.mxu0 0.0
    %1192 = vmatpush1.msra.mxu0 0.0
    %1193 = vmatprep.subr.mxu0 0.0
    %1194 = vmatpush1.msra.mxu0 0.0
    %1195 = vmatprep.subr.mxu0 0.0
    %1196 = vmatpush1.msra.mxu0 0.0
    %1197 = vmatprep.subr.mxu0 0.0
    %1198 = vmatpush1.msra.mxu0 0.0
    %1199 = vmatprep.subr.mxu0 0.0
    %1200 = vmatpush1.msra.mxu0 0.0
    %1201 = vmatprep.subr.mxu0 0.0
    %1202 = vmatpush1.msra.mxu0 0.0
    %1203 = vmatprep.subr.mxu0 0.0
    %1204 = vmatpush1.msra.mxu0 0.0
    %1205 = vmatprep.subr.mxu0 0.0
    %1206 = vmatpush1.msra.mxu0 0.0
    %1207 = vmatprep.subr.mxu0 0.0
    %1208 = vmatpush1.msra.mxu0 0.0
    %1209 = vmatprep.subr.mxu0 0.0
    %1210 = vmatpush1.msra.mxu0 0.0
    %1211 = vmatprep.subr.mxu0 0.0
    %1212 = vmatpush1.msra.mxu0 0.0
    %1213 = vmatprep.subr.mxu0 0.0
    %1214 = vmatpush1.msra.mxu0 0.0
    %1215 = vmatprep.subr.mxu0 0.0
    %1216 = vmatpush1.msra.mxu0 0.0
    %1217 = vmatprep.subr.mxu0 0.0
    %1218 = vmatpush1.msra.mxu0 0.0
    %1219 = vmatprep.subr.mxu0 0.0
    %1220 = vmatpush1.msra.mxu0 0.0
    %1221 = vmatprep.subr.mxu0 0.0
    %1222 = vmatpush1.msra.mxu0 0.0
    %1223 = vmatprep.subr.mxu0 0.0
    %1224 = vmatpush1.msra.mxu0 0.0
    %1225 = vmatprep.subr.mxu0 0.0
    %1226 = vmatpush1.msra.mxu0 0.0
    %1227 = vmatprep.subr.mxu0 0.0
    %1228 = vmatpush1.msra.mxu0 0.0
    %1229 = vmatprep.subr.mxu0 0.0
    %1230 = vmatpush1.msra.mxu0 0.0
    %1231 = vmatprep.mubr.f32.mxu0 0.0
    %1232 = vmatmul.mubr.f32.gmra.mrb[0].mxu0 %v1156
    %v1233 = vpop.f32.mrb[0].mxu0
    %v1234 = vadd.f32 0.0, %v1233
    %v1235 = vpop.f32.mrb[0].mxu0
    %v1236 = vadd.f32 0.0, %v1235
    %1237 = vmatprep.mubr.f32.mxu0 0.0
    %1238 = vmatmul.mubr.f32.gmra.mrb[0].mxu0 %v1159
    %v1239 = vpop.f32.mrb[0].mxu0
    %v1240 = vadd.f32 0.0, %v1239
    %v1241 = vpop.f32.mrb[0].mxu0
    %v1242 = vadd.f32 0.0, %v1241
    %1243 = vmatprep.mubr.f32.mxu0 0.0
    %1244 = vmatmul.mubr.f32.gmra.mrb[0].mxu0 %v1162
    %v1245 = vpop.f32.mrb[0].mxu0
    %v1246 = vadd.f32 0.0, %v1245
    %v1247 = vpop.f32.mrb[0].mxu0
    %v1248 = vadd.f32 0.0, %v1247
    %1249 = vmatprep.mubr.f32.mxu0 0.0
    %1250 = vmatmul.mubr.f32.gmra.mrb[0].mxu0 %v1165
    %v1251 = vpop.f32.mrb[0].mxu0
    %v1252 = vadd.f32 0.0, %v1251
    %v1253 = vpop.f32.mrb[0].mxu0
    %v1254 = vadd.f32 0.0, %v1253
    %1255 = vdwg.mxu0
    %v1256 = vadd.f32 %v1143, %v1234
    %v1257 = vadd.f32 %v1144, %v1236
    %v1258 = vadd.f32 %v1145, %v1240
    %v1259 = vadd.f32 %v1146, %v1242
    %v1260 = vadd.f32 %v1147, %v1246
    %v1261 = vadd.f32 %v1148, %v1248
    %v1262 = vadd.f32 %v1149, %v1252
    %v1263 = vadd.f32 %v1150, %v1254
    %1264 = vrot.lane.b32.xlu0 %v522, 126
    %v1265 = vpop.permute.xlu0 %1264
    %1266 = vrot.lane.b32.xlu0 %v524, 126
    %v1267 = vpop.permute.xlu0 %1266
    %1268 = vrot.lane.b32.xlu0 %v526, 126
    %v1269 = vpop.permute.xlu0 %1268
    %1270 = vrot.lane.b32.xlu0 %v528, 126
    %v1271 = vpop.permute.xlu0 %1270
    %1272 = vrot.lane.b32.xlu0 %v523, 126
    %v1273 = vpop.permute.xlu0 %1272
    %1274 = vrot.lane.b32.xlu0 %v525, 126
    %v1275 = vpop.permute.xlu0 %1274
    %1276 = vrot.lane.b32.xlu0 %v527, 126
    %v1277 = vpop.permute.xlu0 %1276
    %1278 = vrot.lane.b32.xlu0 %v529, 126
    %v1279 = vpop.permute.xlu0 %1278
    %vm1280 = vcmp.lt.s32.totalorder %v547, 126
    %v1281 = vsel %vm1280, %v1265, %v1273
    %v1282 = vsel %vm1280, %v1267, %v1275
    %v1283 = vsel %vm1280, %v1269, %v1277
    %v1284 = vsel %vm1280, %v1271, %v1279
    %v1285 = vsel %vm1280, %v1273, %v1265
    %v1286 = vsel %vm1280, %v1275, %v1267
    %v1287 = vsel %vm1280, %v1277, %v1269
    %v1288 = vsel %vm1280, %v1279, %v1271
    %s1289 = scalar_lea.vmem %s7, 5
    %v1290 = vld [vmem:[%s1289] ss:$8 sm:$0x3]
    %v1292 = vlaneseq
    %v1293 = vshrl.u32 %v1292, 7
    %v1294 = vsub.s32 0, %v1293
    %v1295 = vrot.slane %v1290, %v1294
    %v1296 = vlaneseq
    %v1297 = vshrl.u32 %v1296, 7
    %v1298 = vsub.s32 1, %v1297
    %v1299 = vrot.slane %v1290, %v1298
    %v1302 = vmul.f32 %v1281, %v1295
    %v1303 = vmul.f32 %v1285, %v1299
    %v1304 = vmul.f32 %v1282, %v1295
    %v1305 = vmul.f32 %v1286, %v1299
    %v1306 = vmul.f32 %v1283, %v1295
    %v1307 = vmul.f32 %v1287, %v1299
    %v1308 = vmul.f32 %v1284, %v1295
    %v1309 = vmul.f32 %v1288, %v1299
    %v1310 = vld [vmem:[%s3 + $0xa0] sm:$0xff]
    %v1311 = vld [vmem:[%s3 + $0xa8] sm:$0xff]
    %v1312 = vld [vmem:[%s3 + $0xb0] sm:$0xff]
    %v1313 = vld [vmem:[%s3 + $0xb8] sm:$0xff]
    %v1315 = vsel %vm90, %v1310, 0
    %v1318 = vsel %vm90, %v1311, 0
    %v1321 = vsel %vm90, %v1312, 0
    %v1324 = vsel %vm90, %v1313, 0
    %1326 = vmatprep.subr.mxu0 %v1303
    %1327 = vmatpush1.msra.mxu0 %v1302
    %1328 = vmatprep.subr.mxu0 %v1305
    %1329 = vmatpush1.msra.mxu0 %v1304
    %1330 = vmatprep.subr.mxu0 %v1307
    %1331 = vmatpush1.msra.mxu0 %v1306
    %1332 = vmatprep.subr.mxu0 %v1309
    %1333 = vmatpush1.msra.mxu0 %v1308
    %1334 = vmatprep.subr.mxu0 0.0
    %1335 = vmatpush1.msra.mxu0 0.0
    %1336 = vmatprep.subr.mxu0 0.0
    %1337 = vmatpush1.msra.mxu0 0.0
    %1338 = vmatprep.subr.mxu0 0.0
    %1339 = vmatpush1.msra.mxu0 0.0
    %1340 = vmatprep.subr.mxu0 0.0
    %1341 = vmatpush1.msra.mxu0 0.0
    %1342 = vmatprep.subr.mxu0 0.0
    %1343 = vmatpush1.msra.mxu0 0.0
    %1344 = vmatprep.subr.mxu0 0.0
    %1345 = vmatpush1.msra.mxu0 0.0
    %1346 = vmatprep.subr.mxu0 0.0
    %1347 = vmatpush1.msra.mxu0 0.0
    %1348 = vmatprep.subr.mxu0 0.0
    %1349 = vmatpush1.msra.mxu0 0.0
    %1350 = vmatprep.subr.mxu0 0.0
    %1351 = vmatpush1.msra.mxu0 0.0
    %1352 = vmatprep.subr.mxu0 0.0
    %1353 = vmatpush1.msra.mxu0 0.0
    %1354 = vmatprep.subr.mxu0 0.0
    %1355 = vmatpush1.msra.mxu0 0.0
    %1356 = vmatprep.subr.mxu0 0.0
    %1357 = vmatpush1.msra.mxu0 0.0
    %1358 = vmatprep.subr.mxu0 0.0
    %1359 = vmatpush1.msra.mxu0 0.0
    %1360 = vmatprep.subr.mxu0 0.0
    %1361 = vmatpush1.msra.mxu0 0.0
    %1362 = vmatprep.subr.mxu0 0.0
    %1363 = vmatpush1.msra.mxu0 0.0
    %1364 = vmatprep.subr.mxu0 0.0
    %1365 = vmatpush1.msra.mxu0 0.0
    %1366 = vmatprep.subr.mxu0 0.0
    %1367 = vmatpush1.msra.mxu0 0.0
    %1368 = vmatprep.subr.mxu0 0.0
    %1369 = vmatpush1.msra.mxu0 0.0
    %1370 = vmatprep.subr.mxu0 0.0
    %1371 = vmatpush1.msra.mxu0 0.0
    %1372 = vmatprep.subr.mxu0 0.0
    %1373 = vmatpush1.msra.mxu0 0.0
    %1374 = vmatprep.subr.mxu0 0.0
    %1375 = vmatpush1.msra.mxu0 0.0
    %1376 = vmatprep.subr.mxu0 0.0
    %1377 = vmatpush1.msra.mxu0 0.0
    %1378 = vmatprep.subr.mxu0 0.0
    %1379 = vmatpush1.msra.mxu0 0.0
    %1380 = vmatprep.subr.mxu0 0.0
    %1381 = vmatpush1.msra.mxu0 0.0
    %1382 = vmatprep.subr.mxu0 0.0
    %1383 = vmatpush1.msra.mxu0 0.0
    %1384 = vmatprep.subr.mxu0 0.0
    %1385 = vmatpush1.msra.mxu0 0.0
    %1386 = vmatprep.subr.mxu0 0.0
    %1387 = vmatpush1.msra.mxu0 0.0
    %1388 = vmatprep.subr.mxu0 0.0
    %1389 = vmatpush1.msra.mxu0 0.0
    %1390 = vmatprep.mubr.f32.mxu0 0.0
    %1391 = vmatmul.mubr.f32.gmra.mrb[0].mxu0 %v1315
    %v1392 = vpop.f32.mrb[0].mxu0
    %v1393 = vadd.f32 0.0, %v1392
    %v1394 = vpop.f32.mrb[0].mxu0
    %v1395 = vadd.f32 0.0, %v1394
    %1396 = vmatprep.mubr.f32.mxu0 0.0
    %1397 = vmatmul.mubr.f32.gmra.mrb[0].mxu0 %v1318
    %v1398 = vpop.f32.mrb[0].mxu0
    %v1399 = vadd.f32 0.0, %v1398
    %v1400 = vpop.f32.mrb[0].mxu0
    %v1401 = vadd.f32 0.0, %v1400
    %1402 = vmatprep.mubr.f32.mxu0 0.0
    %1403 = vmatmul.mubr.f32.gmra.mrb[0].mxu0 %v1321
    %v1404 = vpop.f32.mrb[0].mxu0
    %v1405 = vadd.f32 0.0, %v1404
    %v1406 = vpop.f32.mrb[0].mxu0
    %v1407 = vadd.f32 0.0, %v1406
    %1408 = vmatprep.mubr.f32.mxu0 0.0
    %1409 = vmatmul.mubr.f32.gmra.mrb[0].mxu0 %v1324
    %v1410 = vpop.f32.mrb[0].mxu0
    %v1411 = vadd.f32 0.0, %v1410
    %v1412 = vpop.f32.mrb[0].mxu0
    %v1413 = vadd.f32 0.0, %v1412
    %1414 = vdwg.mxu0
    %v1415 = vadd.f32 %v1256, %v1393
    %v1416 = vadd.f32 %v1257, %v1395
    %v1417 = vadd.f32 %v1258, %v1399
    %v1418 = vadd.f32 %v1259, %v1401
    %v1419 = vadd.f32 %v1260, %v1405
    %v1420 = vadd.f32 %v1261, %v1407
    %v1421 = vadd.f32 %v1262, %v1411
    %v1422 = vadd.f32 %v1263, %v1413
    %1423 = vrot.lane.b32.xlu0 %v522, 98
    %v1424 = vpop.permute.xlu0 %1423
    %1425 = vrot.lane.b32.xlu0 %v524, 98
    %v1426 = vpop.permute.xlu0 %1425
    %1427 = vrot.lane.b32.xlu0 %v526, 98
    %v1428 = vpop.permute.xlu0 %1427
    %1429 = vrot.lane.b32.xlu0 %v528, 98
    %v1430 = vpop.permute.xlu0 %1429
    %1431 = vrot.lane.b32.xlu0 %v523, 98
    %v1432 = vpop.permute.xlu0 %1431
    %1433 = vrot.lane.b32.xlu0 %v525, 98
    %v1434 = vpop.permute.xlu0 %1433
    %1435 = vrot.lane.b32.xlu0 %v527, 98
    %v1436 = vpop.permute.xlu0 %1435
    %1437 = vrot.lane.b32.xlu0 %v529, 98
    %v1438 = vpop.permute.xlu0 %1437
    %vm1439 = vcmp.lt.s32.totalorder %v547, 98
    %v1440 = vsel %vm1439, %v1424, %v1432
    %v1441 = vsel %vm1439, %v1426, %v1434
    %v1442 = vsel %vm1439, %v1428, %v1436
    %v1443 = vsel %vm1439, %v1430, %v1438
    %v1444 = vsel %vm1439, %v1432, %v1424
    %v1445 = vsel %vm1439, %v1434, %v1426
    %v1446 = vsel %vm1439, %v1436, %v1428
    %v1447 = vsel %vm1439, %v1438, %v1430
    %s1448 = scalar_lea.vmem %s7, 6
    %v1449 = vld [vmem:[%s1448] ss:$8 sm:$0x3]
    %v1451 = vlaneseq
    %v1452 = vshrl.u32 %v1451, 7
    %v1453 = vsub.s32 0, %v1452
    %v1454 = vrot.slane %v1449, %v1453
    %v1455 = vlaneseq
    %v1456 = vshrl.u32 %v1455, 7
    %v1457 = vsub.s32 1, %v1456
    %v1458 = vrot.slane %v1449, %v1457
    %v1461 = vmul.f32 %v1440, %v1454
    %v1462 = vmul.f32 %v1444, %v1458
    %v1463 = vmul.f32 %v1441, %v1454
    %v1464 = vmul.f32 %v1445, %v1458
    %v1465 = vmul.f32 %v1442, %v1454
    %v1466 = vmul.f32 %v1446, %v1458
    %v1467 = vmul.f32 %v1443, %v1454
    %v1468 = vmul.f32 %v1447, %v1458
    %v1469 = vld [vmem:[%s3 + $0xc0] sm:$0xff]
    %v1470 = vld [vmem:[%s3 + $0xc8] sm:$0xff]
    %v1471 = vld [vmem:[%s3 + $0xd0] sm:$0xff]
    %v1472 = vld [vmem:[%s3 + $0xd8] sm:$0xff]
    %v1474 = vsel %vm90, %v1469, 0
    %v1477 = vsel %vm90, %v1470, 0
    %v1480 = vsel %vm90, %v1471, 0
    %v1483 = vsel %vm90, %v1472, 0
    %1485 = vmatprep.subr.mxu0 %v1462
    %1486 = vmatpush1.msra.mxu0 %v1461
    %1487 = vmatprep.subr.mxu0 %v1464
    %1488 = vmatpush1.msra.mxu0 %v1463
    %1489 = vmatprep.subr.mxu0 %v1466
    %1490 = vmatpush1.msra.mxu0 %v1465
    %1491 = vmatprep.subr.mxu0 %v1468
    %1492 = vmatpush1.msra.mxu0 %v1467
    %1493 = vmatprep.subr.mxu0 0.0
    %1494 = vmatpush1.msra.mxu0 0.0
    %1495 = vmatprep.subr.mxu0 0.0
    %1496 = vmatpush1.msra.mxu0 0.0
    %1497 = vmatprep.subr.mxu0 0.0
    %1498 = vmatpush1.msra.mxu0 0.0
    %1499 = vmatprep.subr.mxu0 0.0
    %1500 = vmatpush1.msra.mxu0 0.0
    %1501 = vmatprep.subr.mxu0 0.0
    %1502 = vmatpush1.msra.mxu0 0.0
    %1503 = vmatprep.subr.mxu0 0.0
    %1504 = vmatpush1.msra.mxu0 0.0
    %1505 = vmatprep.subr.mxu0 0.0
    %1506 = vmatpush1.msra.mxu0 0.0
    %1507 = vmatprep.subr.mxu0 0.0
    %1508 = vmatpush1.msra.mxu0 0.0
    %1509 = vmatprep.subr.mxu0 0.0
    %1510 = vmatpush1.msra.mxu0 0.0
    %1511 = vmatprep.subr.mxu0 0.0
    %1512 = vmatpush1.msra.mxu0 0.0
    %1513 = vmatprep.subr.mxu0 0.0
    %1514 = vmatpush1.msra.mxu0 0.0
    %1515 = vmatprep.subr.mxu0 0.0
    %1516 = vmatpush1.msra.mxu0 0.0
    %1517 = vmatprep.subr.mxu0 0.0
    %1518 = vmatpush1.msra.mxu0 0.0
    %1519 = vmatprep.subr.mxu0 0.0
    %1520 = vmatpush1.msra.mxu0 0.0
    %1521 = vmatprep.subr.mxu0 0.0
    %1522 = vmatpush1.msra.mxu0 0.0
    %1523 = vmatprep.subr.mxu0 0.0
    %1524 = vmatpush1.msra.mxu0 0.0
    %1525 = vmatprep.subr.mxu0 0.0
    %1526 = vmatpush1.msra.mxu0 0.0
    %1527 = vmatprep.subr.mxu0 0.0
    %1528 = vmatpush1.msra.mxu0 0.0
    %1529 = vmatprep.subr.mxu0 0.0
    %1530 = vmatpush1.msra.mxu0 0.0
    %1531 = vmatprep.subr.mxu0 0.0
    %1532 = vmatpush1.msra.mxu0 0.0
    %1533 = vmatprep.subr.mxu0 0.0
    %1534 = vmatpush1.msra.mxu0 0.0
    %1535 = vmatprep.subr.mxu0 0.0
    %1536 = vmatpush1.msra.mxu0 0.0
    %1537 = vmatprep.subr.mxu0 0.0
    %1538 = vmatpush1.msra.mxu0 0.0
    %1539 = vmatprep.subr.mxu0 0.0
    %1540 = vmatpush1.msra.mxu0 0.0
    %1541 = vmatprep.subr.mxu0 0.0
    %1542 = vmatpush1.msra.mxu0 0.0
    %1543 = vmatprep.subr.mxu0 0.0
    %1544 = vmatpush1.msra.mxu0 0.0
    %1545 = vmatprep.subr.mxu0 0.0
    %1546 = vmatpush1.msra.mxu0 0.0
    %1547 = vmatprep.subr.mxu0 0.0
    %1548 = vmatpush1.msra.mxu0 0.0
    %1549 = vmatprep.mubr.f32.mxu0 0.0
    %1550 = vmatmul.mubr.f32.gmra.mrb[0].mxu0 %v1474
    %v1551 = vpop.f32.mrb[0].mxu0
    %v1552 = vadd.f32 0.0, %v1551
    %v1553 = vpop.f32.mrb[0].mxu0
    %v1554 = vadd.f32 0.0, %v1553
    %1555 = vmatprep.mubr.f32.mxu0 0.0
    %1556 = vmatmul.mubr.f32.gmra.mrb[0].mxu0 %v1477
    %v1557 = vpop.f32.mrb[0].mxu0
    %v1558 = vadd.f32 0.0, %v1557
    %v1559 = vpop.f32.mrb[0].mxu0
    %v1560 = vadd.f32 0.0, %v1559
    %1561 = vmatprep.mubr.f32.mxu0 0.0
    %1562 = vmatmul.mubr.f32.gmra.mrb[0].mxu0 %v1480
    %v1563 = vpop.f32.mrb[0].mxu0
    %v1564 = vadd.f32 0.0, %v1563
    %v1565 = vpop.f32.mrb[0].mxu0
    %v1566 = vadd.f32 0.0, %v1565
    %1567 = vmatprep.mubr.f32.mxu0 0.0
    %1568 = vmatmul.mubr.f32.gmra.mrb[0].mxu0 %v1483
    %v1569 = vpop.f32.mrb[0].mxu0
    %v1570 = vadd.f32 0.0, %v1569
    %v1571 = vpop.f32.mrb[0].mxu0
    %v1572 = vadd.f32 0.0, %v1571
    %1573 = vdwg.mxu0
    %v1574 = vadd.f32 %v1415, %v1552
    %v1575 = vadd.f32 %v1416, %v1554
    %v1576 = vadd.f32 %v1417, %v1558
    %v1577 = vadd.f32 %v1418, %v1560
    %v1578 = vadd.f32 %v1419, %v1564
    %v1579 = vadd.f32 %v1420, %v1566
    %v1580 = vadd.f32 %v1421, %v1570
    %v1581 = vadd.f32 %v1422, %v1572
    %1582 = vrot.lane.b32.xlu0 %v522, 96
    %v1583 = vpop.permute.xlu0 %1582
    %1584 = vrot.lane.b32.xlu0 %v524, 96
    %v1585 = vpop.permute.xlu0 %1584
    %1586 = vrot.lane.b32.xlu0 %v526, 96
    %v1587 = vpop.permute.xlu0 %1586
    %1588 = vrot.lane.b32.xlu0 %v528, 96
    %v1589 = vpop.permute.xlu0 %1588
    %1590 = vrot.lane.b32.xlu0 %v523, 96
    %v1591 = vpop.permute.xlu0 %1590
    %1592 = vrot.lane.b32.xlu0 %v525, 96
    %v1593 = vpop.permute.xlu0 %1592
    %1594 = vrot.lane.b32.xlu0 %v527, 96
    %v1595 = vpop.permute.xlu0 %1594
    %1596 = vrot.lane.b32.xlu0 %v529, 96
    %v1597 = vpop.permute.xlu0 %1596
    %vm1598 = vcmp.lt.s32.totalorder %v547, 96
    %v1599 = vsel %vm1598, %v1583, %v1591
    %v1600 = vsel %vm1598, %v1585, %v1593
    %v1601 = vsel %vm1598, %v1587, %v1595
    %v1602 = vsel %vm1598, %v1589, %v1597
    %v1603 = vsel %vm1598, %v1591, %v1583
    %v1604 = vsel %vm1598, %v1593, %v1585
    %v1605 = vsel %vm1598, %v1595, %v1587
    %v1606 = vsel %vm1598, %v1597, %v1589
    %s1607 = scalar_lea.vmem %s7, 7
    %v1608 = vld [vmem:[%s1607] ss:$8 sm:$0x3]
    %v1610 = vlaneseq
    %v1611 = vshrl.u32 %v1610, 7
    %v1612 = vsub.s32 0, %v1611
    %v1613 = vrot.slane %v1608, %v1612
    %v1614 = vlaneseq
    %v1615 = vshrl.u32 %v1614, 7
    %v1616 = vsub.s32 1, %v1615
    %v1617 = vrot.slane %v1608, %v1616
    %v1620 = vmul.f32 %v1599, %v1613
    %v1621 = vmul.f32 %v1603, %v1617
    %v1622 = vmul.f32 %v1600, %v1613
    %v1623 = vmul.f32 %v1604, %v1617
    %v1624 = vmul.f32 %v1601, %v1613
    %v1625 = vmul.f32 %v1605, %v1617
    %v1626 = vmul.f32 %v1602, %v1613
    %v1627 = vmul.f32 %v1606, %v1617
    %v1628 = vld [vmem:[%s3 + $0xe0] sm:$0xff]
    %v1629 = vld [vmem:[%s3 + $0xe8] sm:$0xff]
    %v1630 = vld [vmem:[%s3 + $0xf0] sm:$0xff]
    %v1631 = vld [vmem:[%s3 + $0xf8] sm:$0xff]
    %v1633 = vsel %vm90, %v1628, 0
    %v1636 = vsel %vm90, %v1629, 0
    %v1639 = vsel %vm90, %v1630, 0
    %v1642 = vsel %vm90, %v1631, 0
    %1644 = vmatprep.subr.mxu0 %v1621
    %1645 = vmatpush1.msra.mxu0 %v1620
    %1646 = vmatprep.subr.mxu0 %v1623
    %1647 = vmatpush1.msra.mxu0 %v1622
    %1648 = vmatprep.subr.mxu0 %v1625
    %1649 = vmatpush1.msra.mxu0 %v1624
    %1650 = vmatprep.subr.mxu0 %v1627
    %1651 = vmatpush1.msra.mxu0 %v1626
    %1652 = vmatprep.subr.mxu0 0.0
    %1653 = vmatpush1.msra.mxu0 0.0
    %1654 = vmatprep.subr.mxu0 0.0
    %1655 = vmatpush1.msra.mxu0 0.0
    %1656 = vmatprep.subr.mxu0 0.0
    %1657 = vmatpush1.msra.mxu0 0.0
    %1658 = vmatprep.subr.mxu0 0.0
    %1659 = vmatpush1.msra.mxu0 0.0
    %1660 = vmatprep.subr.mxu0 0.0
    %1661 = vmatpush1.msra.mxu0 0.0
    %1662 = vmatprep.subr.mxu0 0.0
    %1663 = vmatpush1.msra.mxu0 0.0
    %1664 = vmatprep.subr.mxu0 0.0
    %1665 = vmatpush1.msra.mxu0 0.0
    %1666 = vmatprep.subr.mxu0 0.0
    %1667 = vmatpush1.msra.mxu0 0.0
    %1668 = vmatprep.subr.mxu0 0.0
    %1669 = vmatpush1.msra.mxu0 0.0
    %1670 = vmatprep.subr.mxu0 0.0
    %1671 = vmatpush1.msra.mxu0 0.0
    %1672 = vmatprep.subr.mxu0 0.0
    %1673 = vmatpush1.msra.mxu0 0.0
    %1674 = vmatprep.subr.mxu0 0.0
    %1675 = vmatpush1.msra.mxu0 0.0
    %1676 = vmatprep.subr.mxu0 0.0
    %1677 = vmatpush1.msra.mxu0 0.0
    %1678 = vmatprep.subr.mxu0 0.0
    %1679 = vmatpush1.msra.mxu0 0.0
    %1680 = vmatprep.subr.mxu0 0.0
    %1681 = vmatpush1.msra.mxu0 0.0
    %1682 = vmatprep.subr.mxu0 0.0
    %1683 = vmatpush1.msra.mxu0 0.0
    %1684 = vmatprep.subr.mxu0 0.0
    %1685 = vmatpush1.msra.mxu0 0.0
    %1686 = vmatprep.subr.mxu0 0.0
    %1687 = vmatpush1.msra.mxu0 0.0
    %1688 = vmatprep.subr.mxu0 0.0
    %1689 = vmatpush1.msra.mxu0 0.0
    %1690 = vmatprep.subr.mxu0 0.0
    %1691 = vmatpush1.msra.mxu0 0.0
    %1692 = vmatprep.subr.mxu0 0.0
    %1693 = vmatpush1.msra.mxu0 0.0
    %1694 = vmatprep.subr.mxu0 0.0
    %1695 = vmatpush1.msra.mxu0 0.0
    %1696 = vmatprep.subr.mxu0 0.0
    %1697 = vmatpush1.msra.mxu0 0.0
    %1698 = vmatprep.subr.mxu0 0.0
    %1699 = vmatpush1.msra.mxu0 0.0
    %1700 = vmatprep.subr.mxu0 0.0
    %1701 = vmatpush1.msra.mxu0 0.0
    %1702 = vmatprep.subr.mxu0 0.0
    %1703 = vmatpush1.msra.mxu0 0.0
    %1704 = vmatprep.subr.mxu0 0.0
    %1705 = vmatpush1.msra.mxu0 0.0
    %1706 = vmatprep.subr.mxu0 0.0
    %1707 = vmatpush1.msra.mxu0 0.0
    %1708 = vmatprep.mubr.f32.mxu0 0.0
    %1709 = vmatmul.mubr.f32.gmra.mrb[0].mxu0 %v1633
    %v1710 = vpop.f32.mrb[0].mxu0
    %v1711 = vadd.f32 0.0, %v1710
    %v1712 = vpop.f32.mrb[0].mxu0
    %v1713 = vadd.f32 0.0, %v1712
    %1714 = vmatprep.mubr.f32.mxu0 0.0
    %1715 = vmatmul.mubr.f32.gmra.mrb[0].mxu0 %v1636
    %v1716 = vpop.f32.mrb[0].mxu0
    %v1717 = vadd.f32 0.0, %v1716
    %v1718 = vpop.f32.mrb[0].mxu0
    %v1719 = vadd.f32 0.0, %v1718
    %1720 = vmatprep.mubr.f32.mxu0 0.0
    %1721 = vmatmul.mubr.f32.gmra.mrb[0].mxu0 %v1639
    %v1722 = vpop.f32.mrb[0].mxu0
    %v1723 = vadd.f32 0.0, %v1722
    %v1724 = vpop.f32.mrb[0].mxu0
    %v1725 = vadd.f32 0.0, %v1724
    %1726 = vmatprep.mubr.f32.mxu0 0.0
    %1727 = vmatmul.mubr.f32.gmra.mrb[0].mxu0 %v1642
    %v1728 = vpop.f32.mrb[0].mxu0
    %v1729 = vadd.f32 0.0, %v1728
    %v1730 = vpop.f32.mrb[0].mxu0
    %v1731 = vadd.f32 0.0, %v1730
    %1732 = vdwg.mxu0
    %v1733 = vadd.f32 %v1574, %v1711
    %v1734 = vadd.f32 %v1575, %v1713
    %v1735 = vadd.f32 %v1576, %v1717
    %v1736 = vadd.f32 %v1577, %v1719
    %v1737 = vadd.f32 %v1578, %v1723
    %v1738 = vadd.f32 %v1579, %v1725
    %v1739 = vadd.f32 %v1580, %v1729
    %v1740 = vadd.f32 %v1581, %v1731
    %1741 = vrot.lane.b32.xlu0 %v522, 94
    %v1742 = vpop.permute.xlu0 %1741
    %1743 = vrot.lane.b32.xlu0 %v524, 94
    %v1744 = vpop.permute.xlu0 %1743
    %1745 = vrot.lane.b32.xlu0 %v526, 94
    %v1746 = vpop.permute.xlu0 %1745
    %1747 = vrot.lane.b32.xlu0 %v528, 94
    %v1748 = vpop.permute.xlu0 %1747
    %1749 = vrot.lane.b32.xlu0 %v523, 94
    %v1750 = vpop.permute.xlu0 %1749
    %1751 = vrot.lane.b32.xlu0 %v525, 94
    %v1752 = vpop.permute.xlu0 %1751
    %1753 = vrot.lane.b32.xlu0 %v527, 94
    %v1754 = vpop.permute.xlu0 %1753
    %1755 = vrot.lane.b32.xlu0 %v529, 94
    %v1756 = vpop.permute.xlu0 %1755
    %vm1757 = vcmp.lt.s32.totalorder %v547, 94
    %v1758 = vsel %vm1757, %v1742, %v1750
    %v1759 = vsel %vm1757, %v1744, %v1752
    %v1760 = vsel %vm1757, %v1746, %v1754
    %v1761 = vsel %vm1757, %v1748, %v1756
    %v1762 = vsel %vm1757, %v1750, %v1742
    %v1763 = vsel %vm1757, %v1752, %v1744
    %v1764 = vsel %vm1757, %v1754, %v1746
    %v1765 = vsel %vm1757, %v1756, %v1748
    %s1766 = scalar_lea.vmem %s7, 16
    %v1767 = vld [vmem:[%s1766] ss:$8 sm:$0x3]
    %v1769 = vlaneseq
    %v1770 = vshrl.u32 %v1769, 7
    %v1771 = vsub.s32 0, %v1770
    %v1772 = vrot.slane %v1767, %v1771
    %v1773 = vlaneseq
    %v1774 = vshrl.u32 %v1773, 7
    %v1775 = vsub.s32 1, %v1774
    %v1776 = vrot.slane %v1767, %v1775
    %v1779 = vmul.f32 %v1758, %v1772
    %v1780 = vmul.f32 %v1762, %v1776
    %v1781 = vmul.f32 %v1759, %v1772
    %v1782 = vmul.f32 %v1763, %v1776
    %v1783 = vmul.f32 %v1760, %v1772
    %v1784 = vmul.f32 %v1764, %v1776
    %v1785 = vmul.f32 %v1761, %v1772
    %v1786 = vmul.f32 %v1765, %v1776
    %v1787 = vld [vmem:[%s3 + $0x100] sm:$0xff]
    %v1788 = vld [vmem:[%s3 + $0x108] sm:$0xff]
    %v1789 = vld [vmem:[%s3 + $0x110] sm:$0xff]
    %v1790 = vld [vmem:[%s3 + $0x118] sm:$0xff]
    %v1792 = vsel %vm90, %v1787, 0
    %v1795 = vsel %vm90, %v1788, 0
    %v1798 = vsel %vm90, %v1789, 0
    %v1801 = vsel %vm90, %v1790, 0
    %1803 = vmatprep.subr.mxu0 %v1780
    %1804 = vmatpush1.msra.mxu0 %v1779
    %1805 = vmatprep.subr.mxu0 %v1782
    %1806 = vmatpush1.msra.mxu0 %v1781
    %1807 = vmatprep.subr.mxu0 %v1784
    %1808 = vmatpush1.msra.mxu0 %v1783
    %1809 = vmatprep.subr.mxu0 %v1786
    %1810 = vmatpush1.msra.mxu0 %v1785
    %1811 = vmatprep.subr.mxu0 0.0
    %1812 = vmatpush1.msra.mxu0 0.0
    %1813 = vmatprep.subr.mxu0 0.0
    %1814 = vmatpush1.msra.mxu0 0.0
    %1815 = vmatprep.subr.mxu0 0.0
    %1816 = vmatpush1.msra.mxu0 0.0
    %1817 = vmatprep.subr.mxu0 0.0
    %1818 = vmatpush1.msra.mxu0 0.0
    %1819 = vmatprep.subr.mxu0 0.0
    %1820 = vmatpush1.msra.mxu0 0.0
    %1821 = vmatprep.subr.mxu0 0.0
    %1822 = vmatpush1.msra.mxu0 0.0
    %1823 = vmatprep.subr.mxu0 0.0
    %1824 = vmatpush1.msra.mxu0 0.0
    %1825 = vmatprep.subr.mxu0 0.0
    %1826 = vmatpush1.msra.mxu0 0.0
    %1827 = vmatprep.subr.mxu0 0.0
    %1828 = vmatpush1.msra.mxu0 0.0
    %1829 = vmatprep.subr.mxu0 0.0
    %1830 = vmatpush1.msra.mxu0 0.0
    %1831 = vmatprep.subr.mxu0 0.0
    %1832 = vmatpush1.msra.mxu0 0.0
    %1833 = vmatprep.subr.mxu0 0.0
    %1834 = vmatpush1.msra.mxu0 0.0
    %1835 = vmatprep.subr.mxu0 0.0
    %1836 = vmatpush1.msra.mxu0 0.0
    %1837 = vmatprep.subr.mxu0 0.0
    %1838 = vmatpush1.msra.mxu0 0.0
    %1839 = vmatprep.subr.mxu0 0.0
    %1840 = vmatpush1.msra.mxu0 0.0
    %1841 = vmatprep.subr.mxu0 0.0
    %1842 = vmatpush1.msra.mxu0 0.0
    %1843 = vmatprep.subr.mxu0 0.0
    %1844 = vmatpush1.msra.mxu0 0.0
    %1845 = vmatprep.subr.mxu0 0.0
    %1846 = vmatpush1.msra.mxu0 0.0
    %1847 = vmatprep.subr.mxu0 0.0
    %1848 = vmatpush1.msra.mxu0 0.0
    %1849 = vmatprep.subr.mxu0 0.0
    %1850 = vmatpush1.msra.mxu0 0.0
    %1851 = vmatprep.subr.mxu0 0.0
    %1852 = vmatpush1.msra.mxu0 0.0
    %1853 = vmatprep.subr.mxu0 0.0
    %1854 = vmatpush1.msra.mxu0 0.0
    %1855 = vmatprep.subr.mxu0 0.0
    %1856 = vmatpush1.msra.mxu0 0.0
    %1857 = vmatprep.subr.mxu0 0.0
    %1858 = vmatpush1.msra.mxu0 0.0
    %1859 = vmatprep.subr.mxu0 0.0
    %1860 = vmatpush1.msra.mxu0 0.0
    %1861 = vmatprep.subr.mxu0 0.0
    %1862 = vmatpush1.msra.mxu0 0.0
    %1863 = vmatprep.subr.mxu0 0.0
    %1864 = vmatpush1.msra.mxu0 0.0
    %1865 = vmatprep.subr.mxu0 0.0
    %1866 = vmatpush1.msra.mxu0 0.0
    %1867 = vmatprep.mubr.f32.mxu0 0.0
    %1868 = vmatmul.mubr.f32.gmra.mrb[0].mxu0 %v1792
    %v1869 = vpop.f32.mrb[0].mxu0
    %v1870 = vadd.f32 0.0, %v1869
    %v1871 = vpop.f32.mrb[0].mxu0
    %v1872 = vadd.f32 0.0, %v1871
    %1873 = vmatprep.mubr.f32.mxu0 0.0
    %1874 = vmatmul.mubr.f32.gmra.mrb[0].mxu0 %v1795
    %v1875 = vpop.f32.mrb[0].mxu0
    %v1876 = vadd.f32 0.0, %v1875
    %v1877 = vpop.f32.mrb[0].mxu0
    %v1878 = vadd.f32 0.0, %v1877
    %1879 = vmatprep.mubr.f32.mxu0 0.0
    %1880 = vmatmul.mubr.f32.gmra.mrb[0].mxu0 %v1798
    %v1881 = vpop.f32.mrb[0].mxu0
    %v1882 = vadd.f32 0.0, %v1881
    %v1883 = vpop.f32.mrb[0].mxu0
    %v1884 = vadd.f32 0.0, %v1883
    %1885 = vmatprep.mubr.f32.mxu0 0.0
    %1886 = vmatmul.mubr.f32.gmra.mrb[0].mxu0 %v1801
    %v1887 = vpop.f32.mrb[0].mxu0
    %v1888 = vadd.f32 0.0, %v1887
    %v1889 = vpop.f32.mrb[0].mxu0
    %v1890 = vadd.f32 0.0, %v1889
    %1891 = vdwg.mxu0
    %v1892 = vadd.f32 %v1733, %v1870
    %v1893 = vadd.f32 %v1734, %v1872
    %v1894 = vadd.f32 %v1735, %v1876
    %v1895 = vadd.f32 %v1736, %v1878
    %v1896 = vadd.f32 %v1737, %v1882
    %v1897 = vadd.f32 %v1738, %v1884
    %v1898 = vadd.f32 %v1739, %v1888
    %v1899 = vadd.f32 %v1740, %v1890
    %1901 = vset.pattern.permute.xlu0 0
    %1902 = vperm.xlu0 %1901, %v46
    %v1903 = vpop.permute.xlu0 %1902
    %1906 = vset.pattern.permute.xlu0 0
    %1907 = vperm.xlu0 %1906, %v47
    %v1908 = vpop.permute.xlu0 %1907
    %1911 = vset.pattern.permute.xlu0 0
    %1912 = vperm.xlu0 %1911, %v48
    %v1913 = vpop.permute.xlu0 %1912
    %1916 = vset.pattern.permute.xlu0 0
    %1917 = vperm.xlu0 %1916, %v49
    %v1918 = vpop.permute.xlu0 %1917
    %v1920 = vadd.f32 %v1892, %v1903
    %v1921 = vadd.f32 %v1893, %v1903
    %v1922 = vadd.f32 %v1894, %v1908
    %v1923 = vadd.f32 %v1895, %v1908
    %v1924 = vadd.f32 %v1896, %v1913
    %v1925 = vadd.f32 %v1897, %v1913
    %v1926 = vadd.f32 %v1898, %v1918
    %v1927 = vadd.f32 %v1899, %v1918
    %v1928 = vadd.f32 %v1920, %v1921
    %1929 = vadd.xlane.f32.xlu0 %v1928
    %v1930 = vpop.xlane.xlu0 %1929
    %v1931 = vadd.f32 %v1922, %v1923
    %1932 = vadd.xlane.f32.xlu0 %v1931
    %v1933 = vpop.xlane.xlu0 %1932
    %v1934 = vadd.f32 %v1924, %v1925
    %1935 = vadd.xlane.f32.xlu0 %v1934
    %v1936 = vpop.xlane.xlu0 %1935
    %v1937 = vadd.f32 %v1926, %v1927
    %1938 = vadd.xlane.f32.xlu0 %v1937
    %v1939 = vpop.xlane.xlu0 %1938
    %v1940 = vmul.f32 %v1920, %v1920
    %v1941 = vmul.f32 %v1921, %v1921
    %v1942 = vmul.f32 %v1922, %v1922
    %v1943 = vmul.f32 %v1923, %v1923
    %v1944 = vmul.f32 %v1924, %v1924
    %v1945 = vmul.f32 %v1925, %v1925
    %v1946 = vmul.f32 %v1926, %v1926
    %v1947 = vmul.f32 %v1927, %v1927
    %v1948 = vadd.f32 %v1940, %v1941
    %1949 = vadd.xlane.f32.xlu0 %v1948
    %v1950 = vpop.xlane.xlu0 %1949
    %v1951 = vadd.f32 %v1942, %v1943
    %1952 = vadd.xlane.f32.xlu0 %v1951
    %v1953 = vpop.xlane.xlu0 %1952
    %v1954 = vadd.f32 %v1944, %v1945
    %1955 = vadd.xlane.f32.xlu0 %v1954
    %v1956 = vpop.xlane.xlu0 %1955
    %v1957 = vadd.f32 %v1946, %v1947
    %1958 = vadd.xlane.f32.xlu0 %v1957
    %v1959 = vpop.xlane.xlu0 %1958
    %1960 = vmatprep.subr.mxu0 0.0
    %1961 = vmatpush1.msra.mxu0 %v1930
    %1962 = vmatprep.subr.mxu0 0.0
    %1963 = vmatpush1.msra.mxu0 %v1933
    %1964 = vmatprep.subr.mxu0 0.0
    %1965 = vmatpush1.msra.mxu0 %v1936
    %1966 = vmatprep.subr.mxu0 0.0
    %1967 = vmatpush1.msra.mxu0 %v1939
    %1968 = vmatprep.subr.mxu0 0.0
    %1969 = vmatpush1.msra.mxu0 0.0
    %1970 = vmatprep.subr.mxu0 0.0
    %1971 = vmatpush1.msra.mxu0 0.0
    %1972 = vmatprep.subr.mxu0 0.0
    %1973 = vmatpush1.msra.mxu0 0.0
    %1974 = vmatprep.subr.mxu0 0.0
    %1975 = vmatpush1.msra.mxu0 0.0
    %1976 = vmatprep.subr.mxu0 0.0
    %1977 = vmatpush1.msra.mxu0 0.0
    %1978 = vmatprep.subr.mxu0 0.0
    %1979 = vmatpush1.msra.mxu0 0.0
    %1980 = vmatprep.subr.mxu0 0.0
    %1981 = vmatpush1.msra.mxu0 0.0
    %1982 = vmatprep.subr.mxu0 0.0
    %1983 = vmatpush1.msra.mxu0 0.0
    %1984 = vmatprep.subr.mxu0 0.0
    %1985 = vmatpush1.msra.mxu0 0.0
    %1986 = vmatprep.subr.mxu0 0.0
    %1987 = vmatpush1.msra.mxu0 0.0
    %1988 = vmatprep.subr.mxu0 0.0
    %1989 = vmatpush1.msra.mxu0 0.0
    %1990 = vmatprep.subr.mxu0 0.0
    %1991 = vmatpush1.msra.mxu0 0.0
    %1992 = vmatprep.subr.mxu0 0.0
    %1993 = vmatpush1.msra.mxu0 0.0
    %1994 = vmatprep.subr.mxu0 0.0
    %1995 = vmatpush1.msra.mxu0 0.0
    %1996 = vmatprep.subr.mxu0 0.0
    %1997 = vmatpush1.msra.mxu0 0.0
    %1998 = vmatprep.subr.mxu0 0.0
    %1999 = vmatpush1.msra.mxu0 0.0
    %2000 = vmatprep.subr.mxu0 0.0
    %2001 = vmatpush1.msra.mxu0 0.0
    %2002 = vmatprep.subr.mxu0 0.0
    %2003 = vmatpush1.msra.mxu0 0.0
    %2004 = vmatprep.subr.mxu0 0.0
    %2005 = vmatpush1.msra.mxu0 0.0
    %2006 = vmatprep.subr.mxu0 0.0
    %2007 = vmatpush1.msra.mxu0 0.0
    %2008 = vmatprep.subr.mxu0 0.0
    %2009 = vmatpush1.msra.mxu0 0.0
    %2010 = vmatprep.subr.mxu0 0.0
    %2011 = vmatpush1.msra.mxu0 0.0
    %2012 = vmatprep.subr.mxu0 0.0
    %2013 = vmatpush1.msra.mxu0 0.0
    %2014 = vmatprep.subr.mxu0 0.0
    %2015 = vmatpush1.msra.mxu0 0.0
    %2016 = vmatprep.subr.mxu0 0.0
    %2017 = vmatpush1.msra.mxu0 0.0
    %2018 = vmatprep.subr.mxu0 0.0
    %2019 = vmatpush1.msra.mxu0 0.0
    %2020 = vmatprep.subr.mxu0 0.0
    %2021 = vmatpush1.msra.mxu0 0.0
    %2022 = vmatprep.subr.mxu0 0.0
    %2023 = vmatpush1.msra.mxu0 0.0
    %2024 = vmatprep.mubr.f32.mxu0 0.0
    %2025 = vmatmul.mubr.f32.gmra.mrb[0].mxu0 %v225
    %v2026 = vpop.f32.mrb[0].mxu0
    %v2027 = vadd.f32 0.0, %v2026
    %v2028 = vpop.f32.mrb[0].mxu0
    %2029 = vmatprep.mubr.f32.mxu0 0.0
    %2030 = vmatmul.mubr.f32.gmra.mrb[0].mxu0 %v228
    %v2031 = vpop.f32.mrb[0].mxu0
    %v2032 = vadd.f32 0.0, %v2031
    %v2033 = vpop.f32.mrb[0].mxu0
    %2034 = vmatprep.mubr.f32.mxu0 0.0
    %2035 = vmatmul.mubr.f32.gmra.mrb[0].mxu0 %v231
    %v2036 = vpop.f32.mrb[0].mxu0
    %v2037 = vadd.f32 0.0, %v2036
    %v2038 = vpop.f32.mrb[0].mxu0
    %2039 = vmatprep.mubr.f32.mxu0 0.0
    %2040 = vmatmul.mubr.f32.gmra.mrb[0].mxu0 %v234
    %v2041 = vpop.f32.mrb[0].mxu0
    %v2042 = vadd.f32 0.0, %v2041
    %v2043 = vpop.f32.mrb[0].mxu0
    %2044 = vdwg.mxu0
    %2045 = vmatprep.subr.mxu0 0.0
    %2046 = vmatpush1.msra.mxu0 %v1950
    %2047 = vmatprep.subr.mxu0 0.0
    %2048 = vmatpush1.msra.mxu0 %v1953
    %2049 = vmatprep.subr.mxu0 0.0
    %2050 = vmatpush1.msra.mxu0 %v1956
    %2051 = vmatprep.subr.mxu0 0.0
    %2052 = vmatpush1.msra.mxu0 %v1959
    %2053 = vmatprep.subr.mxu0 0.0
    %2054 = vmatpush1.msra.mxu0 0.0
    %2055 = vmatprep.subr.mxu0 0.0
    %2056 = vmatpush1.msra.mxu0 0.0
    %2057 = vmatprep.subr.mxu0 0.0
    %2058 = vmatpush1.msra.mxu0 0.0
    %2059 = vmatprep.subr.mxu0 0.0
    %2060 = vmatpush1.msra.mxu0 0.0
    %2061 = vmatprep.subr.mxu0 0.0
    %2062 = vmatpush1.msra.mxu0 0.0
    %2063 = vmatprep.subr.mxu0 0.0
    %2064 = vmatpush1.msra.mxu0 0.0
    %2065 = vmatprep.subr.mxu0 0.0
    %2066 = vmatpush1.msra.mxu0 0.0
    %2067 = vmatprep.subr.mxu0 0.0
    %2068 = vmatpush1.msra.mxu0 0.0
    %2069 = vmatprep.subr.mxu0 0.0
    %2070 = vmatpush1.msra.mxu0 0.0
    %2071 = vmatprep.subr.mxu0 0.0
    %2072 = vmatpush1.msra.mxu0 0.0
    %2073 = vmatprep.subr.mxu0 0.0
    %2074 = vmatpush1.msra.mxu0 0.0
    %2075 = vmatprep.subr.mxu0 0.0
    %2076 = vmatpush1.msra.mxu0 0.0
    %2077 = vmatprep.subr.mxu0 0.0
    %2078 = vmatpush1.msra.mxu0 0.0
    %2079 = vmatprep.subr.mxu0 0.0
    %2080 = vmatpush1.msra.mxu0 0.0
    %2081 = vmatprep.subr.mxu0 0.0
    %2082 = vmatpush1.msra.mxu0 0.0
    %2083 = vmatprep.subr.mxu0 0.0
    %2084 = vmatpush1.msra.mxu0 0.0
    %2085 = vmatprep.subr.mxu0 0.0
    %2086 = vmatpush1.msra.mxu0 0.0
    %2087 = vmatprep.subr.mxu0 0.0
    %2088 = vmatpush1.msra.mxu0 0.0
    %2089 = vmatprep.subr.mxu0 0.0
    %2090 = vmatpush1.msra.mxu0 0.0
    %2091 = vmatprep.subr.mxu0 0.0
    %2092 = vmatpush1.msra.mxu0 0.0
    %2093 = vmatprep.subr.mxu0 0.0
    %2094 = vmatpush1.msra.mxu0 0.0
    %2095 = vmatprep.subr.mxu0 0.0
    %2096 = vmatpush1.msra.mxu0 0.0
    %2097 = vmatprep.subr.mxu0 0.0
    %2098 = vmatpush1.msra.mxu0 0.0
    %2099 = vmatprep.subr.mxu0 0.0
    %2100 = vmatpush1.msra.mxu0 0.0
    %2101 = vmatprep.subr.mxu0 0.0
    %2102 = vmatpush1.msra.mxu0 0.0
    %2103 = vmatprep.subr.mxu0 0.0
    %2104 = vmatpush1.msra.mxu0 0.0
    %2105 = vmatprep.subr.mxu0 0.0
    %2106 = vmatpush1.msra.mxu0 0.0
    %2107 = vmatprep.subr.mxu0 0.0
    %2108 = vmatpush1.msra.mxu0 0.0
    %2109 = vmatprep.mubr.f32.mxu0 0.0
    %2110 = vmatmul.mubr.f32.gmra.mrb[0].mxu0 %v225
    %v2111 = vpop.f32.mrb[0].mxu0
    %v2112 = vadd.f32 0.0, %v2111
    %v2113 = vpop.f32.mrb[0].mxu0
    %2114 = vmatprep.mubr.f32.mxu0 0.0
    %2115 = vmatmul.mubr.f32.gmra.mrb[0].mxu0 %v228
    %v2116 = vpop.f32.mrb[0].mxu0
    %v2117 = vadd.f32 0.0, %v2116
    %v2118 = vpop.f32.mrb[0].mxu0
    %2119 = vmatprep.mubr.f32.mxu0 0.0
    %2120 = vmatmul.mubr.f32.gmra.mrb[0].mxu0 %v231
    %v2121 = vpop.f32.mrb[0].mxu0
    %v2122 = vadd.f32 0.0, %v2121
    %v2123 = vpop.f32.mrb[0].mxu0
    %2124 = vmatprep.mubr.f32.mxu0 0.0
    %2125 = vmatmul.mubr.f32.gmra.mrb[0].mxu0 %v234
    %v2126 = vpop.f32.mrb[0].mxu0
    %v2127 = vadd.f32 0.0, %v2126
    %v2128 = vpop.f32.mrb[0].mxu0
    %2129 = vdwg.mxu0
    %v2130 = vmul.f32 %v2027, %v2027
    %v2131 = vmul.f32 %v2032, %v2032
    %v2132 = vmul.f32 %v2037, %v2037
    %v2133 = vmul.f32 %v2042, %v2042
    %v2134 = vsub.f32 %v2112, %v2130
    %v2135 = vsub.f32 %v2117, %v2131
    %v2136 = vsub.f32 %v2122, %v2132
    %v2137 = vsub.f32 %v2127, %v2133
    %v2138 = vmax.f32 %v2134, 0.0
    %v2139 = vmax.f32 %v2135, 0.0
    %v2140 = vmax.f32 %v2136, 0.0
    %v2141 = vmax.f32 %v2137, 0.0
    %v2142 = vadd.f32 %v2138, 1e-05
    %v2143 = vadd.f32 %v2139, 1e-05
    %v2144 = vadd.f32 %v2140, 1e-05
    %v2145 = vadd.f32 %v2141, 1e-05
    %v2146 = vrsqrt.pop %v2142
    %v2147 = vrsqrt.pop %v2143
    %v2148 = vrsqrt.pop %v2144
    %v2149 = vrsqrt.pop %v2145
    %2151 = vset.pattern.permute.xlu0 0
    %2152 = vperm.xlu0 %2151, %v2027
    %v2153 = vpop.permute.xlu0 %2152
    %2156 = vset.pattern.permute.xlu0 0
    %2157 = vperm.xlu0 %2156, %v2032
    %v2158 = vpop.permute.xlu0 %2157
    %2161 = vset.pattern.permute.xlu0 0
    %2162 = vperm.xlu0 %2161, %v2037
    %v2163 = vpop.permute.xlu0 %2162
    %2166 = vset.pattern.permute.xlu0 0
    %2167 = vperm.xlu0 %2166, %v2042
    %v2168 = vpop.permute.xlu0 %2167
    %v2170 = vsub.f32 %v1920, %v2153
    %v2171 = vsub.f32 %v1921, %v2153
    %v2172 = vsub.f32 %v1922, %v2158
    %v2173 = vsub.f32 %v1923, %v2158
    %v2174 = vsub.f32 %v1924, %v2163
    %v2175 = vsub.f32 %v1925, %v2163
    %v2176 = vsub.f32 %v1926, %v2168
    %v2177 = vsub.f32 %v1927, %v2168
    %v2178 = vmul.f32 %v2146, %v50
    %v2179 = vmul.f32 %v2147, %v51
    %v2180 = vmul.f32 %v2148, %v52
    %v2181 = vmul.f32 %v2149, %v53
    %2183 = vset.pattern.permute.xlu0 0
    %2184 = vperm.xlu0 %2183, %v2178
    %v2185 = vpop.permute.xlu0 %2184
    %2188 = vset.pattern.permute.xlu0 0
    %2189 = vperm.xlu0 %2188, %v2179
    %v2190 = vpop.permute.xlu0 %2189
    %2193 = vset.pattern.permute.xlu0 0
    %2194 = vperm.xlu0 %2193, %v2180
    %v2195 = vpop.permute.xlu0 %2194
    %2198 = vset.pattern.permute.xlu0 0
    %2199 = vperm.xlu0 %2198, %v2181
    %v2200 = vpop.permute.xlu0 %2199
    %v2202 = vmul.f32 %v2170, %v2185
    %v2203 = vmul.f32 %v2171, %v2185
    %v2204 = vmul.f32 %v2172, %v2190
    %v2205 = vmul.f32 %v2173, %v2190
    %v2206 = vmul.f32 %v2174, %v2195
    %v2207 = vmul.f32 %v2175, %v2195
    %v2208 = vmul.f32 %v2176, %v2200
    %v2209 = vmul.f32 %v2177, %v2200
    %2211 = vset.pattern.permute.xlu0 0
    %2212 = vperm.xlu0 %2211, %v54
    %v2213 = vpop.permute.xlu0 %2212
    %2216 = vset.pattern.permute.xlu0 0
    %2217 = vperm.xlu0 %2216, %v55
    %v2218 = vpop.permute.xlu0 %2217
    %2221 = vset.pattern.permute.xlu0 0
    %2222 = vperm.xlu0 %2221, %v56
    %v2223 = vpop.permute.xlu0 %2222
    %2226 = vset.pattern.permute.xlu0 0
    %2227 = vperm.xlu0 %2226, %v57
    %v2228 = vpop.permute.xlu0 %2227
    %v2230 = vadd.f32 %v2202, %v2213
    %v2231 = vadd.f32 %v2203, %v2213
    %v2232 = vadd.f32 %v2204, %v2218
    %v2233 = vadd.f32 %v2205, %v2218
    %v2234 = vadd.f32 %v2206, %v2223
    %v2235 = vadd.f32 %v2207, %v2223
    %v2236 = vadd.f32 %v2208, %v2228
    %v2237 = vadd.f32 %v2209, %v2228
    %v2238 = vmul.f32 %v2230, 0.05
    %v2239 = vmul.f32 %v2231, 0.05
    %v2240 = vmul.f32 %v2232, 0.05
    %v2241 = vmul.f32 %v2233, 0.05
    %v2242 = vmul.f32 %v2234, 0.05
    %v2243 = vmul.f32 %v2235, 0.05
    %v2244 = vmul.f32 %v2236, 0.05
    %v2245 = vmul.f32 %v2237, 0.05
    %v2246 = vmax.f32 %v2230, %v2238
    %v2247 = vmax.f32 %v2231, %v2239
    %v2248 = vmax.f32 %v2232, %v2240
    %v2249 = vmax.f32 %v2233, %v2241
    %v2250 = vmax.f32 %v2234, %v2242
    %v2251 = vmax.f32 %v2235, %v2243
    %v2252 = vmax.f32 %v2236, %v2244
    %v2253 = vmax.f32 %v2237, %v2245
    %v2254 = vld [vmem:[%s4] sm:$0xff]
    %v2255 = vld [vmem:[%s4 + $0x8] sm:$0xff]
    %v2256 = vld [vmem:[%s4 + $0x10] sm:$0xff]
    %v2257 = vld [vmem:[%s4 + $0x18] sm:$0xff]
    %v2258 = vld [vmem:[%s6] sm:$0xff]
    %v2259 = vld [vmem:[%s6 + $0x8] sm:$0xff]
    %v2260 = vld [vmem:[%s6 + $0x10] sm:$0xff]
    %v2261 = vld [vmem:[%s6 + $0x18] sm:$0xff]
    %2263 = vset.pattern.permute.xlu0 0
    %2264 = vperm.xlu0 %2263, %v2258
    %v2265 = vpop.permute.xlu0 %2264
    %2268 = vset.pattern.permute.xlu0 0
    %2269 = vperm.xlu0 %2268, %v2259
    %v2270 = vpop.permute.xlu0 %2269
    %2273 = vset.pattern.permute.xlu0 0
    %2274 = vperm.xlu0 %2273, %v2260
    %v2275 = vpop.permute.xlu0 %2274
    %2278 = vset.pattern.permute.xlu0 0
    %2279 = vperm.xlu0 %2278, %v2261
    %v2280 = vpop.permute.xlu0 %2279
    %v2283 = vsel %vm90, %v2254, 0
    %v2286 = vsel %vm90, %v2255, 0
    %v2289 = vsel %vm90, %v2256, 0
    %v2292 = vsel %vm90, %v2257, 0
    %2294 = vmatprep.subr.mxu0 %v2247
    %2295 = vmatpush1.msra.mxu0 %v2246
    %2296 = vmatprep.subr.mxu0 %v2249
    %2297 = vmatpush1.msra.mxu0 %v2248
    %2298 = vmatprep.subr.mxu0 %v2251
    %2299 = vmatpush1.msra.mxu0 %v2250
    %2300 = vmatprep.subr.mxu0 %v2253
    %2301 = vmatpush1.msra.mxu0 %v2252
    %2302 = vmatprep.subr.mxu0 0.0
    %2303 = vmatpush1.msra.mxu0 0.0
    %2304 = vmatprep.subr.mxu0 0.0
    %2305 = vmatpush1.msra.mxu0 0.0
    %2306 = vmatprep.subr.mxu0 0.0
    %2307 = vmatpush1.msra.mxu0 0.0
    %2308 = vmatprep.subr.mxu0 0.0
    %2309 = vmatpush1.msra.mxu0 0.0
    %2310 = vmatprep.subr.mxu0 0.0
    %2311 = vmatpush1.msra.mxu0 0.0
    %2312 = vmatprep.subr.mxu0 0.0
    %2313 = vmatpush1.msra.mxu0 0.0
    %2314 = vmatprep.subr.mxu0 0.0
    %2315 = vmatpush1.msra.mxu0 0.0
    %2316 = vmatprep.subr.mxu0 0.0
    %2317 = vmatpush1.msra.mxu0 0.0
    %2318 = vmatprep.subr.mxu0 0.0
    %2319 = vmatpush1.msra.mxu0 0.0
    %2320 = vmatprep.subr.mxu0 0.0
    %2321 = vmatpush1.msra.mxu0 0.0
    %2322 = vmatprep.subr.mxu0 0.0
    %2323 = vmatpush1.msra.mxu0 0.0
    %2324 = vmatprep.subr.mxu0 0.0
    %2325 = vmatpush1.msra.mxu0 0.0
    %2326 = vmatprep.subr.mxu0 0.0
    %2327 = vmatpush1.msra.mxu0 0.0
    %2328 = vmatprep.subr.mxu0 0.0
    %2329 = vmatpush1.msra.mxu0 0.0
    %2330 = vmatprep.subr.mxu0 0.0
    %2331 = vmatpush1.msra.mxu0 0.0
    %2332 = vmatprep.subr.mxu0 0.0
    %2333 = vmatpush1.msra.mxu0 0.0
    %2334 = vmatprep.subr.mxu0 0.0
    %2335 = vmatpush1.msra.mxu0 0.0
    %2336 = vmatprep.subr.mxu0 0.0
    %2337 = vmatpush1.msra.mxu0 0.0
    %2338 = vmatprep.subr.mxu0 0.0
    %2339 = vmatpush1.msra.mxu0 0.0
    %2340 = vmatprep.subr.mxu0 0.0
    %2341 = vmatpush1.msra.mxu0 0.0
    %2342 = vmatprep.subr.mxu0 0.0
    %2343 = vmatpush1.msra.mxu0 0.0
    %2344 = vmatprep.subr.mxu0 0.0
    %2345 = vmatpush1.msra.mxu0 0.0
    %2346 = vmatprep.subr.mxu0 0.0
    %2347 = vmatpush1.msra.mxu0 0.0
    %2348 = vmatprep.subr.mxu0 0.0
    %2349 = vmatpush1.msra.mxu0 0.0
    %2350 = vmatprep.subr.mxu0 0.0
    %2351 = vmatpush1.msra.mxu0 0.0
    %2352 = vmatprep.subr.mxu0 0.0
    %2353 = vmatpush1.msra.mxu0 0.0
    %2354 = vmatprep.subr.mxu0 0.0
    %2355 = vmatpush1.msra.mxu0 0.0
    %2356 = vmatprep.subr.mxu0 0.0
    %2357 = vmatpush1.msra.mxu0 0.0
    %2358 = vmatprep.mubr.f32.mxu0 0.0
    %2359 = vmatmul.mubr.f32.gmra.mrb[0].mxu0 %v2283
    %v2360 = vpop.f32.mrb[0].mxu0
    %v2361 = vadd.f32 %v2265, %v2360
    %v2362 = vpop.f32.mrb[0].mxu0
    %v2363 = vadd.f32 %v2265, %v2362
    %2364 = vmatprep.mubr.f32.mxu0 0.0
    %2365 = vmatmul.mubr.f32.gmra.mrb[0].mxu0 %v2286
    %v2366 = vpop.f32.mrb[0].mxu0
    %v2367 = vadd.f32 %v2270, %v2366
    %v2368 = vpop.f32.mrb[0].mxu0
    %v2369 = vadd.f32 %v2270, %v2368
    %2370 = vmatprep.mubr.f32.mxu0 0.0
    %2371 = vmatmul.mubr.f32.gmra.mrb[0].mxu0 %v2289
    %v2372 = vpop.f32.mrb[0].mxu0
    %v2373 = vadd.f32 %v2275, %v2372
    %v2374 = vpop.f32.mrb[0].mxu0
    %v2375 = vadd.f32 %v2275, %v2374
    %2376 = vmatprep.mubr.f32.mxu0 0.0
    %2377 = vmatmul.mubr.f32.gmra.mrb[0].mxu0 %v2292
    %v2378 = vpop.f32.mrb[0].mxu0
    %v2379 = vadd.f32 %v2280, %v2378
    %v2380 = vpop.f32.mrb[0].mxu0
    %v2381 = vadd.f32 %v2280, %v2380
    %2382 = vdwg.mxu0
    %2383 = vst [vmem:[#allocation2] sm:$0xff] %v2361
    %2384 = vst [vmem:[#allocation2 + $0x8] sm:$0xff] %v2363
    %2385 = vst [vmem:[#allocation2 + $0x10] sm:$0xff] %v2367
    %2386 = vst [vmem:[#allocation2 + $0x18] sm:$0xff] %v2369
    %2387 = vst [vmem:[#allocation2 + $0x20] sm:$0xff] %v2373
    %2388 = vst [vmem:[#allocation2 + $0x28] sm:$0xff] %v2375
    %2389 = vst [vmem:[#allocation2 + $0x30] sm:$0xff] %v2379
    %2390 = vst [vmem:[#allocation2 + $0x38] sm:$0xff] %v2381
    %s2391 = scalar_lea.vmem %s0, 64
    %v2392 = vld [vmem:[%s2391] sm:$0xff]
    %v2393 = vld [vmem:[%s2391 + $0x8] sm:$0xff]
    %v2394 = vld [vmem:[%s2391 + $0x10] sm:$0xff]
    %v2395 = vld [vmem:[%s2391 + $0x18] sm:$0xff]
    %v2396 = vld [vmem:[%s2391 + $0x20] sm:$0xff]
    %v2397 = vld [vmem:[%s2391 + $0x28] sm:$0xff]
    %v2398 = vld [vmem:[%s2391 + $0x30] sm:$0xff]
    %v2399 = vld [vmem:[%s2391 + $0x38] sm:$0xff]
    %v2400 = vld [vmem:[%s1] sm:$0xff]
    %v2401 = vld [vmem:[%s1 + $0x8] sm:$0xff]
    %v2402 = vld [vmem:[%s1 + $0x10] sm:$0xff]
    %v2403 = vld [vmem:[%s1 + $0x18] sm:$0xff]
    %v2405 = vsel %vm90, %v2400, 0
    %v2408 = vsel %vm90, %v2401, 0
    %v2411 = vsel %vm90, %v2402, 0
    %v2414 = vsel %vm90, %v2403, 0
    %2416 = vmatprep.subr.mxu0 %v2393
    %2417 = vmatpush1.msra.mxu0 %v2392
    %2418 = vmatprep.subr.mxu0 %v2395
    %2419 = vmatpush1.msra.mxu0 %v2394
    %2420 = vmatprep.subr.mxu0 %v2397
    %2421 = vmatpush1.msra.mxu0 %v2396
    %2422 = vmatprep.subr.mxu0 %v2399
    %2423 = vmatpush1.msra.mxu0 %v2398
    %2424 = vmatprep.subr.mxu0 0.0
    %2425 = vmatpush1.msra.mxu0 0.0
    %2426 = vmatprep.subr.mxu0 0.0
    %2427 = vmatpush1.msra.mxu0 0.0
    %2428 = vmatprep.subr.mxu0 0.0
    %2429 = vmatpush1.msra.mxu0 0.0
    %2430 = vmatprep.subr.mxu0 0.0
    %2431 = vmatpush1.msra.mxu0 0.0
    %2432 = vmatprep.subr.mxu0 0.0
    %2433 = vmatpush1.msra.mxu0 0.0
    %2434 = vmatprep.subr.mxu0 0.0
    %2435 = vmatpush1.msra.mxu0 0.0
    %2436 = vmatprep.subr.mxu0 0.0
    %2437 = vmatpush1.msra.mxu0 0.0
    %2438 = vmatprep.subr.mxu0 0.0
    %2439 = vmatpush1.msra.mxu0 0.0
    %2440 = vmatprep.subr.mxu0 0.0
    %2441 = vmatpush1.msra.mxu0 0.0
    %2442 = vmatprep.subr.mxu0 0.0
    %2443 = vmatpush1.msra.mxu0 0.0
    %2444 = vmatprep.subr.mxu0 0.0
    %2445 = vmatpush1.msra.mxu0 0.0
    %2446 = vmatprep.subr.mxu0 0.0
    %2447 = vmatpush1.msra.mxu0 0.0
    %2448 = vmatprep.subr.mxu0 0.0
    %2449 = vmatpush1.msra.mxu0 0.0
    %2450 = vmatprep.subr.mxu0 0.0
    %2451 = vmatpush1.msra.mxu0 0.0
    %2452 = vmatprep.subr.mxu0 0.0
    %2453 = vmatpush1.msra.mxu0 0.0
    %2454 = vmatprep.subr.mxu0 0.0
    %2455 = vmatpush1.msra.mxu0 0.0
    %2456 = vmatprep.subr.mxu0 0.0
    %2457 = vmatpush1.msra.mxu0 0.0
    %2458 = vmatprep.subr.mxu0 0.0
    %2459 = vmatpush1.msra.mxu0 0.0
    %2460 = vmatprep.subr.mxu0 0.0
    %2461 = vmatpush1.msra.mxu0 0.0
    %2462 = vmatprep.subr.mxu0 0.0
    %2463 = vmatpush1.msra.mxu0 0.0
    %2464 = vmatprep.subr.mxu0 0.0
    %2465 = vmatpush1.msra.mxu0 0.0
    %2466 = vmatprep.subr.mxu0 0.0
    %2467 = vmatpush1.msra.mxu0 0.0
    %2468 = vmatprep.subr.mxu0 0.0
    %2469 = vmatpush1.msra.mxu0 0.0
    %2470 = vmatprep.subr.mxu0 0.0
    %2471 = vmatpush1.msra.mxu0 0.0
    %2472 = vmatprep.subr.mxu0 0.0
    %2473 = vmatpush1.msra.mxu0 0.0
    %2474 = vmatprep.subr.mxu0 0.0
    %2475 = vmatpush1.msra.mxu0 0.0
    %2476 = vmatprep.subr.mxu0 0.0
    %2477 = vmatpush1.msra.mxu0 0.0
    %2478 = vmatprep.subr.mxu0 0.0
    %2479 = vmatpush1.msra.mxu0 0.0
    %2480 = vmatprep.mubr.f32.mxu0 0.0
    %2481 = vmatmul.mubr.f32.gmra.mrb[0].mxu0 %v2405
    %v2482 = vpop.f32.mrb[0].mxu0
    %v2483 = vadd.f32 %v73, %v2482
    %v2484 = vpop.f32.mrb[0].mxu0
    %v2485 = vadd.f32 %v73, %v2484
    %2486 = vmatprep.mubr.f32.mxu0 0.0
    %2487 = vmatmul.mubr.f32.gmra.mrb[0].mxu0 %v2408
    %v2488 = vpop.f32.mrb[0].mxu0
    %v2489 = vadd.f32 %v78, %v2488
    %v2490 = vpop.f32.mrb[0].mxu0
    %v2491 = vadd.f32 %v78, %v2490
    %2492 = vmatprep.mubr.f32.mxu0 0.0
    %2493 = vmatmul.mubr.f32.gmra.mrb[0].mxu0 %v2411
    %v2494 = vpop.f32.mrb[0].mxu0
    %v2495 = vadd.f32 %v83, %v2494
    %v2496 = vpop.f32.mrb[0].mxu0
    %v2497 = vadd.f32 %v83, %v2496
    %2498 = vmatprep.mubr.f32.mxu0 0.0
    %2499 = vmatmul.mubr.f32.gmra.mrb[0].mxu0 %v2414
    %v2500 = vpop.f32.mrb[0].mxu0
    %v2501 = vadd.f32 %v88, %v2500
    %v2502 = vpop.f32.mrb[0].mxu0
    %v2503 = vadd.f32 %v88, %v2502
    %2504 = vdwg.mxu0
    %v2505 = vadd.f32 %v2483, %v2485
    %2506 = vadd.xlane.f32.xlu0 %v2505
    %v2507 = vpop.xlane.xlu0 %2506
    %v2508 = vadd.f32 %v2489, %v2491
    %2509 = vadd.xlane.f32.xlu0 %v2508
    %v2510 = vpop.xlane.xlu0 %2509
    %v2511 = vadd.f32 %v2495, %v2497
    %2512 = vadd.xlane.f32.xlu0 %v2511
    %v2513 = vpop.xlane.xlu0 %2512
    %v2514 = vadd.f32 %v2501, %v2503
    %2515 = vadd.xlane.f32.xlu0 %v2514
    %v2516 = vpop.xlane.xlu0 %2515
    %v2517 = vmul.f32 %v2483, %v2483
    %v2518 = vmul.f32 %v2485, %v2485
    %v2519 = vmul.f32 %v2489, %v2489
    %v2520 = vmul.f32 %v2491, %v2491
    %v2521 = vmul.f32 %v2495, %v2495
    %v2522 = vmul.f32 %v2497, %v2497
    %v2523 = vmul.f32 %v2501, %v2501
    %v2524 = vmul.f32 %v2503, %v2503
    %v2525 = vadd.f32 %v2517, %v2518
    %2526 = vadd.xlane.f32.xlu0 %v2525
    %v2527 = vpop.xlane.xlu0 %2526
    %v2528 = vadd.f32 %v2519, %v2520
    %2529 = vadd.xlane.f32.xlu0 %v2528
    %v2530 = vpop.xlane.xlu0 %2529
    %v2531 = vadd.f32 %v2521, %v2522
    %2532 = vadd.xlane.f32.xlu0 %v2531
    %v2533 = vpop.xlane.xlu0 %2532
    %v2534 = vadd.f32 %v2523, %v2524
    %2535 = vadd.xlane.f32.xlu0 %v2534
    %v2536 = vpop.xlane.xlu0 %2535
    %2537 = vmatprep.subr.mxu0 0.0
    %2538 = vmatpush1.msra.mxu0 %v2507
    %2539 = vmatprep.subr.mxu0 0.0
    %2540 = vmatpush1.msra.mxu0 %v2510
    %2541 = vmatprep.subr.mxu0 0.0
    %2542 = vmatpush1.msra.mxu0 %v2513
    %2543 = vmatprep.subr.mxu0 0.0
    %2544 = vmatpush1.msra.mxu0 %v2516
    %2545 = vmatprep.subr.mxu0 0.0
    %2546 = vmatpush1.msra.mxu0 0.0
    %2547 = vmatprep.subr.mxu0 0.0
    %2548 = vmatpush1.msra.mxu0 0.0
    %2549 = vmatprep.subr.mxu0 0.0
    %2550 = vmatpush1.msra.mxu0 0.0
    %2551 = vmatprep.subr.mxu0 0.0
    %2552 = vmatpush1.msra.mxu0 0.0
    %2553 = vmatprep.subr.mxu0 0.0
    %2554 = vmatpush1.msra.mxu0 0.0
    %2555 = vmatprep.subr.mxu0 0.0
    %2556 = vmatpush1.msra.mxu0 0.0
    %2557 = vmatprep.subr.mxu0 0.0
    %2558 = vmatpush1.msra.mxu0 0.0
    %2559 = vmatprep.subr.mxu0 0.0
    %2560 = vmatpush1.msra.mxu0 0.0
    %2561 = vmatprep.subr.mxu0 0.0
    %2562 = vmatpush1.msra.mxu0 0.0
    %2563 = vmatprep.subr.mxu0 0.0
    %2564 = vmatpush1.msra.mxu0 0.0
    %2565 = vmatprep.subr.mxu0 0.0
    %2566 = vmatpush1.msra.mxu0 0.0
    %2567 = vmatprep.subr.mxu0 0.0
    %2568 = vmatpush1.msra.mxu0 0.0
    %2569 = vmatprep.subr.mxu0 0.0
    %2570 = vmatpush1.msra.mxu0 0.0
    %2571 = vmatprep.subr.mxu0 0.0
    %2572 = vmatpush1.msra.mxu0 0.0
    %2573 = vmatprep.subr.mxu0 0.0
    %2574 = vmatpush1.msra.mxu0 0.0
    %2575 = vmatprep.subr.mxu0 0.0
    %2576 = vmatpush1.msra.mxu0 0.0
    %2577 = vmatprep.subr.mxu0 0.0
    %2578 = vmatpush1.msra.mxu0 0.0
    %2579 = vmatprep.subr.mxu0 0.0
    %2580 = vmatpush1.msra.mxu0 0.0
    %2581 = vmatprep.subr.mxu0 0.0
    %2582 = vmatpush1.msra.mxu0 0.0
    %2583 = vmatprep.subr.mxu0 0.0
    %2584 = vmatpush1.msra.mxu0 0.0
    %2585 = vmatprep.subr.mxu0 0.0
    %2586 = vmatpush1.msra.mxu0 0.0
    %2587 = vmatprep.subr.mxu0 0.0
    %2588 = vmatpush1.msra.mxu0 0.0
    %2589 = vmatprep.subr.mxu0 0.0
    %2590 = vmatpush1.msra.mxu0 0.0
    %2591 = vmatprep.subr.mxu0 0.0
    %2592 = vmatpush1.msra.mxu0 0.0
    %2593 = vmatprep.subr.mxu0 0.0
    %2594 = vmatpush1.msra.mxu0 0.0
    %2595 = vmatprep.subr.mxu0 0.0
    %2596 = vmatpush1.msra.mxu0 0.0
    %2597 = vmatprep.subr.mxu0 0.0
    %2598 = vmatpush1.msra.mxu0 0.0
    %2599 = vmatprep.subr.mxu0 0.0
    %2600 = vmatpush1.msra.mxu0 0.0
    %2601 = vmatprep.mubr.f32.mxu0 0.0
    %2602 = vmatmul.mubr.f32.gmra.mrb[0].mxu0 %v225
    %v2603 = vpop.f32.mrb[0].mxu0
    %v2604 = vadd.f32 0.0, %v2603
    %v2605 = vpop.f32.mrb[0].mxu0
    %2606 = vmatprep.mubr.f32.mxu0 0.0
    %2607 = vmatmul.mubr.f32.gmra.mrb[0].mxu0 %v228
    %v2608 = vpop.f32.mrb[0].mxu0
    %v2609 = vadd.f32 0.0, %v2608
    %v2610 = vpop.f32.mrb[0].mxu0
    %2611 = vmatprep.mubr.f32.mxu0 0.0
    %2612 = vmatmul.mubr.f32.gmra.mrb[0].mxu0 %v231
    %v2613 = vpop.f32.mrb[0].mxu0
    %v2614 = vadd.f32 0.0, %v2613
    %v2615 = vpop.f32.mrb[0].mxu0
    %2616 = vmatprep.mubr.f32.mxu0 0.0
    %2617 = vmatmul.mubr.f32.gmra.mrb[0].mxu0 %v234
    %v2618 = vpop.f32.mrb[0].mxu0
    %v2619 = vadd.f32 0.0, %v2618
    %v2620 = vpop.f32.mrb[0].mxu0
    %2621 = vdwg.mxu0
    %2622 = vmatprep.subr.mxu0 0.0
    %2623 = vmatpush1.msra.mxu0 %v2527
    %2624 = vmatprep.subr.mxu0 0.0
    %2625 = vmatpush1.msra.mxu0 %v2530
    %2626 = vmatprep.subr.mxu0 0.0
    %2627 = vmatpush1.msra.mxu0 %v2533
    %2628 = vmatprep.subr.mxu0 0.0
    %2629 = vmatpush1.msra.mxu0 %v2536
    %2630 = vmatprep.subr.mxu0 0.0
    %2631 = vmatpush1.msra.mxu0 0.0
    %2632 = vmatprep.subr.mxu0 0.0
    %2633 = vmatpush1.msra.mxu0 0.0
    %2634 = vmatprep.subr.mxu0 0.0
    %2635 = vmatpush1.msra.mxu0 0.0
    %2636 = vmatprep.subr.mxu0 0.0
    %2637 = vmatpush1.msra.mxu0 0.0
    %2638 = vmatprep.subr.mxu0 0.0
    %2639 = vmatpush1.msra.mxu0 0.0
    %2640 = vmatprep.subr.mxu0 0.0
    %2641 = vmatpush1.msra.mxu0 0.0
    %2642 = vmatprep.subr.mxu0 0.0
    %2643 = vmatpush1.msra.mxu0 0.0
    %2644 = vmatprep.subr.mxu0 0.0
    %2645 = vmatpush1.msra.mxu0 0.0
    %2646 = vmatprep.subr.mxu0 0.0
    %2647 = vmatpush1.msra.mxu0 0.0
    %2648 = vmatprep.subr.mxu0 0.0
    %2649 = vmatpush1.msra.mxu0 0.0
    %2650 = vmatprep.subr.mxu0 0.0
    %2651 = vmatpush1.msra.mxu0 0.0
    %2652 = vmatprep.subr.mxu0 0.0
    %2653 = vmatpush1.msra.mxu0 0.0
    %2654 = vmatprep.subr.mxu0 0.0
    %2655 = vmatpush1.msra.mxu0 0.0
    %2656 = vmatprep.subr.mxu0 0.0
    %2657 = vmatpush1.msra.mxu0 0.0
    %2658 = vmatprep.subr.mxu0 0.0
    %2659 = vmatpush1.msra.mxu0 0.0
    %2660 = vmatprep.subr.mxu0 0.0
    %2661 = vmatpush1.msra.mxu0 0.0
    %2662 = vmatprep.subr.mxu0 0.0
    %2663 = vmatpush1.msra.mxu0 0.0
    %2664 = vmatprep.subr.mxu0 0.0
    %2665 = vmatpush1.msra.mxu0 0.0
    %2666 = vmatprep.subr.mxu0 0.0
    %2667 = vmatpush1.msra.mxu0 0.0
    %2668 = vmatprep.subr.mxu0 0.0
    %2669 = vmatpush1.msra.mxu0 0.0
    %2670 = vmatprep.subr.mxu0 0.0
    %2671 = vmatpush1.msra.mxu0 0.0
    %2672 = vmatprep.subr.mxu0 0.0
    %2673 = vmatpush1.msra.mxu0 0.0
    %2674 = vmatprep.subr.mxu0 0.0
    %2675 = vmatpush1.msra.mxu0 0.0
    %2676 = vmatprep.subr.mxu0 0.0
    %2677 = vmatpush1.msra.mxu0 0.0
    %2678 = vmatprep.subr.mxu0 0.0
    %2679 = vmatpush1.msra.mxu0 0.0
    %2680 = vmatprep.subr.mxu0 0.0
    %2681 = vmatpush1.msra.mxu0 0.0
    %2682 = vmatprep.subr.mxu0 0.0
    %2683 = vmatpush1.msra.mxu0 0.0
    %2684 = vmatprep.subr.mxu0 0.0
    %2685 = vmatpush1.msra.mxu0 0.0
    %2686 = vmatprep.mubr.f32.mxu0 0.0
    %2687 = vmatmul.mubr.f32.gmra.mrb[0].mxu0 %v225
    %v2688 = vpop.f32.mrb[0].mxu0
    %v2689 = vadd.f32 0.0, %v2688
    %v2690 = vpop.f32.mrb[0].mxu0
    %2691 = vmatprep.mubr.f32.mxu0 0.0
    %2692 = vmatmul.mubr.f32.gmra.mrb[0].mxu0 %v228
    %v2693 = vpop.f32.mrb[0].mxu0
    %v2694 = vadd.f32 0.0, %v2693
    %v2695 = vpop.f32.mrb[0].mxu0
    %2696 = vmatprep.mubr.f32.mxu0 0.0
    %2697 = vmatmul.mubr.f32.gmra.mrb[0].mxu0 %v231
    %v2698 = vpop.f32.mrb[0].mxu0
    %v2699 = vadd.f32 0.0, %v2698
    %v2700 = vpop.f32.mrb[0].mxu0
    %2701 = vmatprep.mubr.f32.mxu0 0.0
    %2702 = vmatmul.mubr.f32.gmra.mrb[0].mxu0 %v234
    %v2703 = vpop.f32.mrb[0].mxu0
    %v2704 = vadd.f32 0.0, %v2703
    %v2705 = vpop.f32.mrb[0].mxu0
    %2706 = vdwg.mxu0
    %v2707 = vmul.f32 %v2604, %v2604
    %v2708 = vmul.f32 %v2609, %v2609
    %v2709 = vmul.f32 %v2614, %v2614
    %v2710 = vmul.f32 %v2619, %v2619
    %v2711 = vsub.f32 %v2689, %v2707
    %v2712 = vsub.f32 %v2694, %v2708
    %v2713 = vsub.f32 %v2699, %v2709
    %v2714 = vsub.f32 %v2704, %v2710
    %v2715 = vmax.f32 %v2711, 0.0
    %v2716 = vmax.f32 %v2712, 0.0
    %v2717 = vmax.f32 %v2713, 0.0
    %v2718 = vmax.f32 %v2714, 0.0
    %v2719 = vadd.f32 %v2715, 1e-05
    %v2720 = vadd.f32 %v2716, 1e-05
    %v2721 = vadd.f32 %v2717, 1e-05
    %v2722 = vadd.f32 %v2718, 1e-05
    %v2723 = vrsqrt.pop %v2719
    %v2724 = vrsqrt.pop %v2720
    %v2725 = vrsqrt.pop %v2721
    %v2726 = vrsqrt.pop %v2722
    %2728 = vset.pattern.permute.xlu0 0
    %2729 = vperm.xlu0 %2728, %v2604
    %v2730 = vpop.permute.xlu0 %2729
    %2733 = vset.pattern.permute.xlu0 0
    %2734 = vperm.xlu0 %2733, %v2609
    %v2735 = vpop.permute.xlu0 %2734
    %2738 = vset.pattern.permute.xlu0 0
    %2739 = vperm.xlu0 %2738, %v2614
    %v2740 = vpop.permute.xlu0 %2739
    %2743 = vset.pattern.permute.xlu0 0
    %2744 = vperm.xlu0 %2743, %v2619
    %v2745 = vpop.permute.xlu0 %2744
    %v2747 = vsub.f32 %v2483, %v2730
    %v2748 = vsub.f32 %v2485, %v2730
    %v2749 = vsub.f32 %v2489, %v2735
    %v2750 = vsub.f32 %v2491, %v2735
    %v2751 = vsub.f32 %v2495, %v2740
    %v2752 = vsub.f32 %v2497, %v2740
    %v2753 = vsub.f32 %v2501, %v2745
    %v2754 = vsub.f32 %v2503, %v2745
    %v2755 = vmul.f32 %v2723, %v38
    %v2756 = vmul.f32 %v2724, %v39
    %v2757 = vmul.f32 %v2725, %v40
    %v2758 = vmul.f32 %v2726, %v41
    %2760 = vset.pattern.permute.xlu0 0
    %2761 = vperm.xlu0 %2760, %v2755
    %v2762 = vpop.permute.xlu0 %2761
    %2765 = vset.pattern.permute.xlu0 0
    %2766 = vperm.xlu0 %2765, %v2756
    %v2767 = vpop.permute.xlu0 %2766
    %2770 = vset.pattern.permute.xlu0 0
    %2771 = vperm.xlu0 %2770, %v2757
    %v2772 = vpop.permute.xlu0 %2771
    %2775 = vset.pattern.permute.xlu0 0
    %2776 = vperm.xlu0 %2775, %v2758
    %v2777 = vpop.permute.xlu0 %2776
    %v2779 = vmul.f32 %v2747, %v2762
    %v2780 = vmul.f32 %v2748, %v2762
    %v2781 = vmul.f32 %v2749, %v2767
    %v2782 = vmul.f32 %v2750, %v2767
    %v2783 = vmul.f32 %v2751, %v2772
    %v2784 = vmul.f32 %v2752, %v2772
    %v2785 = vmul.f32 %v2753, %v2777
    %v2786 = vmul.f32 %v2754, %v2777
    %v2787 = vadd.f32 %v2779, %v489
    %v2788 = vadd.f32 %v2780, %v489
    %v2789 = vadd.f32 %v2781, %v494
    %v2790 = vadd.f32 %v2782, %v494
    %v2791 = vadd.f32 %v2783, %v499
    %v2792 = vadd.f32 %v2784, %v499
    %v2793 = vadd.f32 %v2785, %v504
    %v2794 = vadd.f32 %v2786, %v504
    %v2795 = vmul.f32 %v2787, 0.05
    %v2796 = vmul.f32 %v2788, 0.05
    %v2797 = vmul.f32 %v2789, 0.05
    %v2798 = vmul.f32 %v2790, 0.05
    %v2799 = vmul.f32 %v2791, 0.05
    %v2800 = vmul.f32 %v2792, 0.05
    %v2801 = vmul.f32 %v2793, 0.05
    %v2802 = vmul.f32 %v2794, 0.05
    %v2803 = vmax.f32 %v2787, %v2795
    %v2804 = vmax.f32 %v2788, %v2796
    %v2805 = vmax.f32 %v2789, %v2797
    %v2806 = vmax.f32 %v2790, %v2798
    %v2807 = vmax.f32 %v2791, %v2799
    %v2808 = vmax.f32 %v2792, %v2800
    %v2809 = vmax.f32 %v2793, %v2801
    %v2810 = vmax.f32 %v2794, %v2802
    %2811 = vrot.lane.b32.xlu0 %v2803, 34
    %v2812 = vpop.permute.xlu0 %2811
    %2813 = vrot.lane.b32.xlu0 %v2805, 34
    %v2814 = vpop.permute.xlu0 %2813
    %2815 = vrot.lane.b32.xlu0 %v2807, 34
    %v2816 = vpop.permute.xlu0 %2815
    %2817 = vrot.lane.b32.xlu0 %v2809, 34
    %v2818 = vpop.permute.xlu0 %2817
    %2819 = vrot.lane.b32.xlu0 %v2804, 34
    %v2820 = vpop.permute.xlu0 %2819
    %2821 = vrot.lane.b32.xlu0 %v2806, 34
    %v2822 = vpop.permute.xlu0 %2821
    %2823 = vrot.lane.b32.xlu0 %v2808, 34
    %v2824 = vpop.permute.xlu0 %2823
    %2825 = vrot.lane.b32.xlu0 %v2810, 34
    %v2826 = vpop.permute.xlu0 %2825
    %v2827 = vsel %vm548, %v2812, %v2820
    %v2828 = vsel %vm548, %v2814, %v2822
    %v2829 = vsel %vm548, %v2816, %v2824
    %v2830 = vsel %vm548, %v2818, %v2826
    %v2831 = vsel %vm548, %v2820, %v2812
    %v2832 = vsel %vm548, %v2822, %v2814
    %v2833 = vsel %vm548, %v2824, %v2816
    %v2834 = vsel %vm548, %v2826, %v2818
    %v2835 = vld [vmem:[%s7] ss:$8 sm:$0x3]
    %v2837 = vlaneseq
    %v2838 = vshrl.u32 %v2837, 7
    %v2839 = vsub.s32 0, %v2838
    %v2840 = vrot.slane %v2835, %v2839
    %v2841 = vlaneseq
    %v2842 = vshrl.u32 %v2841, 7
    %v2843 = vsub.s32 1, %v2842
    %v2844 = vrot.slane %v2835, %v2843
    %v2847 = vmul.f32 %v2831, %v2840
    %v2848 = vmul.f32 %v2827, %v2844
    %v2849 = vmul.f32 %v2832, %v2840
    %v2850 = vmul.f32 %v2828, %v2844
    %v2851 = vmul.f32 %v2833, %v2840
    %v2852 = vmul.f32 %v2829, %v2844
    %v2853 = vmul.f32 %v2834, %v2840
    %v2854 = vmul.f32 %v2830, %v2844
    %v2855 = vld [vmem:[%s3] sm:$0xff]
    %v2856 = vld [vmem:[%s3 + $0x8] sm:$0xff]
    %v2857 = vld [vmem:[%s3 + $0x10] sm:$0xff]
    %v2858 = vld [vmem:[%s3 + $0x18] sm:$0xff]
    %2859 = vrot.lane.b32.xlu0 %v2803, 32
    %v2860 = vpop.permute.xlu0 %2859
    %2861 = vrot.lane.b32.xlu0 %v2805, 32
    %v2862 = vpop.permute.xlu0 %2861
    %2863 = vrot.lane.b32.xlu0 %v2807, 32
    %v2864 = vpop.permute.xlu0 %2863
    %2865 = vrot.lane.b32.xlu0 %v2809, 32
    %v2866 = vpop.permute.xlu0 %2865
    %2867 = vrot.lane.b32.xlu0 %v2804, 32
    %v2868 = vpop.permute.xlu0 %2867
    %2869 = vrot.lane.b32.xlu0 %v2806, 32
    %v2870 = vpop.permute.xlu0 %2869
    %2871 = vrot.lane.b32.xlu0 %v2808, 32
    %v2872 = vpop.permute.xlu0 %2871
    %2873 = vrot.lane.b32.xlu0 %v2810, 32
    %v2874 = vpop.permute.xlu0 %2873
    %v2875 = vsel %vm597, %v2860, %v2868
    %v2876 = vsel %vm597, %v2862, %v2870
    %v2877 = vsel %vm597, %v2864, %v2872
    %v2878 = vsel %vm597, %v2866, %v2874
    %v2879 = vsel %vm597, %v2868, %v2860
    %v2880 = vsel %vm597, %v2870, %v2862
    %v2881 = vsel %vm597, %v2872, %v2864
    %v2882 = vsel %vm597, %v2874, %v2866
    %v2883 = vld [vmem:[%s606] ss:$8 sm:$0x3]
    %v2885 = vlaneseq
    %v2886 = vshrl.u32 %v2885, 7
    %v2887 = vsub.s32 0, %v2886
    %v2888 = vrot.slane %v2883, %v2887
    %v2889 = vlaneseq
    %v2890 = vshrl.u32 %v2889, 7
    %v2891 = vsub.s32 1, %v2890
    %v2892 = vrot.slane %v2883, %v2891
    %v2895 = vmul.f32 %v2879, %v2888
    %v2896 = vmul.f32 %v2875, %v2892
    %v2897 = vmul.f32 %v2880, %v2888
    %v2898 = vmul.f32 %v2876, %v2892
    %v2899 = vmul.f32 %v2881, %v2888
    %v2900 = vmul.f32 %v2877, %v2892
    %v2901 = vmul.f32 %v2882, %v2888
    %v2902 = vmul.f32 %v2878, %v2892
    %v2903 = vld [vmem:[%s3 + $0x20] sm:$0xff]
    %v2904 = vld [vmem:[%s3 + $0x28] sm:$0xff]
    %v2905 = vld [vmem:[%s3 + $0x30] sm:$0xff]
    %v2906 = vld [vmem:[%s3 + $0x38] sm:$0xff]
    %v2908 = vsel %vm90, %v2903, 0
    %v2911 = vsel %vm90, %v2904, 0
    %v2914 = vsel %vm90, %v2905, 0
    %v2917 = vsel %vm90, %v2906, 0
    %2919 = vmatprep.subr.mxu0 %v2896
    %2920 = vmatpush1.msra.mxu0 %v2895
    %2921 = vmatprep.subr.mxu0 %v2898
    %2922 = vmatpush1.msra.mxu0 %v2897
    %2923 = vmatprep.subr.mxu0 %v2900
    %2924 = vmatpush1.msra.mxu0 %v2899
    %2925 = vmatprep.subr.mxu0 %v2902
    %2926 = vmatpush1.msra.mxu0 %v2901
    %2927 = vmatprep.subr.mxu0 0.0
    %2928 = vmatpush1.msra.mxu0 0.0
    %2929 = vmatprep.subr.mxu0 0.0
    %2930 = vmatpush1.msra.mxu0 0.0
    %2931 = vmatprep.subr.mxu0 0.0
    %2932 = vmatpush1.msra.mxu0 0.0
    %2933 = vmatprep.subr.mxu0 0.0
    %2934 = vmatpush1.msra.mxu0 0.0
    %2935 = vmatprep.subr.mxu0 0.0
    %2936 = vmatpush1.msra.mxu0 0.0
    %2937 = vmatprep.subr.mxu0 0.0
    %2938 = vmatpush1.msra.mxu0 0.0
    %2939 = vmatprep.subr.mxu0 0.0
    %2940 = vmatpush1.msra.mxu0 0.0
    %2941 = vmatprep.subr.mxu0 0.0
    %2942 = vmatpush1.msra.mxu0 0.0
    %2943 = vmatprep.subr.mxu0 0.0
    %2944 = vmatpush1.msra.mxu0 0.0
    %2945 = vmatprep.subr.mxu0 0.0
    %2946 = vmatpush1.msra.mxu0 0.0
    %2947 = vmatprep.subr.mxu0 0.0
    %2948 = vmatpush1.msra.mxu0 0.0
    %2949 = vmatprep.subr.mxu0 0.0
    %2950 = vmatpush1.msra.mxu0 0.0
    %2951 = vmatprep.subr.mxu0 0.0
    %2952 = vmatpush1.msra.mxu0 0.0
    %2953 = vmatprep.subr.mxu0 0.0
    %2954 = vmatpush1.msra.mxu0 0.0
    %2955 = vmatprep.subr.mxu0 0.0
    %2956 = vmatpush1.msra.mxu0 0.0
    %2957 = vmatprep.subr.mxu0 0.0
    %2958 = vmatpush1.msra.mxu0 0.0
    %2959 = vmatprep.subr.mxu0 0.0
    %2960 = vmatpush1.msra.mxu0 0.0
    %2961 = vmatprep.subr.mxu0 0.0
    %2962 = vmatpush1.msra.mxu0 0.0
    %2963 = vmatprep.subr.mxu0 0.0
    %2964 = vmatpush1.msra.mxu0 0.0
    %2965 = vmatprep.subr.mxu0 0.0
    %2966 = vmatpush1.msra.mxu0 0.0
    %2967 = vmatprep.subr.mxu0 0.0
    %2968 = vmatpush1.msra.mxu0 0.0
    %2969 = vmatprep.subr.mxu0 0.0
    %2970 = vmatpush1.msra.mxu0 0.0
    %2971 = vmatprep.subr.mxu0 0.0
    %2972 = vmatpush1.msra.mxu0 0.0
    %2973 = vmatprep.subr.mxu0 0.0
    %2974 = vmatpush1.msra.mxu0 0.0
    %2975 = vmatprep.subr.mxu0 0.0
    %2976 = vmatpush1.msra.mxu0 0.0
    %2977 = vmatprep.subr.mxu0 0.0
    %2978 = vmatpush1.msra.mxu0 0.0
    %2979 = vmatprep.subr.mxu0 0.0
    %2980 = vmatpush1.msra.mxu0 0.0
    %2981 = vmatprep.subr.mxu0 0.0
    %2982 = vmatpush1.msra.mxu0 0.0
    %2983 = vmatprep.mubr.f32.mxu0 0.0
    %2984 = vmatmul.mubr.f32.gmra.mrb[0].mxu0 %v2908
    %v2985 = vpop.f32.mrb[0].mxu0
    %v2986 = vadd.f32 0.0, %v2985
    %v2987 = vpop.f32.mrb[0].mxu0
    %v2988 = vadd.f32 0.0, %v2987
    %2989 = vmatprep.mubr.f32.mxu0 0.0
    %2990 = vmatmul.mubr.f32.gmra.mrb[0].mxu0 %v2911
    %v2991 = vpop.f32.mrb[0].mxu0
    %v2992 = vadd.f32 0.0, %v2991
    %v2993 = vpop.f32.mrb[0].mxu0
    %v2994 = vadd.f32 0.0, %v2993
    %2995 = vmatprep.mubr.f32.mxu0 0.0
    %2996 = vmatmul.mubr.f32.gmra.mrb[0].mxu0 %v2914
    %v2997 = vpop.f32.mrb[0].mxu0
    %v2998 = vadd.f32 0.0, %v2997
    %v2999 = vpop.f32.mrb[0].mxu0
    %v3000 = vadd.f32 0.0, %v2999
    %3001 = vmatprep.mubr.f32.mxu0 0.0
    %3002 = vmatmul.mubr.f32.gmra.mrb[0].mxu0 %v2917
    %v3003 = vpop.f32.mrb[0].mxu0
    %v3004 = vadd.f32 0.0, %v3003
    %v3005 = vpop.f32.mrb[0].mxu0
    %v3006 = vadd.f32 0.0, %v3005
    %3007 = vdwg.mxu0
    %v3009 = vsel %vm90, %v2855, 0
    %v3012 = vsel %vm90, %v2856, 0
    %v3015 = vsel %vm90, %v2857, 0
    %v3018 = vsel %vm90, %v2858, 0
    %3020 = vmatprep.subr.mxu0 %v2848
    %3021 = vmatpush1.msra.mxu0 %v2847
    %3022 = vmatprep.subr.mxu0 %v2850
    %3023 = vmatpush1.msra.mxu0 %v2849
    %3024 = vmatprep.subr.mxu0 %v2852
    %3025 = vmatpush1.msra.mxu0 %v2851
    %3026 = vmatprep.subr.mxu0 %v2854
    %3027 = vmatpush1.msra.mxu0 %v2853
    %3028 = vmatprep.subr.mxu0 0.0
    %3029 = vmatpush1.msra.mxu0 0.0
    %3030 = vmatprep.subr.mxu0 0.0
    %3031 = vmatpush1.msra.mxu0 0.0
    %3032 = vmatprep.subr.mxu0 0.0
    %3033 = vmatpush1.msra.mxu0 0.0
    %3034 = vmatprep.subr.mxu0 0.0
    %3035 = vmatpush1.msra.mxu0 0.0
    %3036 = vmatprep.subr.mxu0 0.0
    %3037 = vmatpush1.msra.mxu0 0.0
    %3038 = vmatprep.subr.mxu0 0.0
    %3039 = vmatpush1.msra.mxu0 0.0
    %3040 = vmatprep.subr.mxu0 0.0
    %3041 = vmatpush1.msra.mxu0 0.0
    %3042 = vmatprep.subr.mxu0 0.0
    %3043 = vmatpush1.msra.mxu0 0.0
    %3044 = vmatprep.subr.mxu0 0.0
    %3045 = vmatpush1.msra.mxu0 0.0
    %3046 = vmatprep.subr.mxu0 0.0
    %3047 = vmatpush1.msra.mxu0 0.0
    %3048 = vmatprep.subr.mxu0 0.0
    %3049 = vmatpush1.msra.mxu0 0.0
    %3050 = vmatprep.subr.mxu0 0.0
    %3051 = vmatpush1.msra.mxu0 0.0
    %3052 = vmatprep.subr.mxu0 0.0
    %3053 = vmatpush1.msra.mxu0 0.0
    %3054 = vmatprep.subr.mxu0 0.0
    %3055 = vmatpush1.msra.mxu0 0.0
    %3056 = vmatprep.subr.mxu0 0.0
    %3057 = vmatpush1.msra.mxu0 0.0
    %3058 = vmatprep.subr.mxu0 0.0
    %3059 = vmatpush1.msra.mxu0 0.0
    %3060 = vmatprep.subr.mxu0 0.0
    %3061 = vmatpush1.msra.mxu0 0.0
    %3062 = vmatprep.subr.mxu0 0.0
    %3063 = vmatpush1.msra.mxu0 0.0
    %3064 = vmatprep.subr.mxu0 0.0
    %3065 = vmatpush1.msra.mxu0 0.0
    %3066 = vmatprep.subr.mxu0 0.0
    %3067 = vmatpush1.msra.mxu0 0.0
    %3068 = vmatprep.subr.mxu0 0.0
    %3069 = vmatpush1.msra.mxu0 0.0
    %3070 = vmatprep.subr.mxu0 0.0
    %3071 = vmatpush1.msra.mxu0 0.0
    %3072 = vmatprep.subr.mxu0 0.0
    %3073 = vmatpush1.msra.mxu0 0.0
    %3074 = vmatprep.subr.mxu0 0.0
    %3075 = vmatpush1.msra.mxu0 0.0
    %3076 = vmatprep.subr.mxu0 0.0
    %3077 = vmatpush1.msra.mxu0 0.0
    %3078 = vmatprep.subr.mxu0 0.0
    %3079 = vmatpush1.msra.mxu0 0.0
    %3080 = vmatprep.subr.mxu0 0.0
    %3081 = vmatpush1.msra.mxu0 0.0
    %3082 = vmatprep.subr.mxu0 0.0
    %3083 = vmatpush1.msra.mxu0 0.0
    %3084 = vmatprep.mubr.f32.mxu0 0.0
    %3085 = vmatmul.mubr.f32.gmra.mrb[0].mxu0 %v3009
    %v3086 = vpop.f32.mrb[0].mxu0
    %v3087 = vadd.f32 %v2986, %v3086
    %v3088 = vpop.f32.mrb[0].mxu0
    %v3089 = vadd.f32 %v2988, %v3088
    %3090 = vmatprep.mubr.f32.mxu0 0.0
    %3091 = vmatmul.mubr.f32.gmra.mrb[0].mxu0 %v3012
    %v3092 = vpop.f32.mrb[0].mxu0
    %v3093 = vadd.f32 %v2992, %v3092
    %v3094 = vpop.f32.mrb[0].mxu0
    %v3095 = vadd.f32 %v2994, %v3094
    %3096 = vmatprep.mubr.f32.mxu0 0.0
    %3097 = vmatmul.mubr.f32.gmra.mrb[0].mxu0 %v3015
    %v3098 = vpop.f32.mrb[0].mxu0
    %v3099 = vadd.f32 %v2998, %v3098
    %v3100 = vpop.f32.mrb[0].mxu0
    %v3101 = vadd.f32 %v3000, %v3100
    %3102 = vmatprep.mubr.f32.mxu0 0.0
    %3103 = vmatmul.mubr.f32.gmra.mrb[0].mxu0 %v3018
    %v3104 = vpop.f32.mrb[0].mxu0
    %v3105 = vadd.f32 %v3004, %v3104
    %v3106 = vpop.f32.mrb[0].mxu0
    %v3107 = vadd.f32 %v3006, %v3106
    %3108 = vdwg.mxu0
    %3109 = vrot.lane.b32.xlu0 %v2803, 30
    %v3110 = vpop.permute.xlu0 %3109
    %3111 = vrot.lane.b32.xlu0 %v2805, 30
    %v3112 = vpop.permute.xlu0 %3111
    %3113 = vrot.lane.b32.xlu0 %v2807, 30
    %v3114 = vpop.permute.xlu0 %3113
    %3115 = vrot.lane.b32.xlu0 %v2809, 30
    %v3116 = vpop.permute.xlu0 %3115
    %3117 = vrot.lane.b32.xlu0 %v2804, 30
    %v3118 = vpop.permute.xlu0 %3117
    %3119 = vrot.lane.b32.xlu0 %v2806, 30
    %v3120 = vpop.permute.xlu0 %3119
    %3121 = vrot.lane.b32.xlu0 %v2808, 30
    %v3122 = vpop.permute.xlu0 %3121
    %3123 = vrot.lane.b32.xlu0 %v2810, 30
    %v3124 = vpop.permute.xlu0 %3123
    %v3125 = vsel %vm849, %v3110, %v3118
    %v3126 = vsel %vm849, %v3112, %v3120
    %v3127 = vsel %vm849, %v3114, %v3122
    %v3128 = vsel %vm849, %v3116, %v3124
    %v3129 = vsel %vm849, %v3118, %v3110
    %v3130 = vsel %vm849, %v3120, %v3112
    %v3131 = vsel %vm849, %v3122, %v3114
    %v3132 = vsel %vm849, %v3124, %v3116
    %v3133 = vld [vmem:[%s858] ss:$8 sm:$0x3]
    %v3135 = vlaneseq
    %v3136 = vshrl.u32 %v3135, 7
    %v3137 = vsub.s32 0, %v3136
    %v3138 = vrot.slane %v3133, %v3137
    %v3139 = vlaneseq
    %v3140 = vshrl.u32 %v3139, 7
    %v3141 = vsub.s32 1, %v3140
    %v3142 = vrot.slane %v3133, %v3141
    %v3145 = vmul.f32 %v3129, %v3138
    %v3146 = vmul.f32 %v3125, %v3142
    %v3147 = vmul.f32 %v3130, %v3138
    %v3148 = vmul.f32 %v3126, %v3142
    %v3149 = vmul.f32 %v3131, %v3138
    %v3150 = vmul.f32 %v3127, %v3142
    %v3151 = vmul.f32 %v3132, %v3138
    %v3152 = vmul.f32 %v3128, %v3142
    %v3153 = vld [vmem:[%s3 + $0x40] sm:$0xff]
    %v3154 = vld [vmem:[%s3 + $0x48] sm:$0xff]
    %v3155 = vld [vmem:[%s3 + $0x50] sm:$0xff]
    %v3156 = vld [vmem:[%s3 + $0x58] sm:$0xff]
    %v3158 = vsel %vm90, %v3153, 0
    %v3161 = vsel %vm90, %v3154, 0
    %v3164 = vsel %vm90, %v3155, 0
    %v3167 = vsel %vm90, %v3156, 0
    %3169 = vmatprep.subr.mxu0 %v3146
    %3170 = vmatpush1.msra.mxu0 %v3145
    %3171 = vmatprep.subr.mxu0 %v3148
    %3172 = vmatpush1.msra.mxu0 %v3147
    %3173 = vmatprep.subr.mxu0 %v3150
    %3174 = vmatpush1.msra.mxu0 %v3149
    %3175 = vmatprep.subr.mxu0 %v3152
    %3176 = vmatpush1.msra.mxu0 %v3151
    %3177 = vmatprep.subr.mxu0 0.0
    %3178 = vmatpush1.msra.mxu0 0.0
    %3179 = vmatprep.subr.mxu0 0.0
    %3180 = vmatpush1.msra.mxu0 0.0
    %3181 = vmatprep.subr.mxu0 0.0
    %3182 = vmatpush1.msra.mxu0 0.0
    %3183 = vmatprep.subr.mxu0 0.0
    %3184 = vmatpush1.msra.mxu0 0.0
    %3185 = vmatprep.subr.mxu0 0.0
    %3186 = vmatpush1.msra.mxu0 0.0
    %3187 = vmatprep.subr.mxu0 0.0
    %3188 = vmatpush1.msra.mxu0 0.0
    %3189 = vmatprep.subr.mxu0 0.0
    %3190 = vmatpush1.msra.mxu0 0.0
    %3191 = vmatprep.subr.mxu0 0.0
    %3192 = vmatpush1.msra.mxu0 0.0
    %3193 = vmatprep.subr.mxu0 0.0
    %3194 = vmatpush1.msra.mxu0 0.0
    %3195 = vmatprep.subr.mxu0 0.0
    %3196 = vmatpush1.msra.mxu0 0.0
    %3197 = vmatprep.subr.mxu0 0.0
    %3198 = vmatpush1.msra.mxu0 0.0
    %3199 = vmatprep.subr.mxu0 0.0
    %3200 = vmatpush1.msra.mxu0 0.0
    %3201 = vmatprep.subr.mxu0 0.0
    %3202 = vmatpush1.msra.mxu0 0.0
    %3203 = vmatprep.subr.mxu0 0.0
    %3204 = vmatpush1.msra.mxu0 0.0
    %3205 = vmatprep.subr.mxu0 0.0
    %3206 = vmatpush1.msra.mxu0 0.0
    %3207 = vmatprep.subr.mxu0 0.0
    %3208 = vmatpush1.msra.mxu0 0.0
    %3209 = vmatprep.subr.mxu0 0.0
    %3210 = vmatpush1.msra.mxu0 0.0
    %3211 = vmatprep.subr.mxu0 0.0
    %3212 = vmatpush1.msra.mxu0 0.0
    %3213 = vmatprep.subr.mxu0 0.0
    %3214 = vmatpush1.msra.mxu0 0.0
    %3215 = vmatprep.subr.mxu0 0.0
    %3216 = vmatpush1.msra.mxu0 0.0
    %3217 = vmatprep.subr.mxu0 0.0
    %3218 = vmatpush1.msra.mxu0 0.0
    %3219 = vmatprep.subr.mxu0 0.0
    %3220 = vmatpush1.msra.mxu0 0.0
    %3221 = vmatprep.subr.mxu0 0.0
    %3222 = vmatpush1.msra.mxu0 0.0
    %3223 = vmatprep.subr.mxu0 0.0
    %3224 = vmatpush1.msra.mxu0 0.0
    %3225 = vmatprep.subr.mxu0 0.0
    %3226 = vmatpush1.msra.mxu0 0.0
    %3227 = vmatprep.subr.mxu0 0.0
    %3228 = vmatpush1.msra.mxu0 0.0
    %3229 = vmatprep.subr.mxu0 0.0
    %3230 = vmatpush1.msra.mxu0 0.0
    %3231 = vmatprep.subr.mxu0 0.0
    %3232 = vmatpush1.msra.mxu0 0.0
    %3233 = vmatprep.mubr.f32.mxu0 0.0
    %3234 = vmatmul.mubr.f32.gmra.mrb[0].mxu0 %v3158
    %v3235 = vpop.f32.mrb[0].mxu0
    %v3236 = vadd.f32 0.0, %v3235
    %v3237 = vpop.f32.mrb[0].mxu0
    %v3238 = vadd.f32 0.0, %v3237
    %3239 = vmatprep.mubr.f32.mxu0 0.0
    %3240 = vmatmul.mubr.f32.gmra.mrb[0].mxu0 %v3161
    %v3241 = vpop.f32.mrb[0].mxu0
    %v3242 = vadd.f32 0.0, %v3241
    %v3243 = vpop.f32.mrb[0].mxu0
    %v3244 = vadd.f32 0.0, %v3243
    %3245 = vmatprep.mubr.f32.mxu0 0.0
    %3246 = vmatmul.mubr.f32.gmra.mrb[0].mxu0 %v3164
    %v3247 = vpop.f32.mrb[0].mxu0
    %v3248 = vadd.f32 0.0, %v3247
    %v3249 = vpop.f32.mrb[0].mxu0
    %v3250 = vadd.f32 0.0, %v3249
    %3251 = vmatprep.mubr.f32.mxu0 0.0
    %3252 = vmatmul.mubr.f32.gmra.mrb[0].mxu0 %v3167
    %v3253 = vpop.f32.mrb[0].mxu0
    %v3254 = vadd.f32 0.0, %v3253
    %v3255 = vpop.f32.mrb[0].mxu0
    %v3256 = vadd.f32 0.0, %v3255
    %3257 = vdwg.mxu0
    %v3258 = vadd.f32 %v3087, %v3236
    %v3259 = vadd.f32 %v3089, %v3238
    %v3260 = vadd.f32 %v3093, %v3242
    %v3261 = vadd.f32 %v3095, %v3244
    %v3262 = vadd.f32 %v3099, %v3248
    %v3263 = vadd.f32 %v3101, %v3250
    %v3264 = vadd.f32 %v3105, %v3254
    %v3265 = vadd.f32 %v3107, %v3256
    %3266 = vrot.lane.b32.xlu0 %v2803, 2
    %v3267 = vpop.permute.xlu0 %3266
    %3268 = vrot.lane.b32.xlu0 %v2805, 2
    %v3269 = vpop.permute.xlu0 %3268
    %3270 = vrot.lane.b32.xlu0 %v2807, 2
    %v3271 = vpop.permute.xlu0 %3270
    %3272 = vrot.lane.b32.xlu0 %v2809, 2
    %v3273 = vpop.permute.xlu0 %3272
    %3274 = vrot.lane.b32.xlu0 %v2804, 2
    %v3275 = vpop.permute.xlu0 %3274
    %3276 = vrot.lane.b32.xlu0 %v2806, 2
    %v3277 = vpop.permute.xlu0 %3276
    %3278 = vrot.lane.b32.xlu0 %v2808, 2
    %v3279 = vpop.permute.xlu0 %3278
    %3280 = vrot.lane.b32.xlu0 %v2810, 2
    %v3281 = vpop.permute.xlu0 %3280
    %v3282 = vsel %vm1008, %v3267, %v3275
    %v3283 = vsel %vm1008, %v3269, %v3277
    %v3284 = vsel %vm1008, %v3271, %v3279
    %v3285 = vsel %vm1008, %v3273, %v3281
    %v3286 = vsel %vm1008, %v3275, %v3267
    %v3287 = vsel %vm1008, %v3277, %v3269
    %v3288 = vsel %vm1008, %v3279, %v3271
    %v3289 = vsel %vm1008, %v3281, %v3273
    %v3290 = vld [vmem:[%s1017] ss:$8 sm:$0x3]
    %v3292 = vlaneseq
    %v3293 = vshrl.u32 %v3292, 7
    %v3294 = vsub.s32 0, %v3293
    %v3295 = vrot.slane %v3290, %v3294
    %v3296 = vlaneseq
    %v3297 = vshrl.u32 %v3296, 7
    %v3298 = vsub.s32 1, %v3297
    %v3299 = vrot.slane %v3290, %v3298
    %v3302 = vmul.f32 %v3286, %v3295
    %v3303 = vmul.f32 %v3282, %v3299
    %v3304 = vmul.f32 %v3287, %v3295
    %v3305 = vmul.f32 %v3283, %v3299
    %v3306 = vmul.f32 %v3288, %v3295
    %v3307 = vmul.f32 %v3284, %v3299
    %v3308 = vmul.f32 %v3289, %v3295
    %v3309 = vmul.f32 %v3285, %v3299
    %v3310 = vld [vmem:[%s3 + $0x60] sm:$0xff]
    %v3311 = vld [vmem:[%s3 + $0x68] sm:$0xff]
    %v3312 = vld [vmem:[%s3 + $0x70] sm:$0xff]
    %v3313 = vld [vmem:[%s3 + $0x78] sm:$0xff]
    %v3315 = vsel %vm90, %v3310, 0
    %v3318 = vsel %vm90, %v3311, 0
    %v3321 = vsel %vm90, %v3312, 0
    %v3324 = vsel %vm90, %v3313, 0
    %3326 = vmatprep.subr.mxu0 %v3303
    %3327 = vmatpush1.msra.mxu0 %v3302
    %3328 = vmatprep.subr.mxu0 %v3305
    %3329 = vmatpush1.msra.mxu0 %v3304
    %3330 = vmatprep.subr.mxu0 %v3307
    %3331 = vmatpush1.msra.mxu0 %v3306
    %3332 = vmatprep.subr.mxu0 %v3309
    %3333 = vmatpush1.msra.mxu0 %v3308
    %3334 = vmatprep.subr.mxu0 0.0
    %3335 = vmatpush1.msra.mxu0 0.0
    %3336 = vmatprep.subr.mxu0 0.0
    %3337 = vmatpush1.msra.mxu0 0.0
    %3338 = vmatprep.subr.mxu0 0.0
    %3339 = vmatpush1.msra.mxu0 0.0
    %3340 = vmatprep.subr.mxu0 0.0
    %3341 = vmatpush1.msra.mxu0 0.0
    %3342 = vmatprep.subr.mxu0 0.0
    %3343 = vmatpush1.msra.mxu0 0.0
    %3344 = vmatprep.subr.mxu0 0.0
    %3345 = vmatpush1.msra.mxu0 0.0
    %3346 = vmatprep.subr.mxu0 0.0
    %3347 = vmatpush1.msra.mxu0 0.0
    %3348 = vmatprep.subr.mxu0 0.0
    %3349 = vmatpush1.msra.mxu0 0.0
    %3350 = vmatprep.subr.mxu0 0.0
    %3351 = vmatpush1.msra.mxu0 0.0
    %3352 = vmatprep.subr.mxu0 0.0
    %3353 = vmatpush1.msra.mxu0 0.0
    %3354 = vmatprep.subr.mxu0 0.0
    %3355 = vmatpush1.msra.mxu0 0.0
    %3356 = vmatprep.subr.mxu0 0.0
    %3357 = vmatpush1.msra.mxu0 0.0
    %3358 = vmatprep.subr.mxu0 0.0
    %3359 = vmatpush1.msra.mxu0 0.0
    %3360 = vmatprep.subr.mxu0 0.0
    %3361 = vmatpush1.msra.mxu0 0.0
    %3362 = vmatprep.subr.mxu0 0.0
    %3363 = vmatpush1.msra.mxu0 0.0
    %3364 = vmatprep.subr.mxu0 0.0
    %3365 = vmatpush1.msra.mxu0 0.0
    %3366 = vmatprep.subr.mxu0 0.0
    %3367 = vmatpush1.msra.mxu0 0.0
    %3368 = vmatprep.subr.mxu0 0.0
    %3369 = vmatpush1.msra.mxu0 0.0
    %3370 = vmatprep.subr.mxu0 0.0
    %3371 = vmatpush1.msra.mxu0 0.0
    %3372 = vmatprep.subr.mxu0 0.0
    %3373 = vmatpush1.msra.mxu0 0.0
    %3374 = vmatprep.subr.mxu0 0.0
    %3375 = vmatpush1.msra.mxu0 0.0
    %3376 = vmatprep.subr.mxu0 0.0
    %3377 = vmatpush1.msra.mxu0 0.0
    %3378 = vmatprep.subr.mxu0 0.0
    %3379 = vmatpush1.msra.mxu0 0.0
    %3380 = vmatprep.subr.mxu0 0.0
    %3381 = vmatpush1.msra.mxu0 0.0
    %3382 = vmatprep.subr.mxu0 0.0
    %3383 = vmatpush1.msra.mxu0 0.0
    %3384 = vmatprep.subr.mxu0 0.0
    %3385 = vmatpush1.msra.mxu0 0.0
    %3386 = vmatprep.subr.mxu0 0.0
    %3387 = vmatpush1.msra.mxu0 0.0
    %3388 = vmatprep.subr.mxu0 0.0
    %3389 = vmatpush1.msra.mxu0 0.0
    %3390 = vmatprep.mubr.f32.mxu0 0.0
    %3391 = vmatmul.mubr.f32.gmra.mrb[0].mxu0 %v3315
    %v3392 = vpop.f32.mrb[0].mxu0
    %v3393 = vadd.f32 0.0, %v3392
    %v3394 = vpop.f32.mrb[0].mxu0
    %v3395 = vadd.f32 0.0, %v3394
    %3396 = vmatprep.mubr.f32.mxu0 0.0
    %3397 = vmatmul.mubr.f32.gmra.mrb[0].mxu0 %v3318
    %v3398 = vpop.f32.mrb[0].mxu0
    %v3399 = vadd.f32 0.0, %v3398
    %v3400 = vpop.f32.mrb[0].mxu0
    %v3401 = vadd.f32 0.0, %v3400
    %3402 = vmatprep.mubr.f32.mxu0 0.0
    %3403 = vmatmul.mubr.f32.gmra.mrb[0].mxu0 %v3321
    %v3404 = vpop.f32.mrb[0].mxu0
    %v3405 = vadd.f32 0.0, %v3404
    %v3406 = vpop.f32.mrb[0].mxu0
    %v3407 = vadd.f32 0.0, %v3406
    %3408 = vmatprep.mubr.f32.mxu0 0.0
    %3409 = vmatmul.mubr.f32.gmra.mrb[0].mxu0 %v3324
    %v3410 = vpop.f32.mrb[0].mxu0
    %v3411 = vadd.f32 0.0, %v3410
    %v3412 = vpop.f32.mrb[0].mxu0
    %v3413 = vadd.f32 0.0, %v3412
    %3414 = vdwg.mxu0
    %v3415 = vadd.f32 %v3258, %v3393
    %v3416 = vadd.f32 %v3259, %v3395
    %v3417 = vadd.f32 %v3260, %v3399
    %v3418 = vadd.f32 %v3261, %v3401
    %v3419 = vadd.f32 %v3262, %v3405
    %v3420 = vadd.f32 %v3263, %v3407
    %v3421 = vadd.f32 %v3264, %v3411
    %v3422 = vadd.f32 %v3265, %v3413
    %v3423 = vld [vmem:[%s3 + $0x80] sm:$0xff]
    %v3424 = vld [vmem:[%s3 + $0x88] sm:$0xff]
    %v3425 = vld [vmem:[%s3 + $0x90] sm:$0xff]
    %v3426 = vld [vmem:[%s3 + $0x98] sm:$0xff]
    %v3428 = vsel %vm90, %v3423, 0
    %v3431 = vsel %vm90, %v3424, 0
    %v3434 = vsel %vm90, %v3425, 0
    %v3437 = vsel %vm90, %v3426, 0
    %3439 = vmatprep.subr.mxu0 %v2804
    %3440 = vmatpush1.msra.mxu0 %v2803
    %3441 = vmatprep.subr.mxu0 %v2806
    %3442 = vmatpush1.msra.mxu0 %v2805
    %3443 = vmatprep.subr.mxu0 %v2808
    %3444 = vmatpush1.msra.mxu0 %v2807
    %3445 = vmatprep.subr.mxu0 %v2810
    %3446 = vmatpush1.msra.mxu0 %v2809
    %3447 = vmatprep.subr.mxu0 0.0
    %3448 = vmatpush1.msra.mxu0 0.0
    %3449 = vmatprep.subr.mxu0 0.0
    %3450 = vmatpush1.msra.mxu0 0.0
    %3451 = vmatprep.subr.mxu0 0.0
    %3452 = vmatpush1.msra.mxu0 0.0
    %3453 = vmatprep.subr.mxu0 0.0
    %3454 = vmatpush1.msra.mxu0 0.0
    %3455 = vmatprep.subr.mxu0 0.0
    %3456 = vmatpush1.msra.mxu0 0.0
    %3457 = vmatprep.subr.mxu0 0.0
    %3458 = vmatpush1.msra.mxu0 0.0
    %3459 = vmatprep.subr.mxu0 0.0
    %3460 = vmatpush1.msra.mxu0 0.0
    %3461 = vmatprep.subr.mxu0 0.0
    %3462 = vmatpush1.msra.mxu0 0.0
    %3463 = vmatprep.subr.mxu0 0.0
    %3464 = vmatpush1.msra.mxu0 0.0
    %3465 = vmatprep.subr.mxu0 0.0
    %3466 = vmatpush1.msra.mxu0 0.0
    %3467 = vmatprep.subr.mxu0 0.0
    %3468 = vmatpush1.msra.mxu0 0.0
    %3469 = vmatprep.subr.mxu0 0.0
    %3470 = vmatpush1.msra.mxu0 0.0
    %3471 = vmatprep.subr.mxu0 0.0
    %3472 = vmatpush1.msra.mxu0 0.0
    %3473 = vmatprep.subr.mxu0 0.0
    %3474 = vmatpush1.msra.mxu0 0.0
    %3475 = vmatprep.subr.mxu0 0.0
    %3476 = vmatpush1.msra.mxu0 0.0
    %3477 = vmatprep.subr.mxu0 0.0
    %3478 = vmatpush1.msra.mxu0 0.0
    %3479 = vmatprep.subr.mxu0 0.0
    %3480 = vmatpush1.msra.mxu0 0.0
    %3481 = vmatprep.subr.mxu0 0.0
    %3482 = vmatpush1.msra.mxu0 0.0
    %3483 = vmatprep.subr.mxu0 0.0
    %3484 = vmatpush1.msra.mxu0 0.0
    %3485 = vmatprep.subr.mxu0 0.0
    %3486 = vmatpush1.msra.mxu0 0.0
    %3487 = vmatprep.subr.mxu0 0.0
    %3488 = vmatpush1.msra.mxu0 0.0
    %3489 = vmatprep.subr.mxu0 0.0
    %3490 = vmatpush1.msra.mxu0 0.0
    %3491 = vmatprep.subr.mxu0 0.0
    %3492 = vmatpush1.msra.mxu0 0.0
    %3493 = vmatprep.subr.mxu0 0.0
    %3494 = vmatpush1.msra.mxu0 0.0
    %3495 = vmatprep.subr.mxu0 0.0
    %3496 = vmatpush1.msra.mxu0 0.0
    %3497 = vmatprep.subr.mxu0 0.0
    %3498 = vmatpush1.msra.mxu0 0.0
    %3499 = vmatprep.subr.mxu0 0.0
    %3500 = vmatpush1.msra.mxu0 0.0
    %3501 = vmatprep.subr.mxu0 0.0
    %3502 = vmatpush1.msra.mxu0 0.0
    %3503 = vmatprep.mubr.f32.mxu0 0.0
    %3504 = vmatmul.mubr.f32.gmra.mrb[0].mxu0 %v3428
    %v3505 = vpop.f32.mrb[0].mxu0
    %v3506 = vadd.f32 0.0, %v3505
    %v3507 = vpop.f32.mrb[0].mxu0
    %v3508 = vadd.f32 0.0, %v3507
    %3509 = vmatprep.mubr.f32.mxu0 0.0
    %3510 = vmatmul.mubr.f32.gmra.mrb[0].mxu0 %v3431
    %v3511 = vpop.f32.mrb[0].mxu0
    %v3512 = vadd.f32 0.0, %v3511
    %v3513 = vpop.f32.mrb[0].mxu0
    %v3514 = vadd.f32 0.0, %v3513
    %3515 = vmatprep.mubr.f32.mxu0 0.0
    %3516 = vmatmul.mubr.f32.gmra.mrb[0].mxu0 %v3434
    %v3517 = vpop.f32.mrb[0].mxu0
    %v3518 = vadd.f32 0.0, %v3517
    %v3519 = vpop.f32.mrb[0].mxu0
    %v3520 = vadd.f32 0.0, %v3519
    %3521 = vmatprep.mubr.f32.mxu0 0.0
    %3522 = vmatmul.mubr.f32.gmra.mrb[0].mxu0 %v3437
    %v3523 = vpop.f32.mrb[0].mxu0
    %v3524 = vadd.f32 0.0, %v3523
    %v3525 = vpop.f32.mrb[0].mxu0
    %v3526 = vadd.f32 0.0, %v3525
    %3527 = vdwg.mxu0
    %v3528 = vadd.f32 %v3415, %v3506
    %v3529 = vadd.f32 %v3416, %v3508
    %v3530 = vadd.f32 %v3417, %v3512
    %v3531 = vadd.f32 %v3418, %v3514
    %v3532 = vadd.f32 %v3419, %v3518
    %v3533 = vadd.f32 %v3420, %v3520
    %v3534 = vadd.f32 %v3421, %v3524
    %v3535 = vadd.f32 %v3422, %v3526
    %3536 = vrot.lane.b32.xlu0 %v2803, 126
    %v3537 = vpop.permute.xlu0 %3536
    %3538 = vrot.lane.b32.xlu0 %v2805, 126
    %v3539 = vpop.permute.xlu0 %3538
    %3540 = vrot.lane.b32.xlu0 %v2807, 126
    %v3541 = vpop.permute.xlu0 %3540
    %3542 = vrot.lane.b32.xlu0 %v2809, 126
    %v3543 = vpop.permute.xlu0 %3542
    %3544 = vrot.lane.b32.xlu0 %v2804, 126
    %v3545 = vpop.permute.xlu0 %3544
    %3546 = vrot.lane.b32.xlu0 %v2806, 126
    %v3547 = vpop.permute.xlu0 %3546
    %3548 = vrot.lane.b32.xlu0 %v2808, 126
    %v3549 = vpop.permute.xlu0 %3548
    %3550 = vrot.lane.b32.xlu0 %v2810, 126
    %v3551 = vpop.permute.xlu0 %3550
    %v3552 = vsel %vm1280, %v3537, %v3545
    %v3553 = vsel %vm1280, %v3539, %v3547
    %v3554 = vsel %vm1280, %v3541, %v3549
    %v3555 = vsel %vm1280, %v3543, %v3551
    %v3556 = vsel %vm1280, %v3545, %v3537
    %v3557 = vsel %vm1280, %v3547, %v3539
    %v3558 = vsel %vm1280, %v3549, %v3541
    %v3559 = vsel %vm1280, %v3551, %v3543
    %v3560 = vld [vmem:[%s1289] ss:$8 sm:$0x3]
    %v3562 = vlaneseq
    %v3563 = vshrl.u32 %v3562, 7
    %v3564 = vsub.s32 0, %v3563
    %v3565 = vrot.slane %v3560, %v3564
    %v3566 = vlaneseq
    %v3567 = vshrl.u32 %v3566, 7
    %v3568 = vsub.s32 1, %v3567
    %v3569 = vrot.slane %v3560, %v3568
    %v3572 = vmul.f32 %v3552, %v3565
    %v3573 = vmul.f32 %v3556, %v3569
    %v3574 = vmul.f32 %v3553, %v3565
    %v3575 = vmul.f32 %v3557, %v3569
    %v3576 = vmul.f32 %v3554, %v3565
    %v3577 = vmul.f32 %v3558, %v3569
    %v3578 = vmul.f32 %v3555, %v3565
    %v3579 = vmul.f32 %v3559, %v3569
    %v3580 = vld [vmem:[%s3 + $0xa0] sm:$0xff]
    %v3581 = vld [vmem:[%s3 + $0xa8] sm:$0xff]
    %v3582 = vld [vmem:[%s3 + $0xb0] sm:$0xff]
    %v3583 = vld [vmem:[%s3 + $0xb8] sm:$0xff]
    %v3585 = vsel %vm90, %v3580, 0
    %v3588 = vsel %vm90, %v3581, 0
    %v3591 = vsel %vm90, %v3582, 0
    %v3594 = vsel %vm90, %v3583, 0
    %3596 = vmatprep.subr.mxu0 %v3573
    %3597 = vmatpush1.msra.mxu0 %v3572
    %3598 = vmatprep.subr.mxu0 %v3575
    %3599 = vmatpush1.msra.mxu0 %v3574
    %3600 = vmatprep.subr.mxu0 %v3577
    %3601 = vmatpush1.msra.mxu0 %v3576
    %3602 = vmatprep.subr.mxu0 %v3579
    %3603 = vmatpush1.msra.mxu0 %v3578
    %3604 = vmatprep.subr.mxu0 0.0
    %3605 = vmatpush1.msra.mxu0 0.0
    %3606 = vmatprep.subr.mxu0 0.0
    %3607 = vmatpush1.msra.mxu0 0.0
    %3608 = vmatprep.subr.mxu0 0.0
    %3609 = vmatpush1.msra.mxu0 0.0
    %3610 = vmatprep.subr.mxu0 0.0
    %3611 = vmatpush1.msra.mxu0 0.0
    %3612 = vmatprep.subr.mxu0 0.0
    %3613 = vmatpush1.msra.mxu0 0.0
    %3614 = vmatprep.subr.mxu0 0.0
    %3615 = vmatpush1.msra.mxu0 0.0
    %3616 = vmatprep.subr.mxu0 0.0
    %3617 = vmatpush1.msra.mxu0 0.0
    %3618 = vmatprep.subr.mxu0 0.0
    %3619 = vmatpush1.msra.mxu0 0.0
    %3620 = vmatprep.subr.mxu0 0.0
    %3621 = vmatpush1.msra.mxu0 0.0
    %3622 = vmatprep.subr.mxu0 0.0
    %3623 = vmatpush1.msra.mxu0 0.0
    %3624 = vmatprep.subr.mxu0 0.0
    %3625 = vmatpush1.msra.mxu0 0.0
    %3626 = vmatprep.subr.mxu0 0.0
    %3627 = vmatpush1.msra.mxu0 0.0
    %3628 = vmatprep.subr.mxu0 0.0
    %3629 = vmatpush1.msra.mxu0 0.0
    %3630 = vmatprep.subr.mxu0 0.0
    %3631 = vmatpush1.msra.mxu0 0.0
    %3632 = vmatprep.subr.mxu0 0.0
    %3633 = vmatpush1.msra.mxu0 0.0
    %3634 = vmatprep.subr.mxu0 0.0
    %3635 = vmatpush1.msra.mxu0 0.0
    %3636 = vmatprep.subr.mxu0 0.0
    %3637 = vmatpush1.msra.mxu0 0.0
    %3638 = vmatprep.subr.mxu0 0.0
    %3639 = vmatpush1.msra.mxu0 0.0
    %3640 = vmatprep.subr.mxu0 0.0
    %3641 = vmatpush1.msra.mxu0 0.0
    %3642 = vmatprep.subr.mxu0 0.0
    %3643 = vmatpush1.msra.mxu0 0.0
    %3644 = vmatprep.subr.mxu0 0.0
    %3645 = vmatpush1.msra.mxu0 0.0
    %3646 = vmatprep.subr.mxu0 0.0
    %3647 = vmatpush1.msra.mxu0 0.0
    %3648 = vmatprep.subr.mxu0 0.0
    %3649 = vmatpush1.msra.mxu0 0.0
    %3650 = vmatprep.subr.mxu0 0.0
    %3651 = vmatpush1.msra.mxu0 0.0
    %3652 = vmatprep.subr.mxu0 0.0
    %3653 = vmatpush1.msra.mxu0 0.0
    %3654 = vmatprep.subr.mxu0 0.0
    %3655 = vmatpush1.msra.mxu0 0.0
    %3656 = vmatprep.subr.mxu0 0.0
    %3657 = vmatpush1.msra.mxu0 0.0
    %3658 = vmatprep.subr.mxu0 0.0
    %3659 = vmatpush1.msra.mxu0 0.0
    %3660 = vmatprep.mubr.f32.mxu0 0.0
    %3661 = vmatmul.mubr.f32.gmra.mrb[0].mxu0 %v3585
    %v3662 = vpop.f32.mrb[0].mxu0
    %v3663 = vadd.f32 0.0, %v3662
    %v3664 = vpop.f32.mrb[0].mxu0
    %v3665 = vadd.f32 0.0, %v3664
    %3666 = vmatprep.mubr.f32.mxu0 0.0
    %3667 = vmatmul.mubr.f32.gmra.mrb[0].mxu0 %v3588
    %v3668 = vpop.f32.mrb[0].mxu0
    %v3669 = vadd.f32 0.0, %v3668
    %v3670 = vpop.f32.mrb[0].mxu0
    %v3671 = vadd.f32 0.0, %v3670
    %3672 = vmatprep.mubr.f32.mxu0 0.0
    %3673 = vmatmul.mubr.f32.gmra.mrb[0].mxu0 %v3591
    %v3674 = vpop.f32.mrb[0].mxu0
    %v3675 = vadd.f32 0.0, %v3674
    %v3676 = vpop.f32.mrb[0].mxu0
    %v3677 = vadd.f32 0.0, %v3676
    %3678 = vmatprep.mubr.f32.mxu0 0.0
    %3679 = vmatmul.mubr.f32.gmra.mrb[0].mxu0 %v3594
    %v3680 = vpop.f32.mrb[0].mxu0
    %v3681 = vadd.f32 0.0, %v3680
    %v3682 = vpop.f32.mrb[0].mxu0
    %v3683 = vadd.f32 0.0, %v3682
    %3684 = vdwg.mxu0
    %v3685 = vadd.f32 %v3528, %v3663
    %v3686 = vadd.f32 %v3529, %v3665
    %v3687 = vadd.f32 %v3530, %v3669
    %v3688 = vadd.f32 %v3531, %v3671
    %v3689 = vadd.f32 %v3532, %v3675
    %v3690 = vadd.f32 %v3533, %v3677
    %v3691 = vadd.f32 %v3534, %v3681
    %v3692 = vadd.f32 %v3535, %v3683
    %3693 = vrot.lane.b32.xlu0 %v2803, 98
    %v3694 = vpop.permute.xlu0 %3693
    %3695 = vrot.lane.b32.xlu0 %v2805, 98
    %v3696 = vpop.permute.xlu0 %3695
    %3697 = vrot.lane.b32.xlu0 %v2807, 98
    %v3698 = vpop.permute.xlu0 %3697
    %3699 = vrot.lane.b32.xlu0 %v2809, 98
    %v3700 = vpop.permute.xlu0 %3699
    %3701 = vrot.lane.b32.xlu0 %v2804, 98
    %v3702 = vpop.permute.xlu0 %3701
    %3703 = vrot.lane.b32.xlu0 %v2806, 98
    %v3704 = vpop.permute.xlu0 %3703
    %3705 = vrot.lane.b32.xlu0 %v2808, 98
    %v3706 = vpop.permute.xlu0 %3705
    %3707 = vrot.lane.b32.xlu0 %v2810, 98
    %v3708 = vpop.permute.xlu0 %3707
    %v3709 = vsel %vm1439, %v3694, %v3702
    %v3710 = vsel %vm1439, %v3696, %v3704
    %v3711 = vsel %vm1439, %v3698, %v3706
    %v3712 = vsel %vm1439, %v3700, %v3708
    %v3713 = vsel %vm1439, %v3702, %v3694
    %v3714 = vsel %vm1439, %v3704, %v3696
    %v3715 = vsel %vm1439, %v3706, %v3698
    %v3716 = vsel %vm1439, %v3708, %v3700
    %v3717 = vld [vmem:[%s1448] ss:$8 sm:$0x3]
    %v3719 = vlaneseq
    %v3720 = vshrl.u32 %v3719, 7
    %v3721 = vsub.s32 0, %v3720
    %v3722 = vrot.slane %v3717, %v3721
    %v3723 = vlaneseq
    %v3724 = vshrl.u32 %v3723, 7
    %v3725 = vsub.s32 1, %v3724
    %v3726 = vrot.slane %v3717, %v3725
    %v3729 = vmul.f32 %v3709, %v3722
    %v3730 = vmul.f32 %v3713, %v3726
    %v3731 = vmul.f32 %v3710, %v3722
    %v3732 = vmul.f32 %v3714, %v3726
    %v3733 = vmul.f32 %v3711, %v3722
    %v3734 = vmul.f32 %v3715, %v3726
    %v3735 = vmul.f32 %v3712, %v3722
    %v3736 = vmul.f32 %v3716, %v3726
    %v3737 = vld [vmem:[%s3 + $0xc0] sm:$0xff]
    %v3738 = vld [vmem:[%s3 + $0xc8] sm:$0xff]
    %v3739 = vld [vmem:[%s3 + $0xd0] sm:$0xff]
    %v3740 = vld [vmem:[%s3 + $0xd8] sm:$0xff]
    %v3742 = vsel %vm90, %v3737, 0
    %v3745 = vsel %vm90, %v3738, 0
    %v3748 = vsel %vm90, %v3739, 0
    %v3751 = vsel %vm90, %v3740, 0
    %3753 = vmatprep.subr.mxu0 %v3730
    %3754 = vmatpush1.msra.mxu0 %v3729
    %3755 = vmatprep.subr.mxu0 %v3732
    %3756 = vmatpush1.msra.mxu0 %v3731
    %3757 = vmatprep.subr.mxu0 %v3734
    %3758 = vmatpush1.msra.mxu0 %v3733
    %3759 = vmatprep.subr.mxu0 %v3736
    %3760 = vmatpush1.msra.mxu0 %v3735
    %3761 = vmatprep.subr.mxu0 0.0
    %3762 = vmatpush1.msra.mxu0 0.0
    %3763 = vmatprep.subr.mxu0 0.0
    %3764 = vmatpush1.msra.mxu0 0.0
    %3765 = vmatprep.subr.mxu0 0.0
    %3766 = vmatpush1.msra.mxu0 0.0
    %3767 = vmatprep.subr.mxu0 0.0
    %3768 = vmatpush1.msra.mxu0 0.0
    %3769 = vmatprep.subr.mxu0 0.0
    %3770 = vmatpush1.msra.mxu0 0.0
    %3771 = vmatprep.subr.mxu0 0.0
    %3772 = vmatpush1.msra.mxu0 0.0
    %3773 = vmatprep.subr.mxu0 0.0
    %3774 = vmatpush1.msra.mxu0 0.0
    %3775 = vmatprep.subr.mxu0 0.0
    %3776 = vmatpush1.msra.mxu0 0.0
    %3777 = vmatprep.subr.mxu0 0.0
    %3778 = vmatpush1.msra.mxu0 0.0
    %3779 = vmatprep.subr.mxu0 0.0
    %3780 = vmatpush1.msra.mxu0 0.0
    %3781 = vmatprep.subr.mxu0 0.0
    %3782 = vmatpush1.msra.mxu0 0.0
    %3783 = vmatprep.subr.mxu0 0.0
    %3784 = vmatpush1.msra.mxu0 0.0
    %3785 = vmatprep.subr.mxu0 0.0
    %3786 = vmatpush1.msra.mxu0 0.0
    %3787 = vmatprep.subr.mxu0 0.0
    %3788 = vmatpush1.msra.mxu0 0.0
    %3789 = vmatprep.subr.mxu0 0.0
    %3790 = vmatpush1.msra.mxu0 0.0
    %3791 = vmatprep.subr.mxu0 0.0
    %3792 = vmatpush1.msra.mxu0 0.0
    %3793 = vmatprep.subr.mxu0 0.0
    %3794 = vmatpush1.msra.mxu0 0.0
    %3795 = vmatprep.subr.mxu0 0.0
    %3796 = vmatpush1.msra.mxu0 0.0
    %3797 = vmatprep.subr.mxu0 0.0
    %3798 = vmatpush1.msra.mxu0 0.0
    %3799 = vmatprep.subr.mxu0 0.0
    %3800 = vmatpush1.msra.mxu0 0.0
    %3801 = vmatprep.subr.mxu0 0.0
    %3802 = vmatpush1.msra.mxu0 0.0
    %3803 = vmatprep.subr.mxu0 0.0
    %3804 = vmatpush1.msra.mxu0 0.0
    %3805 = vmatprep.subr.mxu0 0.0
    %3806 = vmatpush1.msra.mxu0 0.0
    %3807 = vmatprep.subr.mxu0 0.0
    %3808 = vmatpush1.msra.mxu0 0.0
    %3809 = vmatprep.subr.mxu0 0.0
    %3810 = vmatpush1.msra.mxu0 0.0
    %3811 = vmatprep.subr.mxu0 0.0
    %3812 = vmatpush1.msra.mxu0 0.0
    %3813 = vmatprep.subr.mxu0 0.0
    %3814 = vmatpush1.msra.mxu0 0.0
    %3815 = vmatprep.subr.mxu0 0.0
    %3816 = vmatpush1.msra.mxu0 0.0
    %3817 = vmatprep.mubr.f32.mxu0 0.0
    %3818 = vmatmul.mubr.f32.gmra.mrb[0].mxu0 %v3742
    %v3819 = vpop.f32.mrb[0].mxu0
    %v3820 = vadd.f32 0.0, %v3819
    %v3821 = vpop.f32.mrb[0].mxu0
    %v3822 = vadd.f32 0.0, %v3821
    %3823 = vmatprep.mubr.f32.mxu0 0.0
    %3824 = vmatmul.mubr.f32.gmra.mrb[0].mxu0 %v3745
    %v3825 = vpop.f32.mrb[0].mxu0
    %v3826 = vadd.f32 0.0, %v3825
    %v3827 = vpop.f32.mrb[0].mxu0
    %v3828 = vadd.f32 0.0, %v3827
    %3829 = vmatprep.mubr.f32.mxu0 0.0
    %3830 = vmatmul.mubr.f32.gmra.mrb[0].mxu0 %v3748
    %v3831 = vpop.f32.mrb[0].mxu0
    %v3832 = vadd.f32 0.0, %v3831
    %v3833 = vpop.f32.mrb[0].mxu0
    %v3834 = vadd.f32 0.0, %v3833
    %3835 = vmatprep.mubr.f32.mxu0 0.0
    %3836 = vmatmul.mubr.f32.gmra.mrb[0].mxu0 %v3751
    %v3837 = vpop.f32.mrb[0].mxu0
    %v3838 = vadd.f32 0.0, %v3837
    %v3839 = vpop.f32.mrb[0].mxu0
    %v3840 = vadd.f32 0.0, %v3839
    %3841 = vdwg.mxu0
    %v3842 = vadd.f32 %v3685, %v3820
    %v3843 = vadd.f32 %v3686, %v3822
    %v3844 = vadd.f32 %v3687, %v3826
    %v3845 = vadd.f32 %v3688, %v3828
    %v3846 = vadd.f32 %v3689, %v3832
    %v3847 = vadd.f32 %v3690, %v3834
    %v3848 = vadd.f32 %v3691, %v3838
    %v3849 = vadd.f32 %v3692, %v3840
    %3850 = vrot.lane.b32.xlu0 %v2803, 96
    %v3851 = vpop.permute.xlu0 %3850
    %3852 = vrot.lane.b32.xlu0 %v2805, 96
    %v3853 = vpop.permute.xlu0 %3852
    %3854 = vrot.lane.b32.xlu0 %v2807, 96
    %v3855 = vpop.permute.xlu0 %3854
    %3856 = vrot.lane.b32.xlu0 %v2809, 96
    %v3857 = vpop.permute.xlu0 %3856
    %3858 = vrot.lane.b32.xlu0 %v2804, 96
    %v3859 = vpop.permute.xlu0 %3858
    %3860 = vrot.lane.b32.xlu0 %v2806, 96
    %v3861 = vpop.permute.xlu0 %3860
    %3862 = vrot.lane.b32.xlu0 %v2808, 96
    %v3863 = vpop.permute.xlu0 %3862
    %3864 = vrot.lane.b32.xlu0 %v2810, 96
    %v3865 = vpop.permute.xlu0 %3864
    %v3866 = vsel %vm1598, %v3851, %v3859
    %v3867 = vsel %vm1598, %v3853, %v3861
    %v3868 = vsel %vm1598, %v3855, %v3863
    %v3869 = vsel %vm1598, %v3857, %v3865
    %v3870 = vsel %vm1598, %v3859, %v3851
    %v3871 = vsel %vm1598, %v3861, %v3853
    %v3872 = vsel %vm1598, %v3863, %v3855
    %v3873 = vsel %vm1598, %v3865, %v3857
    %v3874 = vld [vmem:[%s1607] ss:$8 sm:$0x3]
    %v3876 = vlaneseq
    %v3877 = vshrl.u32 %v3876, 7
    %v3878 = vsub.s32 0, %v3877
    %v3879 = vrot.slane %v3874, %v3878
    %v3880 = vlaneseq
    %v3881 = vshrl.u32 %v3880, 7
    %v3882 = vsub.s32 1, %v3881
    %v3883 = vrot.slane %v3874, %v3882
    %v3886 = vmul.f32 %v3866, %v3879
    %v3887 = vmul.f32 %v3870, %v3883
    %v3888 = vmul.f32 %v3867, %v3879
    %v3889 = vmul.f32 %v3871, %v3883
    %v3890 = vmul.f32 %v3868, %v3879
    %v3891 = vmul.f32 %v3872, %v3883
    %v3892 = vmul.f32 %v3869, %v3879
    %v3893 = vmul.f32 %v3873, %v3883
    %v3894 = vld [vmem:[%s3 + $0xe0] sm:$0xff]
    %v3895 = vld [vmem:[%s3 + $0xe8] sm:$0xff]
    %v3896 = vld [vmem:[%s3 + $0xf0] sm:$0xff]
    %v3897 = vld [vmem:[%s3 + $0xf8] sm:$0xff]
    %v3899 = vsel %vm90, %v3894, 0
    %v3902 = vsel %vm90, %v3895, 0
    %v3905 = vsel %vm90, %v3896, 0
    %v3908 = vsel %vm90, %v3897, 0
    %3910 = vmatprep.subr.mxu0 %v3887
    %3911 = vmatpush1.msra.mxu0 %v3886
    %3912 = vmatprep.subr.mxu0 %v3889
    %3913 = vmatpush1.msra.mxu0 %v3888
    %3914 = vmatprep.subr.mxu0 %v3891
    %3915 = vmatpush1.msra.mxu0 %v3890
    %3916 = vmatprep.subr.mxu0 %v3893
    %3917 = vmatpush1.msra.mxu0 %v3892
    %3918 = vmatprep.subr.mxu0 0.0
    %3919 = vmatpush1.msra.mxu0 0.0
    %3920 = vmatprep.subr.mxu0 0.0
    %3921 = vmatpush1.msra.mxu0 0.0
    %3922 = vmatprep.subr.mxu0 0.0
    %3923 = vmatpush1.msra.mxu0 0.0
    %3924 = vmatprep.subr.mxu0 0.0
    %3925 = vmatpush1.msra.mxu0 0.0
    %3926 = vmatprep.subr.mxu0 0.0
    %3927 = vmatpush1.msra.mxu0 0.0
    %3928 = vmatprep.subr.mxu0 0.0
    %3929 = vmatpush1.msra.mxu0 0.0
    %3930 = vmatprep.subr.mxu0 0.0
    %3931 = vmatpush1.msra.mxu0 0.0
    %3932 = vmatprep.subr.mxu0 0.0
    %3933 = vmatpush1.msra.mxu0 0.0
    %3934 = vmatprep.subr.mxu0 0.0
    %3935 = vmatpush1.msra.mxu0 0.0
    %3936 = vmatprep.subr.mxu0 0.0
    %3937 = vmatpush1.msra.mxu0 0.0
    %3938 = vmatprep.subr.mxu0 0.0
    %3939 = vmatpush1.msra.mxu0 0.0
    %3940 = vmatprep.subr.mxu0 0.0
    %3941 = vmatpush1.msra.mxu0 0.0
    %3942 = vmatprep.subr.mxu0 0.0
    %3943 = vmatpush1.msra.mxu0 0.0
    %3944 = vmatprep.subr.mxu0 0.0
    %3945 = vmatpush1.msra.mxu0 0.0
    %3946 = vmatprep.subr.mxu0 0.0
    %3947 = vmatpush1.msra.mxu0 0.0
    %3948 = vmatprep.subr.mxu0 0.0
    %3949 = vmatpush1.msra.mxu0 0.0
    %3950 = vmatprep.subr.mxu0 0.0
    %3951 = vmatpush1.msra.mxu0 0.0
    %3952 = vmatprep.subr.mxu0 0.0
    %3953 = vmatpush1.msra.mxu0 0.0
    %3954 = vmatprep.subr.mxu0 0.0
    %3955 = vmatpush1.msra.mxu0 0.0
    %3956 = vmatprep.subr.mxu0 0.0
    %3957 = vmatpush1.msra.mxu0 0.0
    %3958 = vmatprep.subr.mxu0 0.0
    %3959 = vmatpush1.msra.mxu0 0.0
    %3960 = vmatprep.subr.mxu0 0.0
    %3961 = vmatpush1.msra.mxu0 0.0
    %3962 = vmatprep.subr.mxu0 0.0
    %3963 = vmatpush1.msra.mxu0 0.0
    %3964 = vmatprep.subr.mxu0 0.0
    %3965 = vmatpush1.msra.mxu0 0.0
    %3966 = vmatprep.subr.mxu0 0.0
    %3967 = vmatpush1.msra.mxu0 0.0
    %3968 = vmatprep.subr.mxu0 0.0
    %3969 = vmatpush1.msra.mxu0 0.0
    %3970 = vmatprep.subr.mxu0 0.0
    %3971 = vmatpush1.msra.mxu0 0.0
    %3972 = vmatprep.subr.mxu0 0.0
    %3973 = vmatpush1.msra.mxu0 0.0
    %3974 = vmatprep.mubr.f32.mxu0 0.0
    %3975 = vmatmul.mubr.f32.gmra.mrb[0].mxu0 %v3899
    %v3976 = vpop.f32.mrb[0].mxu0
    %v3977 = vadd.f32 0.0, %v3976
    %v3978 = vpop.f32.mrb[0].mxu0
    %v3979 = vadd.f32 0.0, %v3978
    %3980 = vmatprep.mubr.f32.mxu0 0.0
    %3981 = vmatmul.mubr.f32.gmra.mrb[0].mxu0 %v3902
    %v3982 = vpop.f32.mrb[0].mxu0
    %v3983 = vadd.f32 0.0, %v3982
    %v3984 = vpop.f32.mrb[0].mxu0
    %v3985 = vadd.f32 0.0, %v3984
    %3986 = vmatprep.mubr.f32.mxu0 0.0
    %3987 = vmatmul.mubr.f32.gmra.mrb[0].mxu0 %v3905
    %v3988 = vpop.f32.mrb[0].mxu0
    %v3989 = vadd.f32 0.0, %v3988
    %v3990 = vpop.f32.mrb[0].mxu0
    %v3991 = vadd.f32 0.0, %v3990
    %3992 = vmatprep.mubr.f32.mxu0 0.0
    %3993 = vmatmul.mubr.f32.gmra.mrb[0].mxu0 %v3908
    %v3994 = vpop.f32.mrb[0].mxu0
    %v3995 = vadd.f32 0.0, %v3994
    %v3996 = vpop.f32.mrb[0].mxu0
    %v3997 = vadd.f32 0.0, %v3996
    %3998 = vdwg.mxu0
    %v3999 = vadd.f32 %v3842, %v3977
    %v4000 = vadd.f32 %v3843, %v3979
    %v4001 = vadd.f32 %v3844, %v3983
    %v4002 = vadd.f32 %v3845, %v3985
    %v4003 = vadd.f32 %v3846, %v3989
    %v4004 = vadd.f32 %v3847, %v3991
    %v4005 = vadd.f32 %v3848, %v3995
    %v4006 = vadd.f32 %v3849, %v3997
    %4007 = vrot.lane.b32.xlu0 %v2803, 94
    %v4008 = vpop.permute.xlu0 %4007
    %4009 = vrot.lane.b32.xlu0 %v2805, 94
    %v4010 = vpop.permute.xlu0 %4009
    %4011 = vrot.lane.b32.xlu0 %v2807, 94
    %v4012 = vpop.permute.xlu0 %4011
    %4013 = vrot.lane.b32.xlu0 %v2809, 94
    %v4014 = vpop.permute.xlu0 %4013
    %4015 = vrot.lane.b32.xlu0 %v2804, 94
    %v4016 = vpop.permute.xlu0 %4015
    %4017 = vrot.lane.b32.xlu0 %v2806, 94
    %v4018 = vpop.permute.xlu0 %4017
    %4019 = vrot.lane.b32.xlu0 %v2808, 94
    %v4020 = vpop.permute.xlu0 %4019
    %4021 = vrot.lane.b32.xlu0 %v2810, 94
    %v4022 = vpop.permute.xlu0 %4021
    %v4023 = vsel %vm1757, %v4008, %v4016
    %v4024 = vsel %vm1757, %v4010, %v4018
    %v4025 = vsel %vm1757, %v4012, %v4020
    %v4026 = vsel %vm1757, %v4014, %v4022
    %v4027 = vsel %vm1757, %v4016, %v4008
    %v4028 = vsel %vm1757, %v4018, %v4010
    %v4029 = vsel %vm1757, %v4020, %v4012
    %v4030 = vsel %vm1757, %v4022, %v4014
    %v4031 = vld [vmem:[%s1766] ss:$8 sm:$0x3]
    %v4033 = vlaneseq
    %v4034 = vshrl.u32 %v4033, 7
    %v4035 = vsub.s32 0, %v4034
    %v4036 = vrot.slane %v4031, %v4035
    %v4037 = vlaneseq
    %v4038 = vshrl.u32 %v4037, 7
    %v4039 = vsub.s32 1, %v4038
    %v4040 = vrot.slane %v4031, %v4039
    %v4043 = vmul.f32 %v4023, %v4036
    %v4044 = vmul.f32 %v4027, %v4040
    %v4045 = vmul.f32 %v4024, %v4036
    %v4046 = vmul.f32 %v4028, %v4040
    %v4047 = vmul.f32 %v4025, %v4036
    %v4048 = vmul.f32 %v4029, %v4040
    %v4049 = vmul.f32 %v4026, %v4036
    %v4050 = vmul.f32 %v4030, %v4040
    %v4051 = vld [vmem:[%s3 + $0x100] sm:$0xff]
    %v4052 = vld [vmem:[%s3 + $0x108] sm:$0xff]
    %v4053 = vld [vmem:[%s3 + $0x110] sm:$0xff]
    %v4054 = vld [vmem:[%s3 + $0x118] sm:$0xff]
    %v4056 = vsel %vm90, %v4051, 0
    %v4059 = vsel %vm90, %v4052, 0
    %v4062 = vsel %vm90, %v4053, 0
    %v4065 = vsel %vm90, %v4054, 0
    %4067 = vmatprep.subr.mxu0 %v4044
    %4068 = vmatpush1.msra.mxu0 %v4043
    %4069 = vmatprep.subr.mxu0 %v4046
    %4070 = vmatpush1.msra.mxu0 %v4045
    %4071 = vmatprep.subr.mxu0 %v4048
    %4072 = vmatpush1.msra.mxu0 %v4047
    %4073 = vmatprep.subr.mxu0 %v4050
    %4074 = vmatpush1.msra.mxu0 %v4049
    %4075 = vmatprep.subr.mxu0 0.0
    %4076 = vmatpush1.msra.mxu0 0.0
    %4077 = vmatprep.subr.mxu0 0.0
    %4078 = vmatpush1.msra.mxu0 0.0
    %4079 = vmatprep.subr.mxu0 0.0
    %4080 = vmatpush1.msra.mxu0 0.0
    %4081 = vmatprep.subr.mxu0 0.0
    %4082 = vmatpush1.msra.mxu0 0.0
    %4083 = vmatprep.subr.mxu0 0.0
    %4084 = vmatpush1.msra.mxu0 0.0
    %4085 = vmatprep.subr.mxu0 0.0
    %4086 = vmatpush1.msra.mxu0 0.0
    %4087 = vmatprep.subr.mxu0 0.0
    %4088 = vmatpush1.msra.mxu0 0.0
    %4089 = vmatprep.subr.mxu0 0.0
    %4090 = vmatpush1.msra.mxu0 0.0
    %4091 = vmatprep.subr.mxu0 0.0
    %4092 = vmatpush1.msra.mxu0 0.0
    %4093 = vmatprep.subr.mxu0 0.0
    %4094 = vmatpush1.msra.mxu0 0.0
    %4095 = vmatprep.subr.mxu0 0.0
    %4096 = vmatpush1.msra.mxu0 0.0
    %4097 = vmatprep.subr.mxu0 0.0
    %4098 = vmatpush1.msra.mxu0 0.0
    %4099 = vmatprep.subr.mxu0 0.0
    %4100 = vmatpush1.msra.mxu0 0.0
    %4101 = vmatprep.subr.mxu0 0.0
    %4102 = vmatpush1.msra.mxu0 0.0
    %4103 = vmatprep.subr.mxu0 0.0
    %4104 = vmatpush1.msra.mxu0 0.0
    %4105 = vmatprep.subr.mxu0 0.0
    %4106 = vmatpush1.msra.mxu0 0.0
    %4107 = vmatprep.subr.mxu0 0.0
    %4108 = vmatpush1.msra.mxu0 0.0
    %4109 = vmatprep.subr.mxu0 0.0
    %4110 = vmatpush1.msra.mxu0 0.0
    %4111 = vmatprep.subr.mxu0 0.0
    %4112 = vmatpush1.msra.mxu0 0.0
    %4113 = vmatprep.subr.mxu0 0.0
    %4114 = vmatpush1.msra.mxu0 0.0
    %4115 = vmatprep.subr.mxu0 0.0
    %4116 = vmatpush1.msra.mxu0 0.0
    %4117 = vmatprep.subr.mxu0 0.0
    %4118 = vmatpush1.msra.mxu0 0.0
    %4119 = vmatprep.subr.mxu0 0.0
    %4120 = vmatpush1.msra.mxu0 0.0
    %4121 = vmatprep.subr.mxu0 0.0
    %4122 = vmatpush1.msra.mxu0 0.0
    %4123 = vmatprep.subr.mxu0 0.0
    %4124 = vmatpush1.msra.mxu0 0.0
    %4125 = vmatprep.subr.mxu0 0.0
    %4126 = vmatpush1.msra.mxu0 0.0
    %4127 = vmatprep.subr.mxu0 0.0
    %4128 = vmatpush1.msra.mxu0 0.0
    %4129 = vmatprep.subr.mxu0 0.0
    %4130 = vmatpush1.msra.mxu0 0.0
    %4131 = vmatprep.mubr.f32.mxu0 0.0
    %4132 = vmatmul.mubr.f32.gmra.mrb[0].mxu0 %v4056
    %v4133 = vpop.f32.mrb[0].mxu0
    %v4134 = vadd.f32 0.0, %v4133
    %v4135 = vpop.f32.mrb[0].mxu0
    %v4136 = vadd.f32 0.0, %v4135
    %4137 = vmatprep.mubr.f32.mxu0 0.0
    %4138 = vmatmul.mubr.f32.gmra.mrb[0].mxu0 %v4059
    %v4139 = vpop.f32.mrb[0].mxu0
    %v4140 = vadd.f32 0.0, %v4139
    %v4141 = vpop.f32.mrb[0].mxu0
    %v4142 = vadd.f32 0.0, %v4141
    %4143 = vmatprep.mubr.f32.mxu0 0.0
    %4144 = vmatmul.mubr.f32.gmra.mrb[0].mxu0 %v4062
    %v4145 = vpop.f32.mrb[0].mxu0
    %v4146 = vadd.f32 0.0, %v4145
    %v4147 = vpop.f32.mrb[0].mxu0
    %v4148 = vadd.f32 0.0, %v4147
    %4149 = vmatprep.mubr.f32.mxu0 0.0
    %4150 = vmatmul.mubr.f32.gmra.mrb[0].mxu0 %v4065
    %v4151 = vpop.f32.mrb[0].mxu0
    %v4152 = vadd.f32 0.0, %v4151
    %v4153 = vpop.f32.mrb[0].mxu0
    %v4154 = vadd.f32 0.0, %v4153
    %4155 = vdwg.mxu0
    %v4156 = vadd.f32 %v3999, %v4134
    %v4157 = vadd.f32 %v4000, %v4136
    %v4158 = vadd.f32 %v4001, %v4140
    %v4159 = vadd.f32 %v4002, %v4142
    %v4160 = vadd.f32 %v4003, %v4146
    %v4161 = vadd.f32 %v4004, %v4148
    %v4162 = vadd.f32 %v4005, %v4152
    %v4163 = vadd.f32 %v4006, %v4154
    %v4164 = vadd.f32 %v4156, %v1903
    %v4165 = vadd.f32 %v4157, %v1903
    %v4166 = vadd.f32 %v4158, %v1908
    %v4167 = vadd.f32 %v4159, %v1908
    %v4168 = vadd.f32 %v4160, %v1913
    %v4169 = vadd.f32 %v4161, %v1913
    %v4170 = vadd.f32 %v4162, %v1918
    %v4171 = vadd.f32 %v4163, %v1918
    %v4172 = vadd.f32 %v4164, %v4165
    %4173 = vadd.xlane.f32.xlu0 %v4172
    %v4174 = vpop.xlane.xlu0 %4173
    %v4175 = vadd.f32 %v4166, %v4167
    %4176 = vadd.xlane.f32.xlu0 %v4175
    %v4177 = vpop.xlane.xlu0 %4176
    %v4178 = vadd.f32 %v4168, %v4169
    %4179 = vadd.xlane.f32.xlu0 %v4178
    %v4180 = vpop.xlane.xlu0 %4179
    %v4181 = vadd.f32 %v4170, %v4171
    %4182 = vadd.xlane.f32.xlu0 %v4181
    %v4183 = vpop.xlane.xlu0 %4182
    %v4184 = vmul.f32 %v4164, %v4164
    %v4185 = vmul.f32 %v4165, %v4165
    %v4186 = vmul.f32 %v4166, %v4166
    %v4187 = vmul.f32 %v4167, %v4167
    %v4188 = vmul.f32 %v4168, %v4168
    %v4189 = vmul.f32 %v4169, %v4169
    %v4190 = vmul.f32 %v4170, %v4170
    %v4191 = vmul.f32 %v4171, %v4171
    %v4192 = vadd.f32 %v4184, %v4185
    %4193 = vadd.xlane.f32.xlu0 %v4192
    %v4194 = vpop.xlane.xlu0 %4193
    %v4195 = vadd.f32 %v4186, %v4187
    %4196 = vadd.xlane.f32.xlu0 %v4195
    %v4197 = vpop.xlane.xlu0 %4196
    %v4198 = vadd.f32 %v4188, %v4189
    %4199 = vadd.xlane.f32.xlu0 %v4198
    %v4200 = vpop.xlane.xlu0 %4199
    %v4201 = vadd.f32 %v4190, %v4191
    %4202 = vadd.xlane.f32.xlu0 %v4201
    %v4203 = vpop.xlane.xlu0 %4202
    %4204 = vmatprep.subr.mxu0 0.0
    %4205 = vmatpush1.msra.mxu0 %v4174
    %4206 = vmatprep.subr.mxu0 0.0
    %4207 = vmatpush1.msra.mxu0 %v4177
    %4208 = vmatprep.subr.mxu0 0.0
    %4209 = vmatpush1.msra.mxu0 %v4180
    %4210 = vmatprep.subr.mxu0 0.0
    %4211 = vmatpush1.msra.mxu0 %v4183
    %4212 = vmatprep.subr.mxu0 0.0
    %4213 = vmatpush1.msra.mxu0 0.0
    %4214 = vmatprep.subr.mxu0 0.0
    %4215 = vmatpush1.msra.mxu0 0.0
    %4216 = vmatprep.subr.mxu0 0.0
    %4217 = vmatpush1.msra.mxu0 0.0
    %4218 = vmatprep.subr.mxu0 0.0
    %4219 = vmatpush1.msra.mxu0 0.0
    %4220 = vmatprep.subr.mxu0 0.0
    %4221 = vmatpush1.msra.mxu0 0.0
    %4222 = vmatprep.subr.mxu0 0.0
    %4223 = vmatpush1.msra.mxu0 0.0
    %4224 = vmatprep.subr.mxu0 0.0
    %4225 = vmatpush1.msra.mxu0 0.0
    %4226 = vmatprep.subr.mxu0 0.0
    %4227 = vmatpush1.msra.mxu0 0.0
    %4228 = vmatprep.subr.mxu0 0.0
    %4229 = vmatpush1.msra.mxu0 0.0
    %4230 = vmatprep.subr.mxu0 0.0
    %4231 = vmatpush1.msra.mxu0 0.0
    %4232 = vmatprep.subr.mxu0 0.0
    %4233 = vmatpush1.msra.mxu0 0.0
    %4234 = vmatprep.subr.mxu0 0.0
    %4235 = vmatpush1.msra.mxu0 0.0
    %4236 = vmatprep.subr.mxu0 0.0
    %4237 = vmatpush1.msra.mxu0 0.0
    %4238 = vmatprep.subr.mxu0 0.0
    %4239 = vmatpush1.msra.mxu0 0.0
    %4240 = vmatprep.subr.mxu0 0.0
    %4241 = vmatpush1.msra.mxu0 0.0
    %4242 = vmatprep.subr.mxu0 0.0
    %4243 = vmatpush1.msra.mxu0 0.0
    %4244 = vmatprep.subr.mxu0 0.0
    %4245 = vmatpush1.msra.mxu0 0.0
    %4246 = vmatprep.subr.mxu0 0.0
    %4247 = vmatpush1.msra.mxu0 0.0
    %4248 = vmatprep.subr.mxu0 0.0
    %4249 = vmatpush1.msra.mxu0 0.0
    %4250 = vmatprep.subr.mxu0 0.0
    %4251 = vmatpush1.msra.mxu0 0.0
    %4252 = vmatprep.subr.mxu0 0.0
    %4253 = vmatpush1.msra.mxu0 0.0
    %4254 = vmatprep.subr.mxu0 0.0
    %4255 = vmatpush1.msra.mxu0 0.0
    %4256 = vmatprep.subr.mxu0 0.0
    %4257 = vmatpush1.msra.mxu0 0.0
    %4258 = vmatprep.subr.mxu0 0.0
    %4259 = vmatpush1.msra.mxu0 0.0
    %4260 = vmatprep.subr.mxu0 0.0
    %4261 = vmatpush1.msra.mxu0 0.0
    %4262 = vmatprep.subr.mxu0 0.0
    %4263 = vmatpush1.msra.mxu0 0.0
    %4264 = vmatprep.subr.mxu0 0.0
    %4265 = vmatpush1.msra.mxu0 0.0
    %4266 = vmatprep.subr.mxu0 0.0
    %4267 = vmatpush1.msra.mxu0 0.0
    %4268 = vmatprep.mubr.f32.mxu0 0.0
    %4269 = vmatmul.mubr.f32.gmra.mrb[0].mxu0 %v225
    %v4270 = vpop.f32.mrb[0].mxu0
    %v4271 = vadd.f32 0.0, %v4270
    %v4272 = vpop.f32.mrb[0].mxu0
    %4273 = vmatprep.mubr.f32.mxu0 0.0
    %4274 = vmatmul.mubr.f32.gmra.mrb[0].mxu0 %v228
    %v4275 = vpop.f32.mrb[0].mxu0
    %v4276 = vadd.f32 0.0, %v4275
    %v4277 = vpop.f32.mrb[0].mxu0
    %4278 = vmatprep.mubr.f32.mxu0 0.0
    %4279 = vmatmul.mubr.f32.gmra.mrb[0].mxu0 %v231
    %v4280 = vpop.f32.mrb[0].mxu0
    %v4281 = vadd.f32 0.0, %v4280
    %v4282 = vpop.f32.mrb[0].mxu0
    %4283 = vmatprep.mubr.f32.mxu0 0.0
    %4284 = vmatmul.mubr.f32.gmra.mrb[0].mxu0 %v234
    %v4285 = vpop.f32.mrb[0].mxu0
    %v4286 = vadd.f32 0.0, %v4285
    %v4287 = vpop.f32.mrb[0].mxu0
    %4288 = vdwg.mxu0
    %4289 = vmatprep.subr.mxu0 0.0
    %4290 = vmatpush1.msra.mxu0 %v4194
    %4291 = vmatprep.subr.mxu0 0.0
    %4292 = vmatpush1.msra.mxu0 %v4197
    %4293 = vmatprep.subr.mxu0 0.0
    %4294 = vmatpush1.msra.mxu0 %v4200
    %4295 = vmatprep.subr.mxu0 0.0
    %4296 = vmatpush1.msra.mxu0 %v4203
    %4297 = vmatprep.subr.mxu0 0.0
    %4298 = vmatpush1.msra.mxu0 0.0
    %4299 = vmatprep.subr.mxu0 0.0
    %4300 = vmatpush1.msra.mxu0 0.0
    %4301 = vmatprep.subr.mxu0 0.0
    %4302 = vmatpush1.msra.mxu0 0.0
    %4303 = vmatprep.subr.mxu0 0.0
    %4304 = vmatpush1.msra.mxu0 0.0
    %4305 = vmatprep.subr.mxu0 0.0
    %4306 = vmatpush1.msra.mxu0 0.0
    %4307 = vmatprep.subr.mxu0 0.0
    %4308 = vmatpush1.msra.mxu0 0.0
    %4309 = vmatprep.subr.mxu0 0.0
    %4310 = vmatpush1.msra.mxu0 0.0
    %4311 = vmatprep.subr.mxu0 0.0
    %4312 = vmatpush1.msra.mxu0 0.0
    %4313 = vmatprep.subr.mxu0 0.0
    %4314 = vmatpush1.msra.mxu0 0.0
    %4315 = vmatprep.subr.mxu0 0.0
    %4316 = vmatpush1.msra.mxu0 0.0
    %4317 = vmatprep.subr.mxu0 0.0
    %4318 = vmatpush1.msra.mxu0 0.0
    %4319 = vmatprep.subr.mxu0 0.0
    %4320 = vmatpush1.msra.mxu0 0.0
    %4321 = vmatprep.subr.mxu0 0.0
    %4322 = vmatpush1.msra.mxu0 0.0
    %4323 = vmatprep.subr.mxu0 0.0
    %4324 = vmatpush1.msra.mxu0 0.0
    %4325 = vmatprep.subr.mxu0 0.0
    %4326 = vmatpush1.msra.mxu0 0.0
    %4327 = vmatprep.subr.mxu0 0.0
    %4328 = vmatpush1.msra.mxu0 0.0
    %4329 = vmatprep.subr.mxu0 0.0
    %4330 = vmatpush1.msra.mxu0 0.0
    %4331 = vmatprep.subr.mxu0 0.0
    %4332 = vmatpush1.msra.mxu0 0.0
    %4333 = vmatprep.subr.mxu0 0.0
    %4334 = vmatpush1.msra.mxu0 0.0
    %4335 = vmatprep.subr.mxu0 0.0
    %4336 = vmatpush1.msra.mxu0 0.0
    %4337 = vmatprep.subr.mxu0 0.0
    %4338 = vmatpush1.msra.mxu0 0.0
    %4339 = vmatprep.subr.mxu0 0.0
    %4340 = vmatpush1.msra.mxu0 0.0
    %4341 = vmatprep.subr.mxu0 0.0
    %4342 = vmatpush1.msra.mxu0 0.0
    %4343 = vmatprep.subr.mxu0 0.0
    %4344 = vmatpush1.msra.mxu0 0.0
    %4345 = vmatprep.subr.mxu0 0.0
    %4346 = vmatpush1.msra.mxu0 0.0
    %4347 = vmatprep.subr.mxu0 0.0
    %4348 = vmatpush1.msra.mxu0 0.0
    %4349 = vmatprep.subr.mxu0 0.0
    %4350 = vmatpush1.msra.mxu0 0.0
    %4351 = vmatprep.subr.mxu0 0.0
    %4352 = vmatpush1.msra.mxu0 0.0
    %4353 = vmatprep.mubr.f32.mxu0 0.0
    %4354 = vmatmul.mubr.f32.gmra.mrb[0].mxu0 %v225
    %v4355 = vpop.f32.mrb[0].mxu0
    %v4356 = vadd.f32 0.0, %v4355
    %v4357 = vpop.f32.mrb[0].mxu0
    %4358 = vmatprep.mubr.f32.mxu0 0.0
    %4359 = vmatmul.mubr.f32.gmra.mrb[0].mxu0 %v228
    %v4360 = vpop.f32.mrb[0].mxu0
    %v4361 = vadd.f32 0.0, %v4360
    %v4362 = vpop.f32.mrb[0].mxu0
    %4363 = vmatprep.mubr.f32.mxu0 0.0
    %4364 = vmatmul.mubr.f32.gmra.mrb[0].mxu0 %v231
    %v4365 = vpop.f32.mrb[0].mxu0
    %v4366 = vadd.f32 0.0, %v4365
    %v4367 = vpop.f32.mrb[0].mxu0
    %4368 = vmatprep.mubr.f32.mxu0 0.0
    %4369 = vmatmul.mubr.f32.gmra.mrb[0].mxu0 %v234
    %v4370 = vpop.f32.mrb[0].mxu0
    %v4371 = vadd.f32 0.0, %v4370
    %v4372 = vpop.f32.mrb[0].mxu0
    %4373 = vdwg.mxu0
    %v4374 = vmul.f32 %v4271, %v4271
    %v4375 = vmul.f32 %v4276, %v4276
    %v4376 = vmul.f32 %v4281, %v4281
    %v4377 = vmul.f32 %v4286, %v4286
    %v4378 = vsub.f32 %v4356, %v4374
    %v4379 = vsub.f32 %v4361, %v4375
    %v4380 = vsub.f32 %v4366, %v4376
    %v4381 = vsub.f32 %v4371, %v4377
    %v4382 = vmax.f32 %v4378, 0.0
    %v4383 = vmax.f32 %v4379, 0.0
    %v4384 = vmax.f32 %v4380, 0.0
    %v4385 = vmax.f32 %v4381, 0.0
    %v4386 = vadd.f32 %v4382, 1e-05
    %v4387 = vadd.f32 %v4383, 1e-05
    %v4388 = vadd.f32 %v4384, 1e-05
    %v4389 = vadd.f32 %v4385, 1e-05
    %v4390 = vrsqrt.pop %v4386
    %v4391 = vrsqrt.pop %v4387
    %v4392 = vrsqrt.pop %v4388
    %v4393 = vrsqrt.pop %v4389
    %4395 = vset.pattern.permute.xlu0 0
    %4396 = vperm.xlu0 %4395, %v4271
    %v4397 = vpop.permute.xlu0 %4396
    %4400 = vset.pattern.permute.xlu0 0
    %4401 = vperm.xlu0 %4400, %v4276
    %v4402 = vpop.permute.xlu0 %4401
    %4405 = vset.pattern.permute.xlu0 0
    %4406 = vperm.xlu0 %4405, %v4281
    %v4407 = vpop.permute.xlu0 %4406
    %4410 = vset.pattern.permute.xlu0 0
    %4411 = vperm.xlu0 %4410, %v4286
    %v4412 = vpop.permute.xlu0 %4411
    %v4414 = vsub.f32 %v4164, %v4397
    %v4415 = vsub.f32 %v4165, %v4397
    %v4416 = vsub.f32 %v4166, %v4402
    %v4417 = vsub.f32 %v4167, %v4402
    %v4418 = vsub.f32 %v4168, %v4407
    %v4419 = vsub.f32 %v4169, %v4407
    %v4420 = vsub.f32 %v4170, %v4412
    %v4421 = vsub.f32 %v4171, %v4412
    %v4422 = vmul.f32 %v4390, %v50
    %v4423 = vmul.f32 %v4391, %v51
    %v4424 = vmul.f32 %v4392, %v52
    %v4425 = vmul.f32 %v4393, %v53
    %4427 = vset.pattern.permute.xlu0 0
    %4428 = vperm.xlu0 %4427, %v4422
    %v4429 = vpop.permute.xlu0 %4428
    %4432 = vset.pattern.permute.xlu0 0
    %4433 = vperm.xlu0 %4432, %v4423
    %v4434 = vpop.permute.xlu0 %4433
    %4437 = vset.pattern.permute.xlu0 0
    %4438 = vperm.xlu0 %4437, %v4424
    %v4439 = vpop.permute.xlu0 %4438
    %4442 = vset.pattern.permute.xlu0 0
    %4443 = vperm.xlu0 %4442, %v4425
    %v4444 = vpop.permute.xlu0 %4443
    %v4446 = vmul.f32 %v4414, %v4429
    %v4447 = vmul.f32 %v4415, %v4429
    %v4448 = vmul.f32 %v4416, %v4434
    %v4449 = vmul.f32 %v4417, %v4434
    %v4450 = vmul.f32 %v4418, %v4439
    %v4451 = vmul.f32 %v4419, %v4439
    %v4452 = vmul.f32 %v4420, %v4444
    %v4453 = vmul.f32 %v4421, %v4444
    %v4454 = vadd.f32 %v4446, %v2213
    %v4455 = vadd.f32 %v4447, %v2213
    %v4456 = vadd.f32 %v4448, %v2218
    %v4457 = vadd.f32 %v4449, %v2218
    %v4458 = vadd.f32 %v4450, %v2223
    %v4459 = vadd.f32 %v4451, %v2223
    %v4460 = vadd.f32 %v4452, %v2228
    %v4461 = vadd.f32 %v4453, %v2228
    %v4462 = vmul.f32 %v4454, 0.05
    %v4463 = vmul.f32 %v4455, 0.05
    %v4464 = vmul.f32 %v4456, 0.05
    %v4465 = vmul.f32 %v4457, 0.05
    %v4466 = vmul.f32 %v4458, 0.05
    %v4467 = vmul.f32 %v4459, 0.05
    %v4468 = vmul.f32 %v4460, 0.05
    %v4469 = vmul.f32 %v4461, 0.05
    %v4470 = vmax.f32 %v4454, %v4462
    %v4471 = vmax.f32 %v4455, %v4463
    %v4472 = vmax.f32 %v4456, %v4464
    %v4473 = vmax.f32 %v4457, %v4465
    %v4474 = vmax.f32 %v4458, %v4466
    %v4475 = vmax.f32 %v4459, %v4467
    %v4476 = vmax.f32 %v4460, %v4468
    %v4477 = vmax.f32 %v4461, %v4469
    %v4478 = vld [vmem:[%s4] sm:$0xff]
    %v4479 = vld [vmem:[%s4 + $0x8] sm:$0xff]
    %v4480 = vld [vmem:[%s4 + $0x10] sm:$0xff]
    %v4481 = vld [vmem:[%s4 + $0x18] sm:$0xff]
    %v4482 = vld [vmem:[%s6] sm:$0xff]
    %v4483 = vld [vmem:[%s6 + $0x8] sm:$0xff]
    %v4484 = vld [vmem:[%s6 + $0x10] sm:$0xff]
    %v4485 = vld [vmem:[%s6 + $0x18] sm:$0xff]
    %4487 = vset.pattern.permute.xlu0 0
    %4488 = vperm.xlu0 %4487, %v4482
    %v4489 = vpop.permute.xlu0 %4488
    %4492 = vset.pattern.permute.xlu0 0
    %4493 = vperm.xlu0 %4492, %v4483
    %v4494 = vpop.permute.xlu0 %4493
    %4497 = vset.pattern.permute.xlu0 0
    %4498 = vperm.xlu0 %4497, %v4484
    %v4499 = vpop.permute.xlu0 %4498
    %4502 = vset.pattern.permute.xlu0 0
    %4503 = vperm.xlu0 %4502, %v4485
    %v4504 = vpop.permute.xlu0 %4503
    %v4507 = vsel %vm90, %v4478, 0
    %v4510 = vsel %vm90, %v4479, 0
    %v4513 = vsel %vm90, %v4480, 0
    %v4516 = vsel %vm90, %v4481, 0
    %4518 = vmatprep.subr.mxu0 %v4471
    %4519 = vmatpush1.msra.mxu0 %v4470
    %4520 = vmatprep.subr.mxu0 %v4473
    %4521 = vmatpush1.msra.mxu0 %v4472
    %4522 = vmatprep.subr.mxu0 %v4475
    %4523 = vmatpush1.msra.mxu0 %v4474
    %4524 = vmatprep.subr.mxu0 %v4477
    %4525 = vmatpush1.msra.mxu0 %v4476
    %4526 = vmatprep.subr.mxu0 0.0
    %4527 = vmatpush1.msra.mxu0 0.0
    %4528 = vmatprep.subr.mxu0 0.0
    %4529 = vmatpush1.msra.mxu0 0.0
    %4530 = vmatprep.subr.mxu0 0.0
    %4531 = vmatpush1.msra.mxu0 0.0
    %4532 = vmatprep.subr.mxu0 0.0
    %4533 = vmatpush1.msra.mxu0 0.0
    %4534 = vmatprep.subr.mxu0 0.0
    %4535 = vmatpush1.msra.mxu0 0.0
    %4536 = vmatprep.subr.mxu0 0.0
    %4537 = vmatpush1.msra.mxu0 0.0
    %4538 = vmatprep.subr.mxu0 0.0
    %4539 = vmatpush1.msra.mxu0 0.0
    %4540 = vmatprep.subr.mxu0 0.0
    %4541 = vmatpush1.msra.mxu0 0.0
    %4542 = vmatprep.subr.mxu0 0.0
    %4543 = vmatpush1.msra.mxu0 0.0
    %4544 = vmatprep.subr.mxu0 0.0
    %4545 = vmatpush1.msra.mxu0 0.0
    %4546 = vmatprep.subr.mxu0 0.0
    %4547 = vmatpush1.msra.mxu0 0.0
    %4548 = vmatprep.subr.mxu0 0.0
    %4549 = vmatpush1.msra.mxu0 0.0
    %4550 = vmatprep.subr.mxu0 0.0
    %4551 = vmatpush1.msra.mxu0 0.0
    %4552 = vmatprep.subr.mxu0 0.0
    %4553 = vmatpush1.msra.mxu0 0.0
    %4554 = vmatprep.subr.mxu0 0.0
    %4555 = vmatpush1.msra.mxu0 0.0
    %4556 = vmatprep.subr.mxu0 0.0
    %4557 = vmatpush1.msra.mxu0 0.0
    %4558 = vmatprep.subr.mxu0 0.0
    %4559 = vmatpush1.msra.mxu0 0.0
    %4560 = vmatprep.subr.mxu0 0.0
    %4561 = vmatpush1.msra.mxu0 0.0
    %4562 = vmatprep.subr.mxu0 0.0
    %4563 = vmatpush1.msra.mxu0 0.0
    %4564 = vmatprep.subr.mxu0 0.0
    %4565 = vmatpush1.msra.mxu0 0.0
    %4566 = vmatprep.subr.mxu0 0.0
    %4567 = vmatpush1.msra.mxu0 0.0
    %4568 = vmatprep.subr.mxu0 0.0
    %4569 = vmatpush1.msra.mxu0 0.0
    %4570 = vmatprep.subr.mxu0 0.0
    %4571 = vmatpush1.msra.mxu0 0.0
    %4572 = vmatprep.subr.mxu0 0.0
    %4573 = vmatpush1.msra.mxu0 0.0
    %4574 = vmatprep.subr.mxu0 0.0
    %4575 = vmatpush1.msra.mxu0 0.0
    %4576 = vmatprep.subr.mxu0 0.0
    %4577 = vmatpush1.msra.mxu0 0.0
    %4578 = vmatprep.subr.mxu0 0.0
    %4579 = vmatpush1.msra.mxu0 0.0
    %4580 = vmatprep.subr.mxu0 0.0
    %4581 = vmatpush1.msra.mxu0 0.0
    %4582 = vmatprep.mubr.f32.mxu0 0.0
    %4583 = vmatmul.mubr.f32.gmra.mrb[0].mxu0 %v4507
    %v4584 = vpop.f32.mrb[0].mxu0
    %v4585 = vadd.f32 %v4489, %v4584
    %v4586 = vpop.f32.mrb[0].mxu0
    %v4587 = vadd.f32 %v4489, %v4586
    %4588 = vmatprep.mubr.f32.mxu0 0.0
    %4589 = vmatmul.mubr.f32.gmra.mrb[0].mxu0 %v4510
    %v4590 = vpop.f32.mrb[0].mxu0
    %v4591 = vadd.f32 %v4494, %v4590
    %v4592 = vpop.f32.mrb[0].mxu0
    %v4593 = vadd.f32 %v4494, %v4592
    %4594 = vmatprep.mubr.f32.mxu0 0.0
    %4595 = vmatmul.mubr.f32.gmra.mrb[0].mxu0 %v4513
    %v4596 = vpop.f32.mrb[0].mxu0
    %v4597 = vadd.f32 %v4499, %v4596
    %v4598 = vpop.f32.mrb[0].mxu0
    %v4599 = vadd.f32 %v4499, %v4598
    %4600 = vmatprep.mubr.f32.mxu0 0.0
    %4601 = vmatmul.mubr.f32.gmra.mrb[0].mxu0 %v4516
    %v4602 = vpop.f32.mrb[0].mxu0
    %v4603 = vadd.f32 %v4504, %v4602
    %v4604 = vpop.f32.mrb[0].mxu0
    %v4605 = vadd.f32 %v4504, %v4604
    %4606 = vdwg.mxu0
    %s4607 = scalar_lea.vmem [#allocation2], 64
    %4608 = vst [vmem:[%s4607] sm:$0xff] %v4585
    %4609 = vst [vmem:[%s4607 + $0x8] sm:$0xff] %v4587
    %4610 = vst [vmem:[%s4607 + $0x10] sm:$0xff] %v4591
    %4611 = vst [vmem:[%s4607 + $0x18] sm:$0xff] %v4593
    %4612 = vst [vmem:[%s4607 + $0x20] sm:$0xff] %v4597
    %4613 = vst [vmem:[%s4607 + $0x28] sm:$0xff] %v4599
    %4614 = vst [vmem:[%s4607 + $0x30] sm:$0xff] %v4603
    %4615 = vst [vmem:[%s4607 + $0x38] sm:$0xff] %v4605
    // Predicated region
    $region34: #{tpu_custom_call.1} parent=1 // pred_check
      _
    $region35: #{tpu_custom_call.1} parent=1 // pred_check_branch
      %4617 = sbr.rel (0) target = $region37
    $region36: #{tpu_custom_call.1} parent=1 // pred_region
      %s4619 = ssub.s32 2048, 2048
      %4620 = vsyncadd [#allocation3], %s4619
      %s4621 = sshll.u32 [#allocation2], 4
      %s4622 = int_to_ptr.vmem [resolvable:$true] %s4621
      %4627 = dma.vmem_to_hbm [thread:$0]  %s4622, 2048, %s8, [#allocation3], 256, 256, 16
    $region37: #{tpu_custom_call.1} parent=1 // pred_fallthru
      _
    // Predicated region
    $region38: #{tpu_custom_call.1} parent=1 // pred_check
      _
    $region39: #{tpu_custom_call.1} parent=1 // pred_check_branch
      %4629 = sbr.rel (0) target = $region41
    $region40: #{tpu_custom_call.1} parent=1 // pred_region
      %4630 = dma.done [#allocation3], 2048
    $region41: #{tpu_custom_call.1} parent=1 // pred_fallthru
      _
    %4631 = vsyncpa [#allocation3], 1

</llo_original>
